<compile_context>
chip_gen: v5e
topology: v5e:2x2
jax: 0.10.0
libtpu: 0.0.40
codegen_flags: <defaults>
</compile_context>

<pallas_src>
import functools

import jax
import jax.numpy as jnp
from jax import lax
from jax.experimental import pallas as pl
from jax.experimental.pallas import tpu as pltpu


def _silu(x):
    return x * jax.nn.sigmoid(x)


# ---------------------------------------------------------------------------
# Fused MBConv kernel (one grid step == one sample).
# ---------------------------------------------------------------------------
def _mbconv_kernel(x_ref, we_ref, es_ref, eb_ref,
                   wd_ref, ds_ref, db_ref,
                   w1_ref, b1_ref, w2_ref, b2_ref,
                   wpT_ref, ps_ref, pb_ref,
                   o_ref, planes_ref, dw_ref, *, H, W, KS, R):
    Cmid = we_ref.shape[1]
    HW = H * W
    p = KS // 2

    # ---- Stage 1: 1x1 expand straight from the NCHW block (Cin-contracting LHS)
    #      + folded BN + SiLU ---------------------------------------------------
    y = lax.dot_general(x_ref[0], we_ref[...], (((0,), (0,)), ((), ())),
                        preferred_element_type=jnp.float32)          # (HW, Cmid)
    y = _silu(y * es_ref[...] + eb_ref[...])
    y3 = y.reshape(H, W, Cmid)

    # ---- Stage 2a: materialize the KS dx-shifted planes ONCE ------------------
    # planes_ref[dx, p + h, w, c] == y[h, w + dx - p, c]  (zero out of range).
    # Trailing scratch dims are (W, Cmid) -> all stores/reads below are
    # leading-dim slices (tile aligned); only the KS-1 shifted copies here touch
    # the sublane axis, instead of 6 unaligned window reads per step.
    for dx in range(KS):
        s = dx - p
        if s < 0:
            plane = jnp.concatenate(
                [jnp.zeros((H, -s, Cmid), jnp.float32), y3[:, :W + s, :]], axis=1)
        elif s > 0:
            plane = jnp.concatenate(
                [y3[:, s:, :], jnp.zeros((H, s, Cmid), jnp.float32)], axis=1)
        else:
            plane = y3
        planes_ref[dx, p:p + H, :, :] = plane
        # Zero ONLY the halo rows, every step (megacore-safe; interior is fully
        # overwritten above).
        zrow = jnp.zeros((p, W, Cmid), jnp.float32)
        planes_ref[dx, 0:p, :, :] = zrow
        planes_ref[dx, p + H:p + H + p, :, :] = zrow

    # ---- Stage 2b: 9-tap accumulation over row strips; strip accumulator stays
    #      in vregs across all taps (no per-tap VMEM round trips) ---------------
    taps = wd_ref[...]                                                # (KS*KS, Cmid)
    s_dw = ds_ref[...]
    b_dw = db_ref[...]
    n_strips = H // R

    def strip_body(i, pooled):
        r0 = pl.multiple_of(i * R, R)
        acc = jnp.zeros((R, W, Cmid), jnp.float32)
        for dy in range(KS):
            for dx in range(KS):
                j = dy * KS + dx
                win = planes_ref[dx, pl.ds(r0 + dy, R), :, :]         # aligned read
                acc = acc + win * taps[j:j + 1, :]
        strip = _silu(acc * s_dw + b_dw).reshape(R * W, Cmid)
        m0 = pl.multiple_of(i * (R * W), R * W)
        dw_ref[pl.ds(m0, R * W), :] = strip                           # aligned store
        return pooled + jnp.sum(strip, axis=0, keepdims=True)

    pooled = lax.fori_loop(0, n_strips, strip_body,
                           jnp.zeros((1, Cmid), jnp.float32), unroll=True)
    pooled = pooled * (1.0 / HW)                                      # mean pool

    # ---- Stage 3: squeeze-excite ----------------------------------------------
    h1 = _silu(jnp.dot(pooled, w1_ref[...],
                       preferred_element_type=jnp.float32) + b1_ref[...])
    gate = jax.nn.sigmoid(jnp.dot(h1, w2_ref[...],
                                  preferred_element_type=jnp.float32) + b2_ref[...])

    # ---- Stage 4: 1x1 project (transposed -> NCHW layout) + BN + residual -----
    # Fold the SE gate into the small (Cout, Cmid) weight instead of rescaling
    # the (HW, Cmid) activation: zT[o,m] = sum_c (wpT[o,c]*gate[c]) * dw[m,c].
    wg = wpT_ref[...] * gate                                          # (Cout, Cmid)
    zT = lax.dot_general(wg, dw_ref[...], (((1,), (1,)), ((), ())),
                         preferred_element_type=jnp.float32)          # (Cout, HW)
    zT = zT * ps_ref[...] + pb_ref[...] + x_ref[0]                    # residual (NCHW)
    o_ref[0] = zT.astype(o_ref.dtype)                                 # lane-dense store


# ---------------------------------------------------------------------------
# One-time parameter preparation (hoisted out of the jitted forward).
# ---------------------------------------------------------------------------
def prepare_params(params):
    Cmid = params["w_expand"].shape[1]
    Cout = params["w_project"].shape[1]
    Hd = params["w_se1"].shape[1]
    return {
        "w_expand": jnp.asarray(params["w_expand"], jnp.float32),
        "s_expand": jnp.reshape(params["s_expand"], (1, Cmid)),
        "b_expand": jnp.reshape(params["b_expand"], (1, Cmid)),
        "w_dw": jnp.asarray(params["w_dw"], jnp.float32),
        "s_dw": jnp.reshape(params["s_dw"], (1, Cmid)),
        "b_dw": jnp.reshape(params["b_dw"], (1, Cmid)),
        "w_se1": jnp.asarray(params["w_se1"], jnp.float32),
        "b_se1": jnp.reshape(params["b_se1"], (1, Hd)),
        "w_se2": jnp.asarray(params["w_se2"], jnp.float32),
        "b_se2": jnp.reshape(params["b_se2"], (1, Cmid)),
        "w_projectT": jnp.transpose(params["w_project"]),             # (Cout, Cmid)
        "s_project": jnp.reshape(params["s_project"], (Cout, 1)),
        "b_project": jnp.reshape(params["b_project"], (Cout, 1)),
    }


# ---------------------------------------------------------------------------
# Wrapper: NCHW in, NCHW out (PyTorch convention).
# ---------------------------------------------------------------------------
def mbconv_forward(x_nchw, prep, *, ks=3):
    N, Cin, H, W = x_nchw.shape
    Cmid = prep["w_expand"].shape[1]
    Cout = prep["w_projectT"].shape[0]
    Hd = prep["w_se1"].shape[1]
    HW = H * W
    # This fused kernel assumes the skip-connection config (stride 1, Cin==Cout)
    # and (8,128)-friendly dims; other configs need explicit padding.
    assert Cin == Cout and W % 8 == 0 and HW % 128 == 0 and Cmid % 128 == 0

    pad = ks // 2
    R = 4 if H % 4 == 0 else (2 if H % 2 == 0 else 1)   # rows per depthwise strip

    x_flat = x_nchw.reshape(N, Cin, HW)                 # pure reshape, stays NCHW

    kernel = functools.partial(_mbconv_kernel, H=H, W=W, KS=ks, R=R)
    const2d = lambda n: (0, 0)

    out = pl.pallas_call(
        kernel,
        out_shape=jax.ShapeDtypeStruct((N, Cout, HW), jnp.float32),
        grid=(N,),
        in_specs=[
            pl.BlockSpec((1, Cin, HW), lambda n: (n, 0, 0)),   # x (NCHW): expand + residual
            pl.BlockSpec((Cin, Cmid), const2d),                # w_expand
            pl.BlockSpec((1, Cmid), const2d),                  # s_expand
            pl.BlockSpec((1, Cmid), const2d),                  # b_expand
            pl.BlockSpec((ks * ks, Cmid), const2d),            # w_dw
            pl.BlockSpec((1, Cmid), const2d),                  # s_dw
            pl.BlockSpec((1, Cmid), const2d),                  # b_dw
            pl.BlockSpec((Cmid, Hd), const2d),                 # w_se1
            pl.BlockSpec((1, Hd), const2d),                    # b_se1
            pl.BlockSpec((Hd, Cmid), const2d),                 # w_se2
            pl.BlockSpec((1, Cmid), const2d),                  # b_se2
            pl.BlockSpec((Cout, Cmid), const2d),               # w_project^T
            pl.BlockSpec((Cout, 1), const2d),                  # s_project (col)
            pl.BlockSpec((Cout, 1), const2d),                  # b_project (col)
        ],
        out_specs=pl.BlockSpec((1, Cout, HW), lambda n: (n, 0, 0)),
        scratch_shapes=[
            pltpu.VMEM((ks, H + 2 * pad, W, Cmid), jnp.float32),   # dx-shifted planes
            pltpu.VMEM((HW, Cmid), jnp.float32),                   # depthwise+SiLU out
        ],
        compiler_params=pltpu.CompilerParams(
            dimension_semantics=("parallel",),
            vmem_limit_bytes=32 * 1024 * 1024),
    )(x_flat,
      prep["w_expand"], prep["s_expand"], prep["b_expand"],
      prep["w_dw"], prep["s_dw"], prep["b_dw"],
      prep["w_se1"], prep["b_se1"], prep["w_se2"], prep["b_se2"],
      prep["w_projectT"], prep["s_project"], prep["b_project"])

    return out.reshape(N, Cout, H, W)                   # pure reshape: already NCHW


# ---------------------------------------------------------------------------
# Pure-JAX reference (same math) for the correctness check.
# ---------------------------------------------------------------------------
def mbconv_reference(x_nchw, p):
    x = jnp.transpose(x_nchw, (0, 2, 3, 1))
    N, H, W, Cin = x.shape
    y = _silu(jnp.einsum("nhwc,cd->nhwd", x, p["w_expand"]) * p["s_expand"]
              + p["b_expand"])
    yp = jnp.pad(y, ((0, 0), (1, 1), (1, 1), (0, 0)))
    acc = jnp.zeros_like(y)
    for dy in range(3):
        for dx in range(3):
            acc = acc + yp[:, dy:dy + H, dx:dx + W, :] * p["w_dw"][dy * 3 + dx]
    y = _silu(acc * p["s_dw"] + p["b_dw"])
    pooled = jnp.mean(y, axis=(1, 2))
    h = _silu(pooled @ p["w_se1"] + p["b_se1"])
    g = jax.nn.sigmoid(h @ p["w_se2"] + p["b_se2"])
    y = y * g[:, None, None, :]
    z = jnp.einsum("nhwc,cd->nhwd", y, p["w_project"]) * p["s_project"] + p["b_project"]
    z = z + x
    return jnp.transpose(z, (0, 3, 1, 2))


def make_params(key, cin, cmid, cout, se_hidden, ks=3):
    keys = jax.random.split(key, 12)
    n = lambda k, s, sc=0.1: jax.random.normal(k, s, jnp.float32) * sc
    return {
        "w_expand": n(keys[0], (cin, cmid)),
        "s_expand": 1.0 + n(keys[1], (cmid,), 0.05),
        "b_expand": n(keys[2], (cmid,), 0.05),
        "w_dw": n(keys[3], (ks * ks, cmid)),
        "s_dw": 1.0 + n(keys[4], (cmid,), 0.05),
        "b_dw": n(keys[5], (cmid,), 0.05),
        "w_se1": n(keys[6], (cmid, se_hidden)),
        "b_se1": n(keys[7], (se_hidden,), 0.05),
        "w_se2": n(keys[8], (se_hidden, cmid)),
        "b_se2": n(keys[9], (cmid,), 0.05),
        "w_project": n(keys[10], (cmid, cout)),
        "s_project": 1.0 + n(keys[11], (cout,), 0.05),
        "b_project": jnp.zeros((cout,), jnp.float32),
    }


if __name__ == "__main__":
    # MBConvConfig realized: in_ch=out_ch=32, expand_ratio=4, kernel=3, stride=1.
    batch, in_ch, spatial = 2, 32, 16
    expand_ratio = 4
    inter = in_ch * expand_ratio                 # adjust_channels(in_ch, expand_ratio)
    se_hidden = inter // (4 * expand_ratio)      # SqueezeExcite(inter, 4*expand_ratio)
    out_ch = in_ch

    key = jax.random.PRNGKey(0)
    k_x, k_p = jax.random.split(key)
    x = jax.random.normal(k_x, (batch, in_ch, spatial, spatial), jnp.float32)
    params = make_params(k_p, in_ch, inter, out_ch, se_hidden)
    prep = prepare_params(params)                # one-time param prep (outside jit)

    fwd = jax.jit(mbconv_forward)
    out = jax.block_until_ready(fwd(x, prep))

    ref = jax.block_until_ready(mbconv_reference(x, params))
    assert out.shape == (batch, out_ch, spatial, spatial)
    assert jnp.allclose(out, ref, atol=2e-4, rtol=2e-4), "mismatch vs reference"

    print("KERNEL_OK")
</pallas_src>

<mosaic_0001>
module attributes {stable_mosaic.version = 11 : i64} {
  func.func @_mbconv_kernel(%arg0: i32, %arg1: memref<1x32x256xf32, #tpu.memory_space<vmem>>, %arg2: memref<32x128xf32, #tpu.memory_space<vmem>>, %arg3: memref<1x128xf32, #tpu.memory_space<vmem>>, %arg4: memref<1x128xf32, #tpu.memory_space<vmem>>, %arg5: memref<9x128xf32, #tpu.memory_space<vmem>>, %arg6: memref<1x128xf32, #tpu.memory_space<vmem>>, %arg7: memref<1x128xf32, #tpu.memory_space<vmem>>, %arg8: memref<128x8xf32, #tpu.memory_space<vmem>>, %arg9: memref<1x8xf32, #tpu.memory_space<vmem>>, %arg10: memref<8x128xf32, #tpu.memory_space<vmem>>, %arg11: memref<1x128xf32, #tpu.memory_space<vmem>>, %arg12: memref<32x128xf32, #tpu.memory_space<vmem>>, %arg13: memref<32x1xf32, #tpu.memory_space<vmem>>, %arg14: memref<32x1xf32, #tpu.memory_space<vmem>>, %arg15: memref<1x32x256xf32, #tpu.memory_space<vmem>>, %arg16: memref<3x18x16x128xf32, #tpu.memory_space<vmem>>, %arg17: memref<256x128xf32, #tpu.memory_space<vmem>>) attributes {dimension_semantics = [#tpu.dimension_semantics<parallel>], iteration_bounds = array<i64: 2>, scalar_prefetch = 0 : i64, scratch_operands = 2 : i64, tpu.core_type = #tpu.core_type<tc>, window_params = [{transform_indices = @transform_0, window_bounds = array<i64: 1, 32, 256>}, {pipeline_mode = #tpu.pipeline_mode<synchronous>, transform_indices = @transform_1, window_bounds = array<i64: 32, 128>}, {pipeline_mode = #tpu.pipeline_mode<synchronous>, transform_indices = @transform_2, window_bounds = array<i64: 1, 128>}, {pipeline_mode = #tpu.pipeline_mode<synchronous>, transform_indices = @transform_3, window_bounds = array<i64: 1, 128>}, {pipeline_mode = #tpu.pipeline_mode<synchronous>, transform_indices = @transform_4, window_bounds = array<i64: 9, 128>}, {pipeline_mode = #tpu.pipeline_mode<synchronous>, transform_indices = @transform_5, window_bounds = array<i64: 1, 128>}, {pipeline_mode = #tpu.pipeline_mode<synchronous>, transform_indices = @transform_6, window_bounds = array<i64: 1, 128>}, {pipeline_mode = #tpu.pipeline_mode<synchronous>, transform_indices = @transform_7, window_bounds = array<i64: 128, 8>}, {pipeline_mode = #tpu.pipeline_mode<synchronous>, transform_indices = @transform_8, window_bounds = array<i64: 1, 8>}, {pipeline_mode = #tpu.pipeline_mode<synchronous>, transform_indices = @transform_9, window_bounds = array<i64: 8, 128>}, {pipeline_mode = #tpu.pipeline_mode<synchronous>, transform_indices = @transform_10, window_bounds = array<i64: 1, 128>}, {pipeline_mode = #tpu.pipeline_mode<synchronous>, transform_indices = @transform_11, window_bounds = array<i64: 32, 128>}, {pipeline_mode = #tpu.pipeline_mode<synchronous>, transform_indices = @transform_12, window_bounds = array<i64: 32, 1>}, {pipeline_mode = #tpu.pipeline_mode<synchronous>, transform_indices = @transform_13, window_bounds = array<i64: 32, 1>}, {transform_indices = @transform_14, window_bounds = array<i64: 1, 32, 256>}]} {
    %c0 = arith.constant 0 : index
    %c0_0 = arith.constant 0 : index
    %c0_1 = arith.constant 0 : index
    %0 = vector.load %arg1[%c0, %c0_0, %c0_1] : memref<1x32x256xf32, #tpu.memory_space<vmem>>, vector<1x32x256xf32>
    %1 = vector.shape_cast %0 : vector<1x32x256xf32> to vector<32x256xf32>
    %c0_2 = arith.constant 0 : index
    %c0_3 = arith.constant 0 : index
    %2 = vector.load %arg2[%c0_2, %c0_3] : memref<32x128xf32, #tpu.memory_space<vmem>>, vector<32x128xf32>
    %cst = arith.constant dense<0.000000e+00> : vector<256x128xf32>
    %3 = tpu.matmul %1, %2, %cst {dimension_numbers = #tpu.dot_dimension_numbers<[0], [0], [1], [1], [0, 1, 1, 1], [], []>} : vector<32x256xf32>, vector<32x128xf32>, vector<256x128xf32> -> vector<256x128xf32>
    %c0_4 = arith.constant 0 : index
    %c0_5 = arith.constant 0 : index
    %4 = vector.load %arg3[%c0_4, %c0_5] : memref<1x128xf32, #tpu.memory_space<vmem>>, vector<1x128xf32>
    %5 = vector.broadcast %4 : vector<1x128xf32> to vector<256x128xf32>
    %6 = arith.mulf %3, %5 : vector<256x128xf32>
    %c0_6 = arith.constant 0 : index
    %c0_7 = arith.constant 0 : index
    %7 = vector.load %arg4[%c0_6, %c0_7] : memref<1x128xf32, #tpu.memory_space<vmem>>, vector<1x128xf32>
    %8 = vector.broadcast %7 : vector<1x128xf32> to vector<256x128xf32>
    %9 = arith.addf %6, %8 : vector<256x128xf32>
    %10 = arith.negf %9 : vector<256x128xf32>
    %11 = math.exp %10 : vector<256x128xf32>
    %cst_8 = arith.constant 1.000000e+00 : f32
    %12 = vector.broadcast %cst_8 : f32 to vector<256x128xf32>
    %13 = arith.addf %12, %11 : vector<256x128xf32>
    %14 = arith.divf %12, %13 : vector<256x128xf32>
    %15 = arith.mulf %9, %14 : vector<256x128xf32>
    %16 = vector.shape_cast %15 : vector<256x128xf32> to vector<16x16x128xf32>
    %cst_9 = arith.constant 0.000000e+00 : f32
    %17 = vector.broadcast %cst_9 : f32 to vector<16x1x128xf32>
    %18 = vector.extract_strided_slice %16 {offsets = [0, 0, 0], sizes = [16, 15, 128], strides = [1, 1, 1]} : vector<16x16x128xf32> to vector<16x15x128xf32>
    %19 = tpu.concatenate %17, %18 in 1 : vector<16x1x128xf32>, vector<16x15x128xf32> -> vector<16x16x128xf32>
    %c0_10 = arith.constant 0 : index
    %c1 = arith.constant 1 : index
    %c0_11 = arith.constant 0 : index
    %c0_12 = arith.constant 0 : index
    %20 = vector.load %arg16[%c0_10, %c1, %c0_11, %c0_12] : memref<3x18x16x128xf32, #tpu.memory_space<vmem>>, vector<1x16x16x128xf32>
    %21 = vector.shape_cast %20 : vector<1x16x16x128xf32> to vector<16x16x128xf32>
    %22 = vector.shape_cast %19 : vector<16x16x128xf32> to vector<1x16x16x128xf32>
    tpu.vector_store %arg16[%c0_10, %c1, %c0_11, %c0_12], %22 {strides = array<i32>} : memref<3x18x16x128xf32, #tpu.memory_space<vmem>>, vector<1x16x16x128xf32>,
    %cst_13 = arith.constant 0.000000e+00 : f32
    %23 = vector.broadcast %cst_13 : f32 to vector<1x16x128xf32>
    %c0_14 = arith.constant 0 : index
    %c0_15 = arith.constant 0 : index
    %c0_16 = arith.constant 0 : index
    %c0_17 = arith.constant 0 : index
    %24 = vector.load %arg16[%c0_14, %c0_15, %c0_16, %c0_17] : memref<3x18x16x128xf32, #tpu.memory_space<vmem>>, vector<1x1x16x128xf32>
    %25 = vector.shape_cast %24 : vector<1x1x16x128xf32> to vector<1x16x128xf32>
    %26 = vector.shape_cast %23 : vector<1x16x128xf32> to vector<1x1x16x128xf32>
    tpu.vector_store %arg16[%c0_14, %c0_15, %c0_16, %c0_17], %26 {strides = array<i32>} : memref<3x18x16x128xf32, #tpu.memory_space<vmem>>, vector<1x1x16x128xf32>,
    %c0_18 = arith.constant 0 : index
    %c17 = arith.constant 17 : index
    %c0_19 = arith.constant 0 : index
    %c0_20 = arith.constant 0 : index
    %27 = vector.load %arg16[%c0_18, %c17, %c0_19, %c0_20] : memref<3x18x16x128xf32, #tpu.memory_space<vmem>>, vector<1x1x16x128xf32>
    %28 = vector.shape_cast %27 : vector<1x1x16x128xf32> to vector<1x16x128xf32>
    %29 = vector.shape_cast %23 : vector<1x16x128xf32> to vector<1x1x16x128xf32>
    tpu.vector_store %arg16[%c0_18, %c17, %c0_19, %c0_20], %29 {strides = array<i32>} : memref<3x18x16x128xf32, #tpu.memory_space<vmem>>, vector<1x1x16x128xf32>,
    %c1_21 = arith.constant 1 : index
    %c1_22 = arith.constant 1 : index
    %c0_23 = arith.constant 0 : index
    %c0_24 = arith.constant 0 : index
    %30 = vector.load %arg16[%c1_21, %c1_22, %c0_23, %c0_24] : memref<3x18x16x128xf32, #tpu.memory_space<vmem>>, vector<1x16x16x128xf32>
    %31 = vector.shape_cast %30 : vector<1x16x16x128xf32> to vector<16x16x128xf32>
    %32 = vector.shape_cast %16 : vector<16x16x128xf32> to vector<1x16x16x128xf32>
    tpu.vector_store %arg16[%c1_21, %c1_22, %c0_23, %c0_24], %32 {strides = array<i32>} : memref<3x18x16x128xf32, #tpu.memory_space<vmem>>, vector<1x16x16x128xf32>,
    %cst_25 = arith.constant 0.000000e+00 : f32
    %33 = vector.broadcast %cst_25 : f32 to vector<1x16x128xf32>
    %c1_26 = arith.constant 1 : index
    %c0_27 = arith.constant 0 : index
    %c0_28 = arith.constant 0 : index
    %c0_29 = arith.constant 0 : index
    %34 = vector.load %arg16[%c1_26, %c0_27, %c0_28, %c0_29] : memref<3x18x16x128xf32, #tpu.memory_space<vmem>>, vector<1x1x16x128xf32>
    %35 = vector.shape_cast %34 : vector<1x1x16x128xf32> to vector<1x16x128xf32>
    %36 = vector.shape_cast %33 : vector<1x16x128xf32> to vector<1x1x16x128xf32>
    tpu.vector_store %arg16[%c1_26, %c0_27, %c0_28, %c0_29], %36 {strides = array<i32>} : memref<3x18x16x128xf32, #tpu.memory_space<vmem>>, vector<1x1x16x128xf32>,
    %c1_30 = arith.constant 1 : index
    %c17_31 = arith.constant 17 : index
    %c0_32 = arith.constant 0 : index
    %c0_33 = arith.constant 0 : index
    %37 = vector.load %arg16[%c1_30, %c17_31, %c0_32, %c0_33] : memref<3x18x16x128xf32, #tpu.memory_space<vmem>>, vector<1x1x16x128xf32>
    %38 = vector.shape_cast %37 : vector<1x1x16x128xf32> to vector<1x16x128xf32>
    %39 = vector.shape_cast %33 : vector<1x16x128xf32> to vector<1x1x16x128xf32>
    tpu.vector_store %arg16[%c1_30, %c17_31, %c0_32, %c0_33], %39 {strides = array<i32>} : memref<3x18x16x128xf32, #tpu.memory_space<vmem>>, vector<1x1x16x128xf32>,
    %40 = vector.extract_strided_slice %16 {offsets = [0, 1, 0], sizes = [16, 15, 128], strides = [1, 1, 1]} : vector<16x16x128xf32> to vector<16x15x128xf32>
    %cst_34 = arith.constant 0.000000e+00 : f32
    %41 = vector.broadcast %cst_34 : f32 to vector<16x1x128xf32>
    %42 = tpu.concatenate %40, %41 in 1 : vector<16x15x128xf32>, vector<16x1x128xf32> -> vector<16x16x128xf32>
    %c2 = arith.constant 2 : index
    %c1_35 = arith.constant 1 : index
    %c0_36 = arith.constant 0 : index
    %c0_37 = arith.constant 0 : index
    %43 = vector.load %arg16[%c2, %c1_35, %c0_36, %c0_37] : memref<3x18x16x128xf32, #tpu.memory_space<vmem>>, vector<1x16x16x128xf32>
    %44 = vector.shape_cast %43 : vector<1x16x16x128xf32> to vector<16x16x128xf32>
    %45 = vector.shape_cast %42 : vector<16x16x128xf32> to vector<1x16x16x128xf32>
    tpu.vector_store %arg16[%c2, %c1_35, %c0_36, %c0_37], %45 {strides = array<i32>} : memref<3x18x16x128xf32, #tpu.memory_space<vmem>>, vector<1x16x16x128xf32>,
    %cst_38 = arith.constant 0.000000e+00 : f32
    %46 = vector.broadcast %cst_38 : f32 to vector<1x16x128xf32>
    %c2_39 = arith.constant 2 : index
    %c0_40 = arith.constant 0 : index
    %c0_41 = arith.constant 0 : index
    %c0_42 = arith.constant 0 : index
    %47 = vector.load %arg16[%c2_39, %c0_40, %c0_41, %c0_42] : memref<3x18x16x128xf32, #tpu.memory_space<vmem>>, vector<1x1x16x128xf32>
    %48 = vector.shape_cast %47 : vector<1x1x16x128xf32> to vector<1x16x128xf32>
    %49 = vector.shape_cast %46 : vector<1x16x128xf32> to vector<1x1x16x128xf32>
    tpu.vector_store %arg16[%c2_39, %c0_40, %c0_41, %c0_42], %49 {strides = array<i32>} : memref<3x18x16x128xf32, #tpu.memory_space<vmem>>, vector<1x1x16x128xf32>,
    %c2_43 = arith.constant 2 : index
    %c17_44 = arith.constant 17 : index
    %c0_45 = arith.constant 0 : index
    %c0_46 = arith.constant 0 : index
    %50 = vector.load %arg16[%c2_43, %c17_44, %c0_45, %c0_46] : memref<3x18x16x128xf32, #tpu.memory_space<vmem>>, vector<1x1x16x128xf32>
    %51 = vector.shape_cast %50 : vector<1x1x16x128xf32> to vector<1x16x128xf32>
    %52 = vector.shape_cast %46 : vector<1x16x128xf32> to vector<1x1x16x128xf32>
    tpu.vector_store %arg16[%c2_43, %c17_44, %c0_45, %c0_46], %52 {strides = array<i32>} : memref<3x18x16x128xf32, #tpu.memory_space<vmem>>, vector<1x1x16x128xf32>,
    %c0_47 = arith.constant 0 : index
    %c0_48 = arith.constant 0 : index
    %53 = vector.load %arg5[%c0_47, %c0_48] : memref<9x128xf32, #tpu.memory_space<vmem>>, vector<9x128xf32>
    %c0_49 = arith.constant 0 : index
    %c0_50 = arith.constant 0 : index
    %54 = vector.load %arg6[%c0_49, %c0_50] : memref<1x128xf32, #tpu.memory_space<vmem>>, vector<1x128xf32>
    %c0_51 = arith.constant 0 : index
    %c0_52 = arith.constant 0 : index
    %55 = vector.load %arg7[%c0_51, %c0_52] : memref<1x128xf32, #tpu.memory_space<vmem>>, vector<1x128xf32>
    %cst_53 = arith.constant 0.000000e+00 : f32
    %56 = vector.broadcast %cst_53 : f32 to vector<1x128xf32>
    %c0_i32 = arith.constant 0 : i32
    %c4_i32 = arith.constant 4 : i32
    %57 = arith.muli %c0_i32, %c4_i32 : i32
    %58 = tpu.assume_multiple %57, 4 : i32
    %cst_54 = arith.constant 0.000000e+00 : f32
    %59 = vector.broadcast %cst_54 : f32 to vector<4x16x128xf32>
    %c0_i32_55 = arith.constant 0 : i32
    %60 = arith.addi %58, %c0_i32_55 : i32
    %c0_56 = arith.constant 0 : index
    %61 = arith.index_cast %60 : i32 to index
    %c0_57 = arith.constant 0 : index
    %c0_58 = arith.constant 0 : index
    %62 = vector.load %arg16[%c0_56, %61, %c0_57, %c0_58] : memref<3x18x16x128xf32, #tpu.memory_space<vmem>>, vector<1x4x16x128xf32>
    %63 = vector.shape_cast %62 : vector<1x4x16x128xf32> to vector<4x16x128xf32>
    %64 = vector.extract_strided_slice %53 {offsets = [0, 0], sizes = [1, 128], strides = [1, 1]} : vector<9x128xf32> to vector<1x128xf32>
    %65 = vector.shape_cast %64 : vector<1x128xf32> to vector<1x1x128xf32>
    %66 = vector.broadcast %65 : vector<1x1x128xf32> to vector<4x16x128xf32>
    %67 = arith.mulf %63, %66 : vector<4x16x128xf32>
    %68 = arith.addf %59, %67 : vector<4x16x128xf32>
    %c0_i32_59 = arith.constant 0 : i32
    %69 = arith.addi %58, %c0_i32_59 : i32
    %c1_60 = arith.constant 1 : index
    %70 = arith.index_cast %69 : i32 to index
    %c0_61 = arith.constant 0 : index
    %c0_62 = arith.constant 0 : index
    %71 = vector.load %arg16[%c1_60, %70, %c0_61, %c0_62] : memref<3x18x16x128xf32, #tpu.memory_space<vmem>>, vector<1x4x16x128xf32>
    %72 = vector.shape_cast %71 : vector<1x4x16x128xf32> to vector<4x16x128xf32>
    %73 = vector.extract_strided_slice %53 {offsets = [1, 0], sizes = [1, 128], strides = [1, 1]} : vector<9x128xf32> to vector<1x128xf32>
    %74 = vector.shape_cast %73 : vector<1x128xf32> to vector<1x1x128xf32>
    %75 = vector.broadcast %74 : vector<1x1x128xf32> to vector<4x16x128xf32>
    %76 = arith.mulf %72, %75 : vector<4x16x128xf32>
    %77 = arith.addf %68, %76 : vector<4x16x128xf32>
    %c0_i32_63 = arith.constant 0 : i32
    %78 = arith.addi %58, %c0_i32_63 : i32
    %c2_64 = arith.constant 2 : index
    %79 = arith.index_cast %78 : i32 to index
    %c0_65 = arith.constant 0 : index
    %c0_66 = arith.constant 0 : index
    %80 = vector.load %arg16[%c2_64, %79, %c0_65, %c0_66] : memref<3x18x16x128xf32, #tpu.memory_space<vmem>>, vector<1x4x16x128xf32>
    %81 = vector.shape_cast %80 : vector<1x4x16x128xf32> to vector<4x16x128xf32>
    %82 = vector.extract_strided_slice %53 {offsets = [2, 0], sizes = [1, 128], strides = [1, 1]} : vector<9x128xf32> to vector<1x128xf32>
    %83 = vector.shape_cast %82 : vector<1x128xf32> to vector<1x1x128xf32>
    %84 = vector.broadcast %83 : vector<1x1x128xf32> to vector<4x16x128xf32>
    %85 = arith.mulf %81, %84 : vector<4x16x128xf32>
    %86 = arith.addf %77, %85 : vector<4x16x128xf32>
    %c1_i32 = arith.constant 1 : i32
    %87 = arith.addi %58, %c1_i32 : i32
    %c0_67 = arith.constant 0 : index
    %88 = arith.index_cast %87 : i32 to index
    %c0_68 = arith.constant 0 : index
    %c0_69 = arith.constant 0 : index
    %89 = vector.load %arg16[%c0_67, %88, %c0_68, %c0_69] : memref<3x18x16x128xf32, #tpu.memory_space<vmem>>, vector<1x4x16x128xf32>
    %90 = vector.shape_cast %89 : vector<1x4x16x128xf32> to vector<4x16x128xf32>
    %91 = vector.extract_strided_slice %53 {offsets = [3, 0], sizes = [1, 128], strides = [1, 1]} : vector<9x128xf32> to vector<1x128xf32>
    %92 = vector.shape_cast %91 : vector<1x128xf32> to vector<1x1x128xf32>
    %93 = vector.broadcast %92 : vector<1x1x128xf32> to vector<4x16x128xf32>
    %94 = arith.mulf %90, %93 : vector<4x16x128xf32>
    %95 = arith.addf %86, %94 : vector<4x16x128xf32>
    %c1_i32_70 = arith.constant 1 : i32
    %96 = arith.addi %58, %c1_i32_70 : i32
    %c1_71 = arith.constant 1 : index
    %97 = arith.index_cast %96 : i32 to index
    %c0_72 = arith.constant 0 : index
    %c0_73 = arith.constant 0 : index
    %98 = vector.load %arg16[%c1_71, %97, %c0_72, %c0_73] : memref<3x18x16x128xf32, #tpu.memory_space<vmem>>, vector<1x4x16x128xf32>
    %99 = vector.shape_cast %98 : vector<1x4x16x128xf32> to vector<4x16x128xf32>
    %100 = vector.extract_strided_slice %53 {offsets = [4, 0], sizes = [1, 128], strides = [1, 1]} : vector<9x128xf32> to vector<1x128xf32>
    %101 = vector.shape_cast %100 : vector<1x128xf32> to vector<1x1x128xf32>
    %102 = vector.broadcast %101 : vector<1x1x128xf32> to vector<4x16x128xf32>
    %103 = arith.mulf %99, %102 : vector<4x16x128xf32>
    %104 = arith.addf %95, %103 : vector<4x16x128xf32>
    %c1_i32_74 = arith.constant 1 : i32
    %105 = arith.addi %58, %c1_i32_74 : i32
    %c2_75 = arith.constant 2 : index
    %106 = arith.index_cast %105 : i32 to index
    %c0_76 = arith.constant 0 : index
    %c0_77 = arith.constant 0 : index
    %107 = vector.load %arg16[%c2_75, %106, %c0_76, %c0_77] : memref<3x18x16x128xf32, #tpu.memory_space<vmem>>, vector<1x4x16x128xf32>
    %108 = vector.shape_cast %107 : vector<1x4x16x128xf32> to vector<4x16x128xf32>
    %109 = vector.extract_strided_slice %53 {offsets = [5, 0], sizes = [1, 128], strides = [1, 1]} : vector<9x128xf32> to vector<1x128xf32>
    %110 = vector.shape_cast %109 : vector<1x128xf32> to vector<1x1x128xf32>
    %111 = vector.broadcast %110 : vector<1x1x128xf32> to vector<4x16x128xf32>
    %112 = arith.mulf %108, %111 : vector<4x16x128xf32>
    %113 = arith.addf %104, %112 : vector<4x16x128xf32>
    %c2_i32 = arith.constant 2 : i32
    %114 = arith.addi %58, %c2_i32 : i32
    %c0_78 = arith.constant 0 : index
    %115 = arith.index_cast %114 : i32 to index
    %c0_79 = arith.constant 0 : index
    %c0_80 = arith.constant 0 : index
    %116 = vector.load %arg16[%c0_78, %115, %c0_79, %c0_80] : memref<3x18x16x128xf32, #tpu.memory_space<vmem>>, vector<1x4x16x128xf32>
    %117 = vector.shape_cast %116 : vector<1x4x16x128xf32> to vector<4x16x128xf32>
    %118 = vector.extract_strided_slice %53 {offsets = [6, 0], sizes = [1, 128], strides = [1, 1]} : vector<9x128xf32> to vector<1x128xf32>
    %119 = vector.shape_cast %118 : vector<1x128xf32> to vector<1x1x128xf32>
    %120 = vector.broadcast %119 : vector<1x1x128xf32> to vector<4x16x128xf32>
    %121 = arith.mulf %117, %120 : vector<4x16x128xf32>
    %122 = arith.addf %113, %121 : vector<4x16x128xf32>
    %c2_i32_81 = arith.constant 2 : i32
    %123 = arith.addi %58, %c2_i32_81 : i32
    %c1_82 = arith.constant 1 : index
    %124 = arith.index_cast %123 : i32 to index
    %c0_83 = arith.constant 0 : index
    %c0_84 = arith.constant 0 : index
    %125 = vector.load %arg16[%c1_82, %124, %c0_83, %c0_84] : memref<3x18x16x128xf32, #tpu.memory_space<vmem>>, vector<1x4x16x128xf32>
    %126 = vector.shape_cast %125 : vector<1x4x16x128xf32> to vector<4x16x128xf32>
    %127 = vector.extract_strided_slice %53 {offsets = [7, 0], sizes = [1, 128], strides = [1, 1]} : vector<9x128xf32> to vector<1x128xf32>
    %128 = vector.shape_cast %127 : vector<1x128xf32> to vector<1x1x128xf32>
    %129 = vector.broadcast %128 : vector<1x1x128xf32> to vector<4x16x128xf32>
    %130 = arith.mulf %126, %129 : vector<4x16x128xf32>
    %131 = arith.addf %122, %130 : vector<4x16x128xf32>
    %c2_i32_85 = arith.constant 2 : i32
    %132 = arith.addi %58, %c2_i32_85 : i32
    %c2_86 = arith.constant 2 : index
    %133 = arith.index_cast %132 : i32 to index
    %c0_87 = arith.constant 0 : index
    %c0_88 = arith.constant 0 : index
    %134 = vector.load %arg16[%c2_86, %133, %c0_87, %c0_88] : memref<3x18x16x128xf32, #tpu.memory_space<vmem>>, vector<1x4x16x128xf32>
    %135 = vector.shape_cast %134 : vector<1x4x16x128xf32> to vector<4x16x128xf32>
    %136 = vector.extract_strided_slice %53 {offsets = [8, 0], sizes = [1, 128], strides = [1, 1]} : vector<9x128xf32> to vector<1x128xf32>
    %137 = vector.shape_cast %136 : vector<1x128xf32> to vector<1x1x128xf32>
    %138 = vector.broadcast %137 : vector<1x1x128xf32> to vector<4x16x128xf32>
    %139 = arith.mulf %135, %138 : vector<4x16x128xf32>
    %140 = arith.addf %131, %139 : vector<4x16x128xf32>
    %141 = vector.shape_cast %54 : vector<1x128xf32> to vector<1x1x128xf32>
    %142 = vector.broadcast %141 : vector<1x1x128xf32> to vector<4x16x128xf32>
    %143 = arith.mulf %140, %142 : vector<4x16x128xf32>
    %144 = vector.shape_cast %55 : vector<1x128xf32> to vector<1x1x128xf32>
    %145 = vector.broadcast %144 : vector<1x1x128xf32> to vector<4x16x128xf32>
    %146 = arith.addf %143, %145 : vector<4x16x128xf32>
    %147 = arith.negf %146 : vector<4x16x128xf32>
    %148 = math.exp %147 : vector<4x16x128xf32>
    %cst_89 = arith.constant 1.000000e+00 : f32
    %149 = vector.broadcast %cst_89 : f32 to vector<4x16x128xf32>
    %150 = arith.addf %149, %148 : vector<4x16x128xf32>
    %151 = arith.divf %149, %150 : vector<4x16x128xf32>
    %152 = arith.mulf %146, %151 : vector<4x16x128xf32>
    %153 = vector.shape_cast %152 : vector<4x16x128xf32> to vector<64x128xf32>
    %c64_i32 = arith.constant 64 : i32
    %154 = arith.muli %c0_i32, %c64_i32 : i32
    %155 = tpu.assume_multiple %154, 64 : i32
    %156 = arith.index_cast %155 : i32 to index
    %c0_90 = arith.constant 0 : index
    %157 = vector.load %arg17[%156, %c0_90] : memref<256x128xf32, #tpu.memory_space<vmem>>, vector<64x128xf32>
    tpu.vector_store %arg17[%156, %c0_90], %153 {strides = array<i32>} : memref<256x128xf32, #tpu.memory_space<vmem>>, vector<64x128xf32>,
    %cst_91 = arith.constant dense<0.000000e+00> : vector<128xf32>
    %158 = vector.multi_reduction <add>, %153, %cst_91 [0] : vector<64x128xf32> to vector<128xf32>
    %159 = vector.shape_cast %158 : vector<128xf32> to vector<1x128xf32>
    %160 = arith.addf %56, %159 : vector<1x128xf32>
    %c1_i32_92 = arith.constant 1 : i32
    %c4_i32_93 = arith.constant 4 : i32
    %161 = arith.muli %c1_i32_92, %c4_i32_93 : i32
    %162 = tpu.assume_multiple %161, 4 : i32
    %cst_94 = arith.constant 0.000000e+00 : f32
    %163 = vector.broadcast %cst_94 : f32 to vector<4x16x128xf32>
    %c0_i32_95 = arith.constant 0 : i32
    %164 = arith.addi %162, %c0_i32_95 : i32
    %c0_96 = arith.constant 0 : index
    %165 = arith.index_cast %164 : i32 to index
    %c0_97 = arith.constant 0 : index
    %c0_98 = arith.constant 0 : index
    %166 = vector.load %arg16[%c0_96, %165, %c0_97, %c0_98] : memref<3x18x16x128xf32, #tpu.memory_space<vmem>>, vector<1x4x16x128xf32>
    %167 = vector.shape_cast %166 : vector<1x4x16x128xf32> to vector<4x16x128xf32>
    %168 = vector.extract_strided_slice %53 {offsets = [0, 0], sizes = [1, 128], strides = [1, 1]} : vector<9x128xf32> to vector<1x128xf32>
    %169 = vector.shape_cast %168 : vector<1x128xf32> to vector<1x1x128xf32>
    %170 = vector.broadcast %169 : vector<1x1x128xf32> to vector<4x16x128xf32>
    %171 = arith.mulf %167, %170 : vector<4x16x128xf32>
    %172 = arith.addf %163, %171 : vector<4x16x128xf32>
    %c0_i32_99 = arith.constant 0 : i32
    %173 = arith.addi %162, %c0_i32_99 : i32
    %c1_100 = arith.constant 1 : index
    %174 = arith.index_cast %173 : i32 to index
    %c0_101 = arith.constant 0 : index
    %c0_102 = arith.constant 0 : index
    %175 = vector.load %arg16[%c1_100, %174, %c0_101, %c0_102] : memref<3x18x16x128xf32, #tpu.memory_space<vmem>>, vector<1x4x16x128xf32>
    %176 = vector.shape_cast %175 : vector<1x4x16x128xf32> to vector<4x16x128xf32>
    %177 = vector.extract_strided_slice %53 {offsets = [1, 0], sizes = [1, 128], strides = [1, 1]} : vector<9x128xf32> to vector<1x128xf32>
    %178 = vector.shape_cast %177 : vector<1x128xf32> to vector<1x1x128xf32>
    %179 = vector.broadcast %178 : vector<1x1x128xf32> to vector<4x16x128xf32>
    %180 = arith.mulf %176, %179 : vector<4x16x128xf32>
    %181 = arith.addf %172, %180 : vector<4x16x128xf32>
    %c0_i32_103 = arith.constant 0 : i32
    %182 = arith.addi %162, %c0_i32_103 : i32
    %c2_104 = arith.constant 2 : index
    %183 = arith.index_cast %182 : i32 to index
    %c0_105 = arith.constant 0 : index
    %c0_106 = arith.constant 0 : index
    %184 = vector.load %arg16[%c2_104, %183, %c0_105, %c0_106] : memref<3x18x16x128xf32, #tpu.memory_space<vmem>>, vector<1x4x16x128xf32>
    %185 = vector.shape_cast %184 : vector<1x4x16x128xf32> to vector<4x16x128xf32>
    %186 = vector.extract_strided_slice %53 {offsets = [2, 0], sizes = [1, 128], strides = [1, 1]} : vector<9x128xf32> to vector<1x128xf32>
    %187 = vector.shape_cast %186 : vector<1x128xf32> to vector<1x1x128xf32>
    %188 = vector.broadcast %187 : vector<1x1x128xf32> to vector<4x16x128xf32>
    %189 = arith.mulf %185, %188 : vector<4x16x128xf32>
    %190 = arith.addf %181, %189 : vector<4x16x128xf32>
    %c1_i32_107 = arith.constant 1 : i32
    %191 = arith.addi %162, %c1_i32_107 : i32
    %c0_108 = arith.constant 0 : index
    %192 = arith.index_cast %191 : i32 to index
    %c0_109 = arith.constant 0 : index
    %c0_110 = arith.constant 0 : index
    %193 = vector.load %arg16[%c0_108, %192, %c0_109, %c0_110] : memref<3x18x16x128xf32, #tpu.memory_space<vmem>>, vector<1x4x16x128xf32>
    %194 = vector.shape_cast %193 : vector<1x4x16x128xf32> to vector<4x16x128xf32>
    %195 = vector.extract_strided_slice %53 {offsets = [3, 0], sizes = [1, 128], strides = [1, 1]} : vector<9x128xf32> to vector<1x128xf32>
    %196 = vector.shape_cast %195 : vector<1x128xf32> to vector<1x1x128xf32>
    %197 = vector.broadcast %196 : vector<1x1x128xf32> to vector<4x16x128xf32>
    %198 = arith.mulf %194, %197 : vector<4x16x128xf32>
    %199 = arith.addf %190, %198 : vector<4x16x128xf32>
    %c1_i32_111 = arith.constant 1 : i32
    %200 = arith.addi %162, %c1_i32_111 : i32
    %c1_112 = arith.constant 1 : index
    %201 = arith.index_cast %200 : i32 to index
    %c0_113 = arith.constant 0 : index
    %c0_114 = arith.constant 0 : index
    %202 = vector.load %arg16[%c1_112, %201, %c0_113, %c0_114] : memref<3x18x16x128xf32, #tpu.memory_space<vmem>>, vector<1x4x16x128xf32>
    %203 = vector.shape_cast %202 : vector<1x4x16x128xf32> to vector<4x16x128xf32>
    %204 = vector.extract_strided_slice %53 {offsets = [4, 0], sizes = [1, 128], strides = [1, 1]} : vector<9x128xf32> to vector<1x128xf32>
    %205 = vector.shape_cast %204 : vector<1x128xf32> to vector<1x1x128xf32>
    %206 = vector.broadcast %205 : vector<1x1x128xf32> to vector<4x16x128xf32>
    %207 = arith.mulf %203, %206 : vector<4x16x128xf32>
    %208 = arith.addf %199, %207 : vector<4x16x128xf32>
    %c1_i32_115 = arith.constant 1 : i32
    %209 = arith.addi %162, %c1_i32_115 : i32
    %c2_116 = arith.constant 2 : index
    %210 = arith.index_cast %209 : i32 to index
    %c0_117 = arith.constant 0 : index
    %c0_118 = arith.constant 0 : index
    %211 = vector.load %arg16[%c2_116, %210, %c0_117, %c0_118] : memref<3x18x16x128xf32, #tpu.memory_space<vmem>>, vector<1x4x16x128xf32>
    %212 = vector.shape_cast %211 : vector<1x4x16x128xf32> to vector<4x16x128xf32>
    %213 = vector.extract_strided_slice %53 {offsets = [5, 0], sizes = [1, 128], strides = [1, 1]} : vector<9x128xf32> to vector<1x128xf32>
    %214 = vector.shape_cast %213 : vector<1x128xf32> to vector<1x1x128xf32>
    %215 = vector.broadcast %214 : vector<1x1x128xf32> to vector<4x16x128xf32>
    %216 = arith.mulf %212, %215 : vector<4x16x128xf32>
    %217 = arith.addf %208, %216 : vector<4x16x128xf32>
    %c2_i32_119 = arith.constant 2 : i32
    %218 = arith.addi %162, %c2_i32_119 : i32
    %c0_120 = arith.constant 0 : index
    %219 = arith.index_cast %218 : i32 to index
    %c0_121 = arith.constant 0 : index
    %c0_122 = arith.constant 0 : index
    %220 = vector.load %arg16[%c0_120, %219, %c0_121, %c0_122] : memref<3x18x16x128xf32, #tpu.memory_space<vmem>>, vector<1x4x16x128xf32>
    %221 = vector.shape_cast %220 : vector<1x4x16x128xf32> to vector<4x16x128xf32>
    %222 = vector.extract_strided_slice %53 {offsets = [6, 0], sizes = [1, 128], strides = [1, 1]} : vector<9x128xf32> to vector<1x128xf32>
    %223 = vector.shape_cast %222 : vector<1x128xf32> to vector<1x1x128xf32>
    %224 = vector.broadcast %223 : vector<1x1x128xf32> to vector<4x16x128xf32>
    %225 = arith.mulf %221, %224 : vector<4x16x128xf32>
    %226 = arith.addf %217, %225 : vector<4x16x128xf32>
    %c2_i32_123 = arith.constant 2 : i32
    %227 = arith.addi %162, %c2_i32_123 : i32
    %c1_124 = arith.constant 1 : index
    %228 = arith.index_cast %227 : i32 to index
    %c0_125 = arith.constant 0 : index
    %c0_126 = arith.constant 0 : index
    %229 = vector.load %arg16[%c1_124, %228, %c0_125, %c0_126] : memref<3x18x16x128xf32, #tpu.memory_space<vmem>>, vector<1x4x16x128xf32>
    %230 = vector.shape_cast %229 : vector<1x4x16x128xf32> to vector<4x16x128xf32>
    %231 = vector.extract_strided_slice %53 {offsets = [7, 0], sizes = [1, 128], strides = [1, 1]} : vector<9x128xf32> to vector<1x128xf32>
    %232 = vector.shape_cast %231 : vector<1x128xf32> to vector<1x1x128xf32>
    %233 = vector.broadcast %232 : vector<1x1x128xf32> to vector<4x16x128xf32>
    %234 = arith.mulf %230, %233 : vector<4x16x128xf32>
    %235 = arith.addf %226, %234 : vector<4x16x128xf32>
    %c2_i32_127 = arith.constant 2 : i32
    %236 = arith.addi %162, %c2_i32_127 : i32
    %c2_128 = arith.constant 2 : index
    %237 = arith.index_cast %236 : i32 to index
    %c0_129 = arith.constant 0 : index
    %c0_130 = arith.constant 0 : index
    %238 = vector.load %arg16[%c2_128, %237, %c0_129, %c0_130] : memref<3x18x16x128xf32, #tpu.memory_space<vmem>>, vector<1x4x16x128xf32>
    %239 = vector.shape_cast %238 : vector<1x4x16x128xf32> to vector<4x16x128xf32>
    %240 = vector.extract_strided_slice %53 {offsets = [8, 0], sizes = [1, 128], strides = [1, 1]} : vector<9x128xf32> to vector<1x128xf32>
    %241 = vector.shape_cast %240 : vector<1x128xf32> to vector<1x1x128xf32>
    %242 = vector.broadcast %241 : vector<1x1x128xf32> to vector<4x16x128xf32>
    %243 = arith.mulf %239, %242 : vector<4x16x128xf32>
    %244 = arith.addf %235, %243 : vector<4x16x128xf32>
    %245 = vector.shape_cast %54 : vector<1x128xf32> to vector<1x1x128xf32>
    %246 = vector.broadcast %245 : vector<1x1x128xf32> to vector<4x16x128xf32>
    %247 = arith.mulf %244, %246 : vector<4x16x128xf32>
    %248 = vector.shape_cast %55 : vector<1x128xf32> to vector<1x1x128xf32>
    %249 = vector.broadcast %248 : vector<1x1x128xf32> to vector<4x16x128xf32>
    %250 = arith.addf %247, %249 : vector<4x16x128xf32>
    %251 = arith.negf %250 : vector<4x16x128xf32>
    %252 = math.exp %251 : vector<4x16x128xf32>
    %cst_131 = arith.constant 1.000000e+00 : f32
    %253 = vector.broadcast %cst_131 : f32 to vector<4x16x128xf32>
    %254 = arith.addf %253, %252 : vector<4x16x128xf32>
    %255 = arith.divf %253, %254 : vector<4x16x128xf32>
    %256 = arith.mulf %250, %255 : vector<4x16x128xf32>
    %257 = vector.shape_cast %256 : vector<4x16x128xf32> to vector<64x128xf32>
    %c64_i32_132 = arith.constant 64 : i32
    %258 = arith.muli %c1_i32_92, %c64_i32_132 : i32
    %259 = tpu.assume_multiple %258, 64 : i32
    %260 = arith.index_cast %259 : i32 to index
    %c0_133 = arith.constant 0 : index
    %261 = vector.load %arg17[%260, %c0_133] : memref<256x128xf32, #tpu.memory_space<vmem>>, vector<64x128xf32>
    tpu.vector_store %arg17[%260, %c0_133], %257 {strides = array<i32>} : memref<256x128xf32, #tpu.memory_space<vmem>>, vector<64x128xf32>,
    %cst_134 = arith.constant dense<0.000000e+00> : vector<128xf32>
    %262 = vector.multi_reduction <add>, %257, %cst_134 [0] : vector<64x128xf32> to vector<128xf32>
    %263 = vector.shape_cast %262 : vector<128xf32> to vector<1x128xf32>
    %264 = arith.addf %160, %263 : vector<1x128xf32>
    %c2_i32_135 = arith.constant 2 : i32
    %c4_i32_136 = arith.constant 4 : i32
    %265 = arith.muli %c2_i32_135, %c4_i32_136 : i32
    %266 = tpu.assume_multiple %265, 4 : i32
    %cst_137 = arith.constant 0.000000e+00 : f32
    %267 = vector.broadcast %cst_137 : f32 to vector<4x16x128xf32>
    %c0_i32_138 = arith.constant 0 : i32
    %268 = arith.addi %266, %c0_i32_138 : i32
    %c0_139 = arith.constant 0 : index
    %269 = arith.index_cast %268 : i32 to index
    %c0_140 = arith.constant 0 : index
    %c0_141 = arith.constant 0 : index
    %270 = vector.load %arg16[%c0_139, %269, %c0_140, %c0_141] : memref<3x18x16x128xf32, #tpu.memory_space<vmem>>, vector<1x4x16x128xf32>
    %271 = vector.shape_cast %270 : vector<1x4x16x128xf32> to vector<4x16x128xf32>
    %272 = vector.extract_strided_slice %53 {offsets = [0, 0], sizes = [1, 128], strides = [1, 1]} : vector<9x128xf32> to vector<1x128xf32>
    %273 = vector.shape_cast %272 : vector<1x128xf32> to vector<1x1x128xf32>
    %274 = vector.broadcast %273 : vector<1x1x128xf32> to vector<4x16x128xf32>
    %275 = arith.mulf %271, %274 : vector<4x16x128xf32>
    %276 = arith.addf %267, %275 : vector<4x16x128xf32>
    %c0_i32_142 = arith.constant 0 : i32
    %277 = arith.addi %266, %c0_i32_142 : i32
    %c1_143 = arith.constant 1 : index
    %278 = arith.index_cast %277 : i32 to index
    %c0_144 = arith.constant 0 : index
    %c0_145 = arith.constant 0 : index
    %279 = vector.load %arg16[%c1_143, %278, %c0_144, %c0_145] : memref<3x18x16x128xf32, #tpu.memory_space<vmem>>, vector<1x4x16x128xf32>
    %280 = vector.shape_cast %279 : vector<1x4x16x128xf32> to vector<4x16x128xf32>
    %281 = vector.extract_strided_slice %53 {offsets = [1, 0], sizes = [1, 128], strides = [1, 1]} : vector<9x128xf32> to vector<1x128xf32>
    %282 = vector.shape_cast %281 : vector<1x128xf32> to vector<1x1x128xf32>
    %283 = vector.broadcast %282 : vector<1x1x128xf32> to vector<4x16x128xf32>
    %284 = arith.mulf %280, %283 : vector<4x16x128xf32>
    %285 = arith.addf %276, %284 : vector<4x16x128xf32>
    %c0_i32_146 = arith.constant 0 : i32
    %286 = arith.addi %266, %c0_i32_146 : i32
    %c2_147 = arith.constant 2 : index
    %287 = arith.index_cast %286 : i32 to index
    %c0_148 = arith.constant 0 : index
    %c0_149 = arith.constant 0 : index
    %288 = vector.load %arg16[%c2_147, %287, %c0_148, %c0_149] : memref<3x18x16x128xf32, #tpu.memory_space<vmem>>, vector<1x4x16x128xf32>
    %289 = vector.shape_cast %288 : vector<1x4x16x128xf32> to vector<4x16x128xf32>
    %290 = vector.extract_strided_slice %53 {offsets = [2, 0], sizes = [1, 128], strides = [1, 1]} : vector<9x128xf32> to vector<1x128xf32>
    %291 = vector.shape_cast %290 : vector<1x128xf32> to vector<1x1x128xf32>
    %292 = vector.broadcast %291 : vector<1x1x128xf32> to vector<4x16x128xf32>
    %293 = arith.mulf %289, %292 : vector<4x16x128xf32>
    %294 = arith.addf %285, %293 : vector<4x16x128xf32>
    %c1_i32_150 = arith.constant 1 : i32
    %295 = arith.addi %266, %c1_i32_150 : i32
    %c0_151 = arith.constant 0 : index
    %296 = arith.index_cast %295 : i32 to index
    %c0_152 = arith.constant 0 : index
    %c0_153 = arith.constant 0 : index
    %297 = vector.load %arg16[%c0_151, %296, %c0_152, %c0_153] : memref<3x18x16x128xf32, #tpu.memory_space<vmem>>, vector<1x4x16x128xf32>
    %298 = vector.shape_cast %297 : vector<1x4x16x128xf32> to vector<4x16x128xf32>
    %299 = vector.extract_strided_slice %53 {offsets = [3, 0], sizes = [1, 128], strides = [1, 1]} : vector<9x128xf32> to vector<1x128xf32>
    %300 = vector.shape_cast %299 : vector<1x128xf32> to vector<1x1x128xf32>
    %301 = vector.broadcast %300 : vector<1x1x128xf32> to vector<4x16x128xf32>
    %302 = arith.mulf %298, %301 : vector<4x16x128xf32>
    %303 = arith.addf %294, %302 : vector<4x16x128xf32>
    %c1_i32_154 = arith.constant 1 : i32
    %304 = arith.addi %266, %c1_i32_154 : i32
    %c1_155 = arith.constant 1 : index
    %305 = arith.index_cast %304 : i32 to index
    %c0_156 = arith.constant 0 : index
    %c0_157 = arith.constant 0 : index
    %306 = vector.load %arg16[%c1_155, %305, %c0_156, %c0_157] : memref<3x18x16x128xf32, #tpu.memory_space<vmem>>, vector<1x4x16x128xf32>
    %307 = vector.shape_cast %306 : vector<1x4x16x128xf32> to vector<4x16x128xf32>
    %308 = vector.extract_strided_slice %53 {offsets = [4, 0], sizes = [1, 128], strides = [1, 1]} : vector<9x128xf32> to vector<1x128xf32>
    %309 = vector.shape_cast %308 : vector<1x128xf32> to vector<1x1x128xf32>
    %310 = vector.broadcast %309 : vector<1x1x128xf32> to vector<4x16x128xf32>
    %311 = arith.mulf %307, %310 : vector<4x16x128xf32>
    %312 = arith.addf %303, %311 : vector<4x16x128xf32>
    %c1_i32_158 = arith.constant 1 : i32
    %313 = arith.addi %266, %c1_i32_158 : i32
    %c2_159 = arith.constant 2 : index
    %314 = arith.index_cast %313 : i32 to index
    %c0_160 = arith.constant 0 : index
    %c0_161 = arith.constant 0 : index
    %315 = vector.load %arg16[%c2_159, %314, %c0_160, %c0_161] : memref<3x18x16x128xf32, #tpu.memory_space<vmem>>, vector<1x4x16x128xf32>
    %316 = vector.shape_cast %315 : vector<1x4x16x128xf32> to vector<4x16x128xf32>
    %317 = vector.extract_strided_slice %53 {offsets = [5, 0], sizes = [1, 128], strides = [1, 1]} : vector<9x128xf32> to vector<1x128xf32>
    %318 = vector.shape_cast %317 : vector<1x128xf32> to vector<1x1x128xf32>
    %319 = vector.broadcast %318 : vector<1x1x128xf32> to vector<4x16x128xf32>
    %320 = arith.mulf %316, %319 : vector<4x16x128xf32>
    %321 = arith.addf %312, %320 : vector<4x16x128xf32>
    %c2_i32_162 = arith.constant 2 : i32
    %322 = arith.addi %266, %c2_i32_162 : i32
    %c0_163 = arith.constant 0 : index
    %323 = arith.index_cast %322 : i32 to index
    %c0_164 = arith.constant 0 : index
    %c0_165 = arith.constant 0 : index
    %324 = vector.load %arg16[%c0_163, %323, %c0_164, %c0_165] : memref<3x18x16x128xf32, #tpu.memory_space<vmem>>, vector<1x4x16x128xf32>
    %325 = vector.shape_cast %324 : vector<1x4x16x128xf32> to vector<4x16x128xf32>
    %326 = vector.extract_strided_slice %53 {offsets = [6, 0], sizes = [1, 128], strides = [1, 1]} : vector<9x128xf32> to vector<1x128xf32>
    %327 = vector.shape_cast %326 : vector<1x128xf32> to vector<1x1x128xf32>
    %328 = vector.broadcast %327 : vector<1x1x128xf32> to vector<4x16x128xf32>
    %329 = arith.mulf %325, %328 : vector<4x16x128xf32>
    %330 = arith.addf %321, %329 : vector<4x16x128xf32>
    %c2_i32_166 = arith.constant 2 : i32
    %331 = arith.addi %266, %c2_i32_166 : i32
    %c1_167 = arith.constant 1 : index
    %332 = arith.index_cast %331 : i32 to index
    %c0_168 = arith.constant 0 : index
    %c0_169 = arith.constant 0 : index
    %333 = vector.load %arg16[%c1_167, %332, %c0_168, %c0_169] : memref<3x18x16x128xf32, #tpu.memory_space<vmem>>, vector<1x4x16x128xf32>
    %334 = vector.shape_cast %333 : vector<1x4x16x128xf32> to vector<4x16x128xf32>
    %335 = vector.extract_strided_slice %53 {offsets = [7, 0], sizes = [1, 128], strides = [1, 1]} : vector<9x128xf32> to vector<1x128xf32>
    %336 = vector.shape_cast %335 : vector<1x128xf32> to vector<1x1x128xf32>
    %337 = vector.broadcast %336 : vector<1x1x128xf32> to vector<4x16x128xf32>
    %338 = arith.mulf %334, %337 : vector<4x16x128xf32>
    %339 = arith.addf %330, %338 : vector<4x16x128xf32>
    %c2_i32_170 = arith.constant 2 : i32
    %340 = arith.addi %266, %c2_i32_170 : i32
    %c2_171 = arith.constant 2 : index
    %341 = arith.index_cast %340 : i32 to index
    %c0_172 = arith.constant 0 : index
    %c0_173 = arith.constant 0 : index
    %342 = vector.load %arg16[%c2_171, %341, %c0_172, %c0_173] : memref<3x18x16x128xf32, #tpu.memory_space<vmem>>, vector<1x4x16x128xf32>
    %343 = vector.shape_cast %342 : vector<1x4x16x128xf32> to vector<4x16x128xf32>
    %344 = vector.extract_strided_slice %53 {offsets = [8, 0], sizes = [1, 128], strides = [1, 1]} : vector<9x128xf32> to vector<1x128xf32>
    %345 = vector.shape_cast %344 : vector<1x128xf32> to vector<1x1x128xf32>
    %346 = vector.broadcast %345 : vector<1x1x128xf32> to vector<4x16x128xf32>
    %347 = arith.mulf %343, %346 : vector<4x16x128xf32>
    %348 = arith.addf %339, %347 : vector<4x16x128xf32>
    %349 = vector.shape_cast %54 : vector<1x128xf32> to vector<1x1x128xf32>
    %350 = vector.broadcast %349 : vector<1x1x128xf32> to vector<4x16x128xf32>
    %351 = arith.mulf %348, %350 : vector<4x16x128xf32>
    %352 = vector.shape_cast %55 : vector<1x128xf32> to vector<1x1x128xf32>
    %353 = vector.broadcast %352 : vector<1x1x128xf32> to vector<4x16x128xf32>
    %354 = arith.addf %351, %353 : vector<4x16x128xf32>
    %355 = arith.negf %354 : vector<4x16x128xf32>
    %356 = math.exp %355 : vector<4x16x128xf32>
    %cst_174 = arith.constant 1.000000e+00 : f32
    %357 = vector.broadcast %cst_174 : f32 to vector<4x16x128xf32>
    %358 = arith.addf %357, %356 : vector<4x16x128xf32>
    %359 = arith.divf %357, %358 : vector<4x16x128xf32>
    %360 = arith.mulf %354, %359 : vector<4x16x128xf32>
    %361 = vector.shape_cast %360 : vector<4x16x128xf32> to vector<64x128xf32>
    %c64_i32_175 = arith.constant 64 : i32
    %362 = arith.muli %c2_i32_135, %c64_i32_175 : i32
    %363 = tpu.assume_multiple %362, 64 : i32
    %364 = arith.index_cast %363 : i32 to index
    %c0_176 = arith.constant 0 : index
    %365 = vector.load %arg17[%364, %c0_176] : memref<256x128xf32, #tpu.memory_space<vmem>>, vector<64x128xf32>
    tpu.vector_store %arg17[%364, %c0_176], %361 {strides = array<i32>} : memref<256x128xf32, #tpu.memory_space<vmem>>, vector<64x128xf32>,
    %cst_177 = arith.constant dense<0.000000e+00> : vector<128xf32>
    %366 = vector.multi_reduction <add>, %361, %cst_177 [0] : vector<64x128xf32> to vector<128xf32>
    %367 = vector.shape_cast %366 : vector<128xf32> to vector<1x128xf32>
    %368 = arith.addf %264, %367 : vector<1x128xf32>
    %c3_i32 = arith.constant 3 : i32
    %c4_i32_178 = arith.constant 4 : i32
    %369 = arith.muli %c3_i32, %c4_i32_178 : i32
    %370 = tpu.assume_multiple %369, 4 : i32
    %cst_179 = arith.constant 0.000000e+00 : f32
    %371 = vector.broadcast %cst_179 : f32 to vector<4x16x128xf32>
    %c0_i32_180 = arith.constant 0 : i32
    %372 = arith.addi %370, %c0_i32_180 : i32
    %c0_181 = arith.constant 0 : index
    %373 = arith.index_cast %372 : i32 to index
    %c0_182 = arith.constant 0 : index
    %c0_183 = arith.constant 0 : index
    %374 = vector.load %arg16[%c0_181, %373, %c0_182, %c0_183] : memref<3x18x16x128xf32, #tpu.memory_space<vmem>>, vector<1x4x16x128xf32>
    %375 = vector.shape_cast %374 : vector<1x4x16x128xf32> to vector<4x16x128xf32>
    %376 = vector.extract_strided_slice %53 {offsets = [0, 0], sizes = [1, 128], strides = [1, 1]} : vector<9x128xf32> to vector<1x128xf32>
    %377 = vector.shape_cast %376 : vector<1x128xf32> to vector<1x1x128xf32>
    %378 = vector.broadcast %377 : vector<1x1x128xf32> to vector<4x16x128xf32>
    %379 = arith.mulf %375, %378 : vector<4x16x128xf32>
    %380 = arith.addf %371, %379 : vector<4x16x128xf32>
    %c0_i32_184 = arith.constant 0 : i32
    %381 = arith.addi %370, %c0_i32_184 : i32
    %c1_185 = arith.constant 1 : index
    %382 = arith.index_cast %381 : i32 to index
    %c0_186 = arith.constant 0 : index
    %c0_187 = arith.constant 0 : index
    %383 = vector.load %arg16[%c1_185, %382, %c0_186, %c0_187] : memref<3x18x16x128xf32, #tpu.memory_space<vmem>>, vector<1x4x16x128xf32>
    %384 = vector.shape_cast %383 : vector<1x4x16x128xf32> to vector<4x16x128xf32>
    %385 = vector.extract_strided_slice %53 {offsets = [1, 0], sizes = [1, 128], strides = [1, 1]} : vector<9x128xf32> to vector<1x128xf32>
    %386 = vector.shape_cast %385 : vector<1x128xf32> to vector<1x1x128xf32>
    %387 = vector.broadcast %386 : vector<1x1x128xf32> to vector<4x16x128xf32>
    %388 = arith.mulf %384, %387 : vector<4x16x128xf32>
    %389 = arith.addf %380, %388 : vector<4x16x128xf32>
    %c0_i32_188 = arith.constant 0 : i32
    %390 = arith.addi %370, %c0_i32_188 : i32
    %c2_189 = arith.constant 2 : index
    %391 = arith.index_cast %390 : i32 to index
    %c0_190 = arith.constant 0 : index
    %c0_191 = arith.constant 0 : index
    %392 = vector.load %arg16[%c2_189, %391, %c0_190, %c0_191] : memref<3x18x16x128xf32, #tpu.memory_space<vmem>>, vector<1x4x16x128xf32>
    %393 = vector.shape_cast %392 : vector<1x4x16x128xf32> to vector<4x16x128xf32>
    %394 = vector.extract_strided_slice %53 {offsets = [2, 0], sizes = [1, 128], strides = [1, 1]} : vector<9x128xf32> to vector<1x128xf32>
    %395 = vector.shape_cast %394 : vector<1x128xf32> to vector<1x1x128xf32>
    %396 = vector.broadcast %395 : vector<1x1x128xf32> to vector<4x16x128xf32>
    %397 = arith.mulf %393, %396 : vector<4x16x128xf32>
    %398 = arith.addf %389, %397 : vector<4x16x128xf32>
    %c1_i32_192 = arith.constant 1 : i32
    %399 = arith.addi %370, %c1_i32_192 : i32
    %c0_193 = arith.constant 0 : index
    %400 = arith.index_cast %399 : i32 to index
    %c0_194 = arith.constant 0 : index
    %c0_195 = arith.constant 0 : index
    %401 = vector.load %arg16[%c0_193, %400, %c0_194, %c0_195] : memref<3x18x16x128xf32, #tpu.memory_space<vmem>>, vector<1x4x16x128xf32>
    %402 = vector.shape_cast %401 : vector<1x4x16x128xf32> to vector<4x16x128xf32>
    %403 = vector.extract_strided_slice %53 {offsets = [3, 0], sizes = [1, 128], strides = [1, 1]} : vector<9x128xf32> to vector<1x128xf32>
    %404 = vector.shape_cast %403 : vector<1x128xf32> to vector<1x1x128xf32>
    %405 = vector.broadcast %404 : vector<1x1x128xf32> to vector<4x16x128xf32>
    %406 = arith.mulf %402, %405 : vector<4x16x128xf32>
    %407 = arith.addf %398, %406 : vector<4x16x128xf32>
    %c1_i32_196 = arith.constant 1 : i32
    %408 = arith.addi %370, %c1_i32_196 : i32
    %c1_197 = arith.constant 1 : index
    %409 = arith.index_cast %408 : i32 to index
    %c0_198 = arith.constant 0 : index
    %c0_199 = arith.constant 0 : index
    %410 = vector.load %arg16[%c1_197, %409, %c0_198, %c0_199] : memref<3x18x16x128xf32, #tpu.memory_space<vmem>>, vector<1x4x16x128xf32>
    %411 = vector.shape_cast %410 : vector<1x4x16x128xf32> to vector<4x16x128xf32>
    %412 = vector.extract_strided_slice %53 {offsets = [4, 0], sizes = [1, 128], strides = [1, 1]} : vector<9x128xf32> to vector<1x128xf32>
    %413 = vector.shape_cast %412 : vector<1x128xf32> to vector<1x1x128xf32>
    %414 = vector.broadcast %413 : vector<1x1x128xf32> to vector<4x16x128xf32>
    %415 = arith.mulf %411, %414 : vector<4x16x128xf32>
    %416 = arith.addf %407, %415 : vector<4x16x128xf32>
    %c1_i32_200 = arith.constant 1 : i32
    %417 = arith.addi %370, %c1_i32_200 : i32
    %c2_201 = arith.constant 2 : index
    %418 = arith.index_cast %417 : i32 to index
    %c0_202 = arith.constant 0 : index
    %c0_203 = arith.constant 0 : index
    %419 = vector.load %arg16[%c2_201, %418, %c0_202, %c0_203] : memref<3x18x16x128xf32, #tpu.memory_space<vmem>>, vector<1x4x16x128xf32>
    %420 = vector.shape_cast %419 : vector<1x4x16x128xf32> to vector<4x16x128xf32>
    %421 = vector.extract_strided_slice %53 {offsets = [5, 0], sizes = [1, 128], strides = [1, 1]} : vector<9x128xf32> to vector<1x128xf32>
    %422 = vector.shape_cast %421 : vector<1x128xf32> to vector<1x1x128xf32>
    %423 = vector.broadcast %422 : vector<1x1x128xf32> to vector<4x16x128xf32>
    %424 = arith.mulf %420, %423 : vector<4x16x128xf32>
    %425 = arith.addf %416, %424 : vector<4x16x128xf32>
    %c2_i32_204 = arith.constant 2 : i32
    %426 = arith.addi %370, %c2_i32_204 : i32
    %c0_205 = arith.constant 0 : index
    %427 = arith.index_cast %426 : i32 to index
    %c0_206 = arith.constant 0 : index
    %c0_207 = arith.constant 0 : index
    %428 = vector.load %arg16[%c0_205, %427, %c0_206, %c0_207] : memref<3x18x16x128xf32, #tpu.memory_space<vmem>>, vector<1x4x16x128xf32>
    %429 = vector.shape_cast %428 : vector<1x4x16x128xf32> to vector<4x16x128xf32>
    %430 = vector.extract_strided_slice %53 {offsets = [6, 0], sizes = [1, 128], strides = [1, 1]} : vector<9x128xf32> to vector<1x128xf32>
    %431 = vector.shape_cast %430 : vector<1x128xf32> to vector<1x1x128xf32>
    %432 = vector.broadcast %431 : vector<1x1x128xf32> to vector<4x16x128xf32>
    %433 = arith.mulf %429, %432 : vector<4x16x128xf32>
    %434 = arith.addf %425, %433 : vector<4x16x128xf32>
    %c2_i32_208 = arith.constant 2 : i32
    %435 = arith.addi %370, %c2_i32_208 : i32
    %c1_209 = arith.constant 1 : index
    %436 = arith.index_cast %435 : i32 to index
    %c0_210 = arith.constant 0 : index
    %c0_211 = arith.constant 0 : index
    %437 = vector.load %arg16[%c1_209, %436, %c0_210, %c0_211] : memref<3x18x16x128xf32, #tpu.memory_space<vmem>>, vector<1x4x16x128xf32>
    %438 = vector.shape_cast %437 : vector<1x4x16x128xf32> to vector<4x16x128xf32>
    %439 = vector.extract_strided_slice %53 {offsets = [7, 0], sizes = [1, 128], strides = [1, 1]} : vector<9x128xf32> to vector<1x128xf32>
    %440 = vector.shape_cast %439 : vector<1x128xf32> to vector<1x1x128xf32>
    %441 = vector.broadcast %440 : vector<1x1x128xf32> to vector<4x16x128xf32>
    %442 = arith.mulf %438, %441 : vector<4x16x128xf32>
    %443 = arith.addf %434, %442 : vector<4x16x128xf32>
    %c2_i32_212 = arith.constant 2 : i32
    %444 = arith.addi %370, %c2_i32_212 : i32
    %c2_213 = arith.constant 2 : index
    %445 = arith.index_cast %444 : i32 to index
    %c0_214 = arith.constant 0 : index
    %c0_215 = arith.constant 0 : index
    %446 = vector.load %arg16[%c2_213, %445, %c0_214, %c0_215] : memref<3x18x16x128xf32, #tpu.memory_space<vmem>>, vector<1x4x16x128xf32>
    %447 = vector.shape_cast %446 : vector<1x4x16x128xf32> to vector<4x16x128xf32>
    %448 = vector.extract_strided_slice %53 {offsets = [8, 0], sizes = [1, 128], strides = [1, 1]} : vector<9x128xf32> to vector<1x128xf32>
    %449 = vector.shape_cast %448 : vector<1x128xf32> to vector<1x1x128xf32>
    %450 = vector.broadcast %449 : vector<1x1x128xf32> to vector<4x16x128xf32>
    %451 = arith.mulf %447, %450 : vector<4x16x128xf32>
    %452 = arith.addf %443, %451 : vector<4x16x128xf32>
    %453 = vector.shape_cast %54 : vector<1x128xf32> to vector<1x1x128xf32>
    %454 = vector.broadcast %453 : vector<1x1x128xf32> to vector<4x16x128xf32>
    %455 = arith.mulf %452, %454 : vector<4x16x128xf32>
    %456 = vector.shape_cast %55 : vector<1x128xf32> to vector<1x1x128xf32>
    %457 = vector.broadcast %456 : vector<1x1x128xf32> to vector<4x16x128xf32>
    %458 = arith.addf %455, %457 : vector<4x16x128xf32>
    %459 = arith.negf %458 : vector<4x16x128xf32>
    %460 = math.exp %459 : vector<4x16x128xf32>
    %cst_216 = arith.constant 1.000000e+00 : f32
    %461 = vector.broadcast %cst_216 : f32 to vector<4x16x128xf32>
    %462 = arith.addf %461, %460 : vector<4x16x128xf32>
    %463 = arith.divf %461, %462 : vector<4x16x128xf32>
    %464 = arith.mulf %458, %463 : vector<4x16x128xf32>
    %465 = vector.shape_cast %464 : vector<4x16x128xf32> to vector<64x128xf32>
    %c64_i32_217 = arith.constant 64 : i32
    %466 = arith.muli %c3_i32, %c64_i32_217 : i32
    %467 = tpu.assume_multiple %466, 64 : i32
    %468 = arith.index_cast %467 : i32 to index
    %c0_218 = arith.constant 0 : index
    %469 = vector.load %arg17[%468, %c0_218] : memref<256x128xf32, #tpu.memory_space<vmem>>, vector<64x128xf32>
    tpu.vector_store %arg17[%468, %c0_218], %465 {strides = array<i32>} : memref<256x128xf32, #tpu.memory_space<vmem>>, vector<64x128xf32>,
    %cst_219 = arith.constant dense<0.000000e+00> : vector<128xf32>
    %470 = vector.multi_reduction <add>, %465, %cst_219 [0] : vector<64x128xf32> to vector<128xf32>
    %471 = vector.shape_cast %470 : vector<128xf32> to vector<1x128xf32>
    %472 = arith.addf %368, %471 : vector<1x128xf32>
    %c4_i32_220 = arith.constant 4 : i32
    %cst_221 = arith.constant 3.906250e-03 : f32
    %473 = vector.broadcast %cst_221 : f32 to vector<1x128xf32>
    %474 = arith.mulf %472, %473 : vector<1x128xf32>
    %c0_222 = arith.constant 0 : index
    %c0_223 = arith.constant 0 : index
    %475 = vector.load %arg8[%c0_222, %c0_223] : memref<128x8xf32, #tpu.memory_space<vmem>>, vector<128x8xf32>
    %cst_224 = arith.constant dense<0.000000e+00> : vector<1x8xf32>
    %476 = tpu.matmul %474, %475, %cst_224 {dimension_numbers = #tpu.dot_dimension_numbers<[1], [0], [0], [1], [0, 0, 1, 1], [], []>} : vector<1x128xf32>, vector<128x8xf32>, vector<1x8xf32> -> vector<1x8xf32>
    %c0_225 = arith.constant 0 : index
    %c0_226 = arith.constant 0 : index
    %477 = vector.load %arg9[%c0_225, %c0_226] : memref<1x8xf32, #tpu.memory_space<vmem>>, vector<1x8xf32>
    %478 = arith.addf %476, %477 : vector<1x8xf32>
    %479 = arith.negf %478 : vector<1x8xf32>
    %480 = math.exp %479 : vector<1x8xf32>
    %cst_227 = arith.constant 1.000000e+00 : f32
    %481 = vector.broadcast %cst_227 : f32 to vector<1x8xf32>
    %482 = arith.addf %481, %480 : vector<1x8xf32>
    %483 = arith.divf %481, %482 : vector<1x8xf32>
    %484 = arith.mulf %478, %483 : vector<1x8xf32>
    %c0_228 = arith.constant 0 : index
    %c0_229 = arith.constant 0 : index
    %485 = vector.load %arg10[%c0_228, %c0_229] : memref<8x128xf32, #tpu.memory_space<vmem>>, vector<8x128xf32>
    %cst_230 = arith.constant dense<0.000000e+00> : vector<1x128xf32>
    %486 = tpu.matmul %484, %485, %cst_230 {dimension_numbers = #tpu.dot_dimension_numbers<[1], [0], [0], [1], [0, 0, 1, 1], [], []>} : vector<1x8xf32>, vector<8x128xf32>, vector<1x128xf32> -> vector<1x128xf32>
    %c0_231 = arith.constant 0 : index
    %c0_232 = arith.constant 0 : index
    %487 = vector.load %arg11[%c0_231, %c0_232] : memref<1x128xf32, #tpu.memory_space<vmem>>, vector<1x128xf32>
    %488 = arith.addf %486, %487 : vector<1x128xf32>
    %489 = arith.negf %488 : vector<1x128xf32>
    %490 = math.exp %489 : vector<1x128xf32>
    %cst_233 = arith.constant 1.000000e+00 : f32
    %491 = vector.broadcast %cst_233 : f32 to vector<1x128xf32>
    %492 = arith.addf %491, %490 : vector<1x128xf32>
    %493 = arith.divf %491, %492 : vector<1x128xf32>
    %c0_234 = arith.constant 0 : index
    %c0_235 = arith.constant 0 : index
    %494 = vector.load %arg12[%c0_234, %c0_235] : memref<32x128xf32, #tpu.memory_space<vmem>>, vector<32x128xf32>
    %495 = vector.broadcast %493 : vector<1x128xf32> to vector<32x128xf32>
    %496 = arith.mulf %494, %495 : vector<32x128xf32>
    %c0_236 = arith.constant 0 : index
    %c0_237 = arith.constant 0 : index
    %497 = vector.load %arg17[%c0_236, %c0_237] : memref<256x128xf32, #tpu.memory_space<vmem>>, vector<256x128xf32>
    %cst_238 = arith.constant dense<0.000000e+00> : vector<32x256xf32>
    %498 = tpu.matmul %496, %497, %cst_238 {dimension_numbers = #tpu.dot_dimension_numbers<[1], [1], [0], [0], [0, 0, 1, 0], [], []>} : vector<32x128xf32>, vector<256x128xf32>, vector<32x256xf32> -> vector<32x256xf32>
    %c0_239 = arith.constant 0 : index
    %c0_240 = arith.constant 0 : index
    %499 = vector.load %arg13[%c0_239, %c0_240] : memref<32x1xf32, #tpu.memory_space<vmem>>, vector<32x1xf32>
    %500 = vector.broadcast %499 : vector<32x1xf32> to vector<32x256xf32>
    %501 = arith.mulf %498, %500 : vector<32x256xf32>
    %c0_241 = arith.constant 0 : index
    %c0_242 = arith.constant 0 : index
    %502 = vector.load %arg14[%c0_241, %c0_242] : memref<32x1xf32, #tpu.memory_space<vmem>>, vector<32x1xf32>
    %503 = vector.broadcast %502 : vector<32x1xf32> to vector<32x256xf32>
    %504 = arith.addf %501, %503 : vector<32x256xf32>
    %c0_243 = arith.constant 0 : index
    %c0_244 = arith.constant 0 : index
    %c0_245 = arith.constant 0 : index
    %505 = vector.load %arg1[%c0_243, %c0_244, %c0_245] : memref<1x32x256xf32, #tpu.memory_space<vmem>>, vector<1x32x256xf32>
    %506 = vector.shape_cast %505 : vector<1x32x256xf32> to vector<32x256xf32>
    %507 = arith.addf %504, %506 : vector<32x256xf32>
    %c0_246 = arith.constant 0 : index
    %c0_247 = arith.constant 0 : index
    %c0_248 = arith.constant 0 : index
    %508 = vector.load %arg15[%c0_246, %c0_247, %c0_248] : memref<1x32x256xf32, #tpu.memory_space<vmem>>, vector<1x32x256xf32>
    %509 = vector.shape_cast %508 : vector<1x32x256xf32> to vector<32x256xf32>
    %510 = vector.shape_cast %507 : vector<32x256xf32> to vector<1x32x256xf32>
    tpu.vector_store %arg15[%c0_246, %c0_247, %c0_248], %510 {strides = array<i32>} : memref<1x32x256xf32, #tpu.memory_space<vmem>>, vector<1x32x256xf32>,
    return
  }
  func.func @transform_0(%arg0: i32) -> (i32, i32, i32) {
    %c0_i32 = arith.constant 0 : i32
    %c0_i32_0 = arith.constant 0 : i32
    %c0_i32_1 = arith.constant 0 : i32
    return %arg0, %c0_i32, %c0_i32_0 : i32, i32, i32
  }
  func.func @transform_1(%arg0: i32) -> (i32, i32) {
    %c0_i32 = arith.constant 0 : i32
    %c0_i32_0 = arith.constant 0 : i32
    %c0_i32_1 = arith.constant 0 : i32
    return %c0_i32, %c0_i32_0 : i32, i32
  }
  func.func @transform_2(%arg0: i32) -> (i32, i32) {
    %c0_i32 = arith.constant 0 : i32
    %c0_i32_0 = arith.constant 0 : i32
    %c0_i32_1 = arith.constant 0 : i32
    return %c0_i32, %c0_i32_0 : i32, i32
  }
  func.func @transform_3(%arg0: i32) -> (i32, i32) {
    %c0_i32 = arith.constant 0 : i32
    %c0_i32_0 = arith.constant 0 : i32
    %c0_i32_1 = arith.constant 0 : i32
    return %c0_i32, %c0_i32_0 : i32, i32
  }
  func.func @transform_4(%arg0: i32) -> (i32, i32) {
    %c0_i32 = arith.constant 0 : i32
    %c0_i32_0 = arith.constant 0 : i32
    %c0_i32_1 = arith.constant 0 : i32
    return %c0_i32, %c0_i32_0 : i32, i32
  }
  func.func @transform_5(%arg0: i32) -> (i32, i32) {
    %c0_i32 = arith.constant 0 : i32
    %c0_i32_0 = arith.constant 0 : i32
    %c0_i32_1 = arith.constant 0 : i32
    return %c0_i32, %c0_i32_0 : i32, i32
  }
  func.func @transform_6(%arg0: i32) -> (i32, i32) {
    %c0_i32 = arith.constant 0 : i32
    %c0_i32_0 = arith.constant 0 : i32
    %c0_i32_1 = arith.constant 0 : i32
    return %c0_i32, %c0_i32_0 : i32, i32
  }
  func.func @transform_7(%arg0: i32) -> (i32, i32) {
    %c0_i32 = arith.constant 0 : i32
    %c0_i32_0 = arith.constant 0 : i32
    %c0_i32_1 = arith.constant 0 : i32
    return %c0_i32, %c0_i32_0 : i32, i32
  }
  func.func @transform_8(%arg0: i32) -> (i32, i32) {
    %c0_i32 = arith.constant 0 : i32
    %c0_i32_0 = arith.constant 0 : i32
    %c0_i32_1 = arith.constant 0 : i32
    return %c0_i32, %c0_i32_0 : i32, i32
  }
  func.func @transform_9(%arg0: i32) -> (i32, i32) {
    %c0_i32 = arith.constant 0 : i32
    %c0_i32_0 = arith.constant 0 : i32
    %c0_i32_1 = arith.constant 0 : i32
    return %c0_i32, %c0_i32_0 : i32, i32
  }
  func.func @transform_10(%arg0: i32) -> (i32, i32) {
    %c0_i32 = arith.constant 0 : i32
    %c0_i32_0 = arith.constant 0 : i32
    %c0_i32_1 = arith.constant 0 : i32
    return %c0_i32, %c0_i32_0 : i32, i32
  }
  func.func @transform_11(%arg0: i32) -> (i32, i32) {
    %c0_i32 = arith.constant 0 : i32
    %c0_i32_0 = arith.constant 0 : i32
    %c0_i32_1 = arith.constant 0 : i32
    return %c0_i32, %c0_i32_0 : i32, i32
  }
  func.func @transform_12(%arg0: i32) -> (i32, i32) {
    %c0_i32 = arith.constant 0 : i32
    %c0_i32_0 = arith.constant 0 : i32
    %c0_i32_1 = arith.constant 0 : i32
    return %c0_i32, %c0_i32_0 : i32, i32
  }
  func.func @transform_13(%arg0: i32) -> (i32, i32) {
    %c0_i32 = arith.constant 0 : i32
    %c0_i32_0 = arith.constant 0 : i32
    %c0_i32_1 = arith.constant 0 : i32
    return %c0_i32, %c0_i32_0 : i32, i32
  }
  func.func @transform_14(%arg0: i32) -> (i32, i32, i32) {
    %c0_i32 = arith.constant 0 : i32
    %c0_i32_0 = arith.constant 0 : i32
    %c0_i32_1 = arith.constant 0 : i32
    return %arg0, %c0_i32, %c0_i32_0 : i32, i32, i32
  }
}

</mosaic_0001>

<llo_original>
// kernel: mbconv_forward.1
$region0: #{mbconv_forward.1}
  #allocation0 [shape = 'u32[]', space=smem, size = 0x4, offset = 0x4, fixed_abs, tag = 'smem constant byte address 0x4 - core index']
  #allocation1 [shape = 'u32[72,128]{1,0:T(1,128)}', space=vmem, size = 0x9000, scoped, tag = 'internal scratch']
  #allocation2 [shape = 'f32[3,18,16,128]{3,2,1,0:T(8,128)}', space=vmem, size = 0x6c000, scoped, tag = 'scratch operand']
  #allocation3 [shape = 'f32[256,128]{1,0:T(8,128)}', space=vmem, size = 0x20000, scoped, tag = 'scratch operand']
  %s0 = inlined_call_operand.vmem [shape: f32[2,32,256], index: 0, kind: input, shape index: {}]
  %s1 = inlined_call_operand.vmem [shape: f32[32,128], index: 1, kind: input, shape index: {}]
  %s2 = inlined_call_operand.vmem [shape: f32[1,128], index: 2, kind: input, shape index: {}]
  %s3 = inlined_call_operand.vmem [shape: f32[1,128], index: 3, kind: input, shape index: {}]
  %s4 = inlined_call_operand.vmem [shape: f32[9,128], index: 4, kind: input, shape index: {}]
  %s5 = inlined_call_operand.vmem [shape: f32[1,128], index: 5, kind: input, shape index: {}]
  %s6 = inlined_call_operand.vmem [shape: f32[1,128], index: 6, kind: input, shape index: {}]
  %s7 = inlined_call_operand.vmem [shape: f32[128,8], index: 7, kind: input, shape index: {}]
  %s8 = inlined_call_operand.vmem [shape: f32[1,8], index: 8, kind: input, shape index: {}]
  %s9 = inlined_call_operand.vmem [shape: f32[8,128], index: 9, kind: input, shape index: {}]
  %s10 = inlined_call_operand.vmem [shape: f32[1,128], index: 10, kind: input, shape index: {}]
  %s11 = inlined_call_operand.vmem [shape: f32[32,128], index: 11, kind: input, shape index: {}]
  %s12 = inlined_call_operand.vmem [shape: f32[32,1], index: 12, kind: input, shape index: {}]
  %s13 = inlined_call_operand.vmem [shape: f32[32,1], index: 13, kind: input, shape index: {}]
  %s14 = inlined_call_operand.vmem [shape: f32[2,32,256], index: 14, kind: output, shape index: {}]
  %s15 = sld [smem:[#allocation0]]
  $region89: #{mbconv_forward.1} parent=0
    _
  %s17 = ssub.s32 1, %s15
  %s18 = scalar_select 0, %s17, %s15
  loop: start=0, step=1, limit=4
  $region2: #{mbconv_forward.1} parent=0 // loop_pre_header
    _
  $region3: #{mbconv_forward.1} parent=0 // loop_header
    %s20 = sphi 0, %s24
    %p21 = scmp.ge.s32.totalorder %s20, 4
    %s30 = sphi 0, %s32
    %s33 = sphi 0, %s30
    %s34 = sphi 0, %s33
    %s50 = sphi 0, %s34
    %s54 = sphi 0, %s54
    %s56 = sphi 0, %s54
    %s57 = sphi 0, %s56
    %s71 = sphi 0, %s57
    %s75 = sphi 0, %s75
    %s77 = sphi 0, %s75
    %s78 = sphi 0, %s77
    %s92 = sphi 0, %s78
    %s96 = sphi 0, %s96
    %s98 = sphi 0, %s96
    %s99 = sphi 0, %s98
    %s113 = sphi 0, %s99
    %s117 = sphi 0, %s117
    %s119 = sphi 0, %s117
    %s120 = sphi 0, %s119
    %s134 = sphi 0, %s120
    %s138 = sphi 0, %s138
    %s140 = sphi 0, %s138
    %s141 = sphi 0, %s140
    %s155 = sphi 0, %s141
    %s159 = sphi 0, %s159
    %s161 = sphi 0, %s159
    %s162 = sphi 0, %s161
    %s176 = sphi 0, %s162
    %s180 = sphi 0, %s180
    %s182 = sphi 0, %s180
    %s183 = sphi 0, %s182
    %s197 = sphi 0, %s183
    %s201 = sphi 0, %s201
    %s203 = sphi 0, %s201
    %s204 = sphi 0, %s203
    %s218 = sphi 0, %s204
    %s222 = sphi 0, %s222
    %s224 = sphi 0, %s222
    %s225 = sphi 0, %s224
    %s239 = sphi 0, %s225
    %s243 = sphi 0, %s243
    %s245 = sphi 0, %s243
    %s246 = sphi 0, %s245
    %s260 = sphi 0, %s246
    %s264 = sphi 0, %s264
    %s266 = sphi 0, %s264
    %s267 = sphi 0, %s266
    %s281 = sphi 0, %s267
    %s285 = sphi 0, %s285
    %s287 = sphi 0, %s285
    %s288 = sphi 0, %s287
    %s302 = sphi 0, %s288
    %s306 = sphi 0, %s306
    %s308 = sphi 0, %s306
    %s309 = sphi 0, %s308
    %s323 = sphi 0, %s309
    %s329 = sphi 0, %s331
    %s332 = sphi 0, %s329
    %s333 = sphi 0, %s332
    %s349 = sphi 0, %s333
  $region4: #{mbconv_forward.1} parent=0 // loop_header_branch
    %23 = sbr.rel (%p21) target = $region8
  $region5: #{mbconv_forward.1} parent=0 // loop_body
    %s25 = ssub.s32 %s20, 1
    %s26 = ssub.s32 %s20, 2
    %s27 = sadd.s32 %s20, 1
    %s28 = ssub.s32 %s20, %s27
    %p29 = scmp.eq.s32.totalorder %s28, 0
    %s31 = sadd.s32 %s30, 1
    %s32 = scalar_select %p29, %s30, %s31
    %p35 = pneg %p29
    %p36 = scmp.eq.s32.totalorder %s20, 1
    %p37 = por %p35, %p36
    %p38 = scmp.ne.s32.totalorder %s30, %s33
    %p39 = scmp.eq.s32.totalorder %s20, 0
    %p40 = por %p38, %p39
    %p41 = scmp.ne.s32.totalorder %s30, %s33
    %p42 = scmp.eq.s32.totalorder %s25, 1
    %p43 = por %p41, %p42
    %p44 = scmp.ne.s32.totalorder %s33, %s34
    %p45 = scmp.eq.s32.totalorder %s25, 0
    %p46 = por %p44, %p45
    %p47 = scmp.ne.s32.totalorder %s33, %s34
    %p48 = scmp.eq.s32.totalorder %s26, 1
    %p49 = por %p47, %p48
    %p51 = scmp.ne.s32.totalorder %s34, %s50
    %p52 = scmp.eq.s32.totalorder %s26, 0
    %p53 = por %p51, %p52
    %s55 = sadd.s32 %s54, 1
    %p58 = scmp.eq.s32.totalorder %s20, 1
    %p59 = scmp.ne.s32.totalorder %s54, %s56
    %p60 = scmp.eq.s32.totalorder %s20, 0
    %p61 = por %p59, %p60
    %p62 = scmp.ne.s32.totalorder %s54, %s56
    %p63 = scmp.eq.s32.totalorder %s25, 1
    %p64 = por %p62, %p63
    %p65 = scmp.ne.s32.totalorder %s56, %s57
    %p66 = scmp.eq.s32.totalorder %s25, 0
    %p67 = por %p65, %p66
    %p68 = scmp.ne.s32.totalorder %s56, %s57
    %p69 = scmp.eq.s32.totalorder %s26, 1
    %p70 = por %p68, %p69
    %p72 = scmp.ne.s32.totalorder %s57, %s71
    %p73 = scmp.eq.s32.totalorder %s26, 0
    %p74 = por %p72, %p73
    %s76 = sadd.s32 %s75, 1
    %p79 = scmp.eq.s32.totalorder %s20, 1
    %p80 = scmp.ne.s32.totalorder %s75, %s77
    %p81 = scmp.eq.s32.totalorder %s20, 0
    %p82 = por %p80, %p81
    %p83 = scmp.ne.s32.totalorder %s75, %s77
    %p84 = scmp.eq.s32.totalorder %s25, 1
    %p85 = por %p83, %p84
    %p86 = scmp.ne.s32.totalorder %s77, %s78
    %p87 = scmp.eq.s32.totalorder %s25, 0
    %p88 = por %p86, %p87
    %p89 = scmp.ne.s32.totalorder %s77, %s78
    %p90 = scmp.eq.s32.totalorder %s26, 1
    %p91 = por %p89, %p90
    %p93 = scmp.ne.s32.totalorder %s78, %s92
    %p94 = scmp.eq.s32.totalorder %s26, 0
    %p95 = por %p93, %p94
    %s97 = sadd.s32 %s96, 1
    %p100 = scmp.eq.s32.totalorder %s20, 1
    %p101 = scmp.ne.s32.totalorder %s96, %s98
    %p102 = scmp.eq.s32.totalorder %s20, 0
    %p103 = por %p101, %p102
    %p104 = scmp.ne.s32.totalorder %s96, %s98
    %p105 = scmp.eq.s32.totalorder %s25, 1
    %p106 = por %p104, %p105
    %p107 = scmp.ne.s32.totalorder %s98, %s99
    %p108 = scmp.eq.s32.totalorder %s25, 0
    %p109 = por %p107, %p108
    %p110 = scmp.ne.s32.totalorder %s98, %s99
    %p111 = scmp.eq.s32.totalorder %s26, 1
    %p112 = por %p110, %p111
    %p114 = scmp.ne.s32.totalorder %s99, %s113
    %p115 = scmp.eq.s32.totalorder %s26, 0
    %p116 = por %p114, %p115
    %s118 = sadd.s32 %s117, 1
    %p121 = scmp.eq.s32.totalorder %s20, 1
    %p122 = scmp.ne.s32.totalorder %s117, %s119
    %p123 = scmp.eq.s32.totalorder %s20, 0
    %p124 = por %p122, %p123
    %p125 = scmp.ne.s32.totalorder %s117, %s119
    %p126 = scmp.eq.s32.totalorder %s25, 1
    %p127 = por %p125, %p126
    %p128 = scmp.ne.s32.totalorder %s119, %s120
    %p129 = scmp.eq.s32.totalorder %s25, 0
    %p130 = por %p128, %p129
    %p131 = scmp.ne.s32.totalorder %s119, %s120
    %p132 = scmp.eq.s32.totalorder %s26, 1
    %p133 = por %p131, %p132
    %p135 = scmp.ne.s32.totalorder %s120, %s134
    %p136 = scmp.eq.s32.totalorder %s26, 0
    %p137 = por %p135, %p136
    %s139 = sadd.s32 %s138, 1
    %p142 = scmp.eq.s32.totalorder %s20, 1
    %p143 = scmp.ne.s32.totalorder %s138, %s140
    %p144 = scmp.eq.s32.totalorder %s20, 0
    %p145 = por %p143, %p144
    %p146 = scmp.ne.s32.totalorder %s138, %s140
    %p147 = scmp.eq.s32.totalorder %s25, 1
    %p148 = por %p146, %p147
    %p149 = scmp.ne.s32.totalorder %s140, %s141
    %p150 = scmp.eq.s32.totalorder %s25, 0
    %p151 = por %p149, %p150
    %p152 = scmp.ne.s32.totalorder %s140, %s141
    %p153 = scmp.eq.s32.totalorder %s26, 1
    %p154 = por %p152, %p153
    %p156 = scmp.ne.s32.totalorder %s141, %s155
    %p157 = scmp.eq.s32.totalorder %s26, 0
    %p158 = por %p156, %p157
    %s160 = sadd.s32 %s159, 1
    %p163 = scmp.eq.s32.totalorder %s20, 1
    %p164 = scmp.ne.s32.totalorder %s159, %s161
    %p165 = scmp.eq.s32.totalorder %s20, 0
    %p166 = por %p164, %p165
    %p167 = scmp.ne.s32.totalorder %s159, %s161
    %p168 = scmp.eq.s32.totalorder %s25, 1
    %p169 = por %p167, %p168
    %p170 = scmp.ne.s32.totalorder %s161, %s162
    %p171 = scmp.eq.s32.totalorder %s25, 0
    %p172 = por %p170, %p171
    %p173 = scmp.ne.s32.totalorder %s161, %s162
    %p174 = scmp.eq.s32.totalorder %s26, 1
    %p175 = por %p173, %p174
    %p177 = scmp.ne.s32.totalorder %s162, %s176
    %p178 = scmp.eq.s32.totalorder %s26, 0
    %p179 = por %p177, %p178
    %s181 = sadd.s32 %s180, 1
    %p184 = scmp.eq.s32.totalorder %s20, 1
    %p185 = scmp.ne.s32.totalorder %s180, %s182
    %p186 = scmp.eq.s32.totalorder %s20, 0
    %p187 = por %p185, %p186
    %p188 = scmp.ne.s32.totalorder %s180, %s182
    %p189 = scmp.eq.s32.totalorder %s25, 1
    %p190 = por %p188, %p189
    %p191 = scmp.ne.s32.totalorder %s182, %s183
    %p192 = scmp.eq.s32.totalorder %s25, 0
    %p193 = por %p191, %p192
    %p194 = scmp.ne.s32.totalorder %s182, %s183
    %p195 = scmp.eq.s32.totalorder %s26, 1
    %p196 = por %p194, %p195
    %p198 = scmp.ne.s32.totalorder %s183, %s197
    %p199 = scmp.eq.s32.totalorder %s26, 0
    %p200 = por %p198, %p199
    %s202 = sadd.s32 %s201, 1
    %p205 = scmp.eq.s32.totalorder %s20, 1
    %p206 = scmp.ne.s32.totalorder %s201, %s203
    %p207 = scmp.eq.s32.totalorder %s20, 0
    %p208 = por %p206, %p207
    %p209 = scmp.ne.s32.totalorder %s201, %s203
    %p210 = scmp.eq.s32.totalorder %s25, 1
    %p211 = por %p209, %p210
    %p212 = scmp.ne.s32.totalorder %s203, %s204
    %p213 = scmp.eq.s32.totalorder %s25, 0
    %p214 = por %p212, %p213
    %p215 = scmp.ne.s32.totalorder %s203, %s204
    %p216 = scmp.eq.s32.totalorder %s26, 1
    %p217 = por %p215, %p216
    %p219 = scmp.ne.s32.totalorder %s204, %s218
    %p220 = scmp.eq.s32.totalorder %s26, 0
    %p221 = por %p219, %p220
    %s223 = sadd.s32 %s222, 1
    %p226 = scmp.eq.s32.totalorder %s20, 1
    %p227 = scmp.ne.s32.totalorder %s222, %s224
    %p228 = scmp.eq.s32.totalorder %s20, 0
    %p229 = por %p227, %p228
    %p230 = scmp.ne.s32.totalorder %s222, %s224
    %p231 = scmp.eq.s32.totalorder %s25, 1
    %p232 = por %p230, %p231
    %p233 = scmp.ne.s32.totalorder %s224, %s225
    %p234 = scmp.eq.s32.totalorder %s25, 0
    %p235 = por %p233, %p234
    %p236 = scmp.ne.s32.totalorder %s224, %s225
    %p237 = scmp.eq.s32.totalorder %s26, 1
    %p238 = por %p236, %p237
    %p240 = scmp.ne.s32.totalorder %s225, %s239
    %p241 = scmp.eq.s32.totalorder %s26, 0
    %p242 = por %p240, %p241
    %s244 = sadd.s32 %s243, 1
    %p247 = scmp.eq.s32.totalorder %s20, 1
    %p248 = scmp.ne.s32.totalorder %s243, %s245
    %p249 = scmp.eq.s32.totalorder %s20, 0
    %p250 = por %p248, %p249
    %p251 = scmp.ne.s32.totalorder %s243, %s245
    %p252 = scmp.eq.s32.totalorder %s25, 1
    %p253 = por %p251, %p252
    %p254 = scmp.ne.s32.totalorder %s245, %s246
    %p255 = scmp.eq.s32.totalorder %s25, 0
    %p256 = por %p254, %p255
    %p257 = scmp.ne.s32.totalorder %s245, %s246
    %p258 = scmp.eq.s32.totalorder %s26, 1
    %p259 = por %p257, %p258
    %p261 = scmp.ne.s32.totalorder %s246, %s260
    %p262 = scmp.eq.s32.totalorder %s26, 0
    %p263 = por %p261, %p262
    %s265 = sadd.s32 %s264, 1
    %p268 = scmp.eq.s32.totalorder %s20, 1
    %p269 = scmp.ne.s32.totalorder %s264, %s266
    %p270 = scmp.eq.s32.totalorder %s20, 0
    %p271 = por %p269, %p270
    %p272 = scmp.ne.s32.totalorder %s264, %s266
    %p273 = scmp.eq.s32.totalorder %s25, 1
    %p274 = por %p272, %p273
    %p275 = scmp.ne.s32.totalorder %s266, %s267
    %p276 = scmp.eq.s32.totalorder %s25, 0
    %p277 = por %p275, %p276
    %p278 = scmp.ne.s32.totalorder %s266, %s267
    %p279 = scmp.eq.s32.totalorder %s26, 1
    %p280 = por %p278, %p279
    %p282 = scmp.ne.s32.totalorder %s267, %s281
    %p283 = scmp.eq.s32.totalorder %s26, 0
    %p284 = por %p282, %p283
    %s286 = sadd.s32 %s285, 1
    %p289 = scmp.eq.s32.totalorder %s20, 1
    %p290 = scmp.ne.s32.totalorder %s285, %s287
    %p291 = scmp.eq.s32.totalorder %s20, 0
    %p292 = por %p290, %p291
    %p293 = scmp.ne.s32.totalorder %s285, %s287
    %p294 = scmp.eq.s32.totalorder %s25, 1
    %p295 = por %p293, %p294
    %p296 = scmp.ne.s32.totalorder %s287, %s288
    %p297 = scmp.eq.s32.totalorder %s25, 0
    %p298 = por %p296, %p297
    %p299 = scmp.ne.s32.totalorder %s287, %s288
    %p300 = scmp.eq.s32.totalorder %s26, 1
    %p301 = por %p299, %p300
    %p303 = scmp.ne.s32.totalorder %s288, %s302
    %p304 = scmp.eq.s32.totalorder %s26, 0
    %p305 = por %p303, %p304
    %s307 = sadd.s32 %s306, 1
    %p310 = scmp.eq.s32.totalorder %s20, 1
    %p311 = scmp.ne.s32.totalorder %s306, %s308
    %p312 = scmp.eq.s32.totalorder %s20, 0
    %p313 = por %p311, %p312
    %p314 = scmp.ne.s32.totalorder %s306, %s308
    %p315 = scmp.eq.s32.totalorder %s25, 1
    %p316 = por %p314, %p315
    %p317 = scmp.ne.s32.totalorder %s308, %s309
    %p318 = scmp.eq.s32.totalorder %s25, 0
    %p319 = por %p317, %p318
    %p320 = scmp.ne.s32.totalorder %s308, %s309
    %p321 = scmp.eq.s32.totalorder %s26, 1
    %p322 = por %p320, %p321
    %p324 = scmp.ne.s32.totalorder %s309, %s323
    %p325 = scmp.eq.s32.totalorder %s26, 0
    %p326 = por %p324, %p325
    %s327 = ssub.s32 %s20, %s27
    %p328 = scmp.eq.s32.totalorder %s327, 0
    %s330 = sadd.s32 %s329, 1
    %s331 = scalar_select %p328, %s329, %s330
    %p334 = pneg %p328
    %p335 = scmp.eq.s32.totalorder %s20, 1
    %p336 = por %p334, %p335
    %p337 = scmp.ne.s32.totalorder %s329, %s332
    %p338 = scmp.eq.s32.totalorder %s20, 0
    %p339 = por %p337, %p338
    %p340 = scmp.ne.s32.totalorder %s329, %s332
    %p341 = scmp.eq.s32.totalorder %s25, 1
    %p342 = por %p340, %p341
    %p343 = scmp.ne.s32.totalorder %s332, %s333
    %p344 = scmp.eq.s32.totalorder %s25, 0
    %p345 = por %p343, %p344
    %p346 = scmp.ne.s32.totalorder %s332, %s333
    %p347 = scmp.eq.s32.totalorder %s26, 1
    %p348 = por %p346, %p347
    %p350 = scmp.ne.s32.totalorder %s333, %s349
    %p351 = scmp.eq.s32.totalorder %s26, 0
    %p352 = por %p350, %p351
    %p353 = scmp.le.s32.totalorder 1, %s20
    %p354 = scmp.lt.s32.totalorder %s20, 3
    %p355 = pnand %p353, %p354
    %p356 = pneg %p355
    // Predicated region
    $region9: #{mbconv_forward.1} parent=5 // pred_check
      _
    $region10: #{mbconv_forward.1} parent=5 // pred_check_branch
      %358 = sbr.rel (%p355) target = $region12
    $region11: #{mbconv_forward.1} parent=5 // pred_region
      %s359 = ssub.s32 %s20, 1
      // Predicated region
      $region13: #{mbconv_forward.1} parent=11 // pred_check
        %p360 = pneg %p67
      $region14: #{mbconv_forward.1} parent=11 // pred_check_branch
        %362 = sbr.rel (%p360) target = $region16
      $region15: #{mbconv_forward.1} parent=11 // pred_region
        _
      $region16: #{mbconv_forward.1} parent=11 // pred_fallthru
        _
      // Predicated region
      $region17: #{mbconv_forward.1} parent=11 // pred_check
        %p363 = pneg %p88
      $region18: #{mbconv_forward.1} parent=11 // pred_check_branch
        %365 = sbr.rel (%p363) target = $region20
      $region19: #{mbconv_forward.1} parent=11 // pred_region
        _
      $region20: #{mbconv_forward.1} parent=11 // pred_fallthru
        _
      // Predicated region
      $region21: #{mbconv_forward.1} parent=11 // pred_check
        %p366 = pneg %p109
      $region22: #{mbconv_forward.1} parent=11 // pred_check_branch
        %368 = sbr.rel (%p366) target = $region24
      $region23: #{mbconv_forward.1} parent=11 // pred_region
        _
      $region24: #{mbconv_forward.1} parent=11 // pred_fallthru
        _
      // Predicated region
      $region25: #{mbconv_forward.1} parent=11 // pred_check
        %p369 = pneg %p130
      $region26: #{mbconv_forward.1} parent=11 // pred_check_branch
        %371 = sbr.rel (%p369) target = $region28
      $region27: #{mbconv_forward.1} parent=11 // pred_region
        _
      $region28: #{mbconv_forward.1} parent=11 // pred_fallthru
        _
      // Predicated region
      $region29: #{mbconv_forward.1} parent=11 // pred_check
        %p372 = pneg %p151
      $region30: #{mbconv_forward.1} parent=11 // pred_check_branch
        %374 = sbr.rel (%p372) target = $region32
      $region31: #{mbconv_forward.1} parent=11 // pred_region
        _
      $region32: #{mbconv_forward.1} parent=11 // pred_fallthru
        _
      // Predicated region
      $region33: #{mbconv_forward.1} parent=11 // pred_check
        %p375 = pneg %p172
      $region34: #{mbconv_forward.1} parent=11 // pred_check_branch
        %377 = sbr.rel (%p375) target = $region36
      $region35: #{mbconv_forward.1} parent=11 // pred_region
        _
      $region36: #{mbconv_forward.1} parent=11 // pred_fallthru
        _
      // Predicated region
      $region37: #{mbconv_forward.1} parent=11 // pred_check
        %p378 = pneg %p193
      $region38: #{mbconv_forward.1} parent=11 // pred_check_branch
        %380 = sbr.rel (%p378) target = $region40
      $region39: #{mbconv_forward.1} parent=11 // pred_region
        _
      $region40: #{mbconv_forward.1} parent=11 // pred_fallthru
        _
      // Predicated region
      $region41: #{mbconv_forward.1} parent=11 // pred_check
        %p381 = pneg %p214
      $region42: #{mbconv_forward.1} parent=11 // pred_check_branch
        %383 = sbr.rel (%p381) target = $region44
      $region43: #{mbconv_forward.1} parent=11 // pred_region
        _
      $region44: #{mbconv_forward.1} parent=11 // pred_fallthru
        _
      // Predicated region
      $region45: #{mbconv_forward.1} parent=11 // pred_check
        %p384 = pneg %p235
      $region46: #{mbconv_forward.1} parent=11 // pred_check_branch
        %386 = sbr.rel (%p384) target = $region48
      $region47: #{mbconv_forward.1} parent=11 // pred_region
        _
      $region48: #{mbconv_forward.1} parent=11 // pred_fallthru
        _
      // Predicated region
      $region49: #{mbconv_forward.1} parent=11 // pred_check
        %p387 = pneg %p256
      $region50: #{mbconv_forward.1} parent=11 // pred_check_branch
        %389 = sbr.rel (%p387) target = $region52
      $region51: #{mbconv_forward.1} parent=11 // pred_region
        _
      $region52: #{mbconv_forward.1} parent=11 // pred_fallthru
        _
      // Predicated region
      $region53: #{mbconv_forward.1} parent=11 // pred_check
        %p390 = pneg %p277
      $region54: #{mbconv_forward.1} parent=11 // pred_check_branch
        %392 = sbr.rel (%p390) target = $region56
      $region55: #{mbconv_forward.1} parent=11 // pred_region
        _
      $region56: #{mbconv_forward.1} parent=11 // pred_fallthru
        _
      // Predicated region
      $region57: #{mbconv_forward.1} parent=11 // pred_check
        %p393 = pneg %p298
      $region58: #{mbconv_forward.1} parent=11 // pred_check_branch
        %395 = sbr.rel (%p393) target = $region60
      $region59: #{mbconv_forward.1} parent=11 // pred_region
        _
      $region60: #{mbconv_forward.1} parent=11 // pred_fallthru
        _
      // Predicated region
      $region61: #{mbconv_forward.1} parent=11 // pred_check
        %p396 = pneg %p319
      $region62: #{mbconv_forward.1} parent=11 // pred_check_branch
        %398 = sbr.rel (%p396) target = $region64
      $region63: #{mbconv_forward.1} parent=11 // pred_region
        _
      $region64: #{mbconv_forward.1} parent=11 // pred_fallthru
        _
    $region12: #{mbconv_forward.1} parent=5 // pred_fallthru
      _
    %p399 = scmp.lt.s32.totalorder %s20, 2
    // Predicated region
    $region65: #{mbconv_forward.1} parent=5 // pred_check
      %p400 = pneg %p399
    $region66: #{mbconv_forward.1} parent=5 // pred_check_branch
      %402 = sbr.rel (%p400) target = $region68
    $region67: #{mbconv_forward.1} parent=5 // pred_region
      // Predicated region
      $region69: #{mbconv_forward.1} parent=67 // pred_check
        %p403 = pneg %p40
      $region70: #{mbconv_forward.1} parent=67 // pred_check_branch
        %405 = sbr.rel (%p403) target = $region72
      $region71: #{mbconv_forward.1} parent=67 // pred_region
        %p406 = scmp.lt.s32.totalorder %s20, 1
        %s407 = scalar_select %p406, %s20, 1
        %s408 = smul.addr %s407, 8
        %s409 = smul.addr %s408, 8
        %s410 = scalar_lea.vmem %s0, %s409
      $region72: #{mbconv_forward.1} parent=67 // pred_fallthru
        _
    $region68: #{mbconv_forward.1} parent=5 // pred_fallthru
      _
    %p411 = scmp.le.s32.totalorder 1, %s20
    %p412 = scmp.lt.s32.totalorder %s20, 3
    %p413 = pnand %p411, %p412
    %p414 = pneg %p413
    // Predicated region
    $region73: #{mbconv_forward.1} parent=5 // pred_check
      _
    $region74: #{mbconv_forward.1} parent=5 // pred_check_branch
      %416 = sbr.rel (%p413) target = $region76
    $region75: #{mbconv_forward.1} parent=5 // pred_region
      %s417 = ssub.s32 %s20, 1
      %p418 = scmp.lt.s32.totalorder %s25, 1
      %s419 = scalar_select %p418, %s25, 1
      %s420 = smul.addr %s419, 8
      %s421 = smul.addr %s420, 8
      %s422 = scalar_lea.vmem %s0, %s421
      %p423 = pneg %p46
      %p424 = pneg %p43
      %p425 = pneg %p67
      %p426 = pneg %p64
      %p427 = pneg %p88
      %p428 = pneg %p85
      %p429 = pneg %p109
      %p430 = pneg %p106
      %p431 = pneg %p130
      %p432 = pneg %p127
      %p433 = pneg %p151
      %p434 = pneg %p148
      %p435 = pneg %p172
      %p436 = pneg %p169
      %p437 = pneg %p193
      %p438 = pneg %p190
      %p439 = pneg %p214
      %p440 = pneg %p211
      %p441 = pneg %p235
      %p442 = pneg %p232
      %p443 = pneg %p256
      %p444 = pneg %p253
      %p445 = pneg %p277
      %p446 = pneg %p274
      %p447 = pneg %p298
      %p448 = pneg %p295
      %p449 = pneg %p319
      %p450 = pneg %p316
      %p451 = pneg %p345
      %p452 = pneg %p342
      %p453 = scmp.lt.s32.totalorder %s25, 1
      %s454 = scalar_select %p453, %s25, 1
      %s455 = smul.addr %s454, 8
      %s456 = smul.addr %s455, 8
      %s457 = scalar_lea.vmem %s14, %s456
      %p458 = scmp.lt.s32.totalorder %s25, 1
      %s459 = scalar_select %p458, %s25, 1
      %s460 = smul.addr %s459, 8
      %s461 = smul.addr %s460, 8
      %s462 = scalar_lea.vmem %s0, %s461
      %p463 = scmp.lt.s32.totalorder %s25, 1
      %s464 = scalar_select %p463, %s25, 1
      %s465 = smul.addr %s464, 8
      %s466 = smul.addr %s465, 8
      %s467 = scalar_lea.vmem %s14, %s466
      %v468 = vld [vmem:[%s462] sm:$0xff]
      %v469 = vld [vmem:[%s462 + $0x8] sm:$0xff]
      %v470 = vld [vmem:[%s462 + $0x10] sm:$0xff]
      %v471 = vld [vmem:[%s462 + $0x18] sm:$0xff]
      %v472 = vld [vmem:[%s462 + $0x20] sm:$0xff]
      %v473 = vld [vmem:[%s462 + $0x28] sm:$0xff]
      %v474 = vld [vmem:[%s462 + $0x30] sm:$0xff]
      %v475 = vld [vmem:[%s462 + $0x38] sm:$0xff]
      %v476 = vld [vmem:[%s1] sm:$0xff]
      %v477 = vld [vmem:[%s1 + $0x8] sm:$0xff]
      %v478 = vld [vmem:[%s1 + $0x10] sm:$0xff]
      %v479 = vld [vmem:[%s1 + $0x18] sm:$0xff]
      %480 = vxpose.xlu0.b32.start [1/16] %v468, 128
      %481 = vxpose.xlu0.b32.cont [2/16] %v470, 128
      %482 = vxpose.xlu0.b32.cont [3/16] %v472, 128
      %483 = vxpose.xlu0.b32.cont [4/16] %v474, 128
      %484 = vxpose.xlu0.b32.cont [5/16] 0.0, 128
      %485 = vxpose.xlu0.b32.cont [6/16] 0.0, 128
      %486 = vxpose.xlu0.b32.cont [7/16] 0.0, 128
      %487 = vxpose.xlu0.b32.cont [8/16] 0.0, 128
      %488 = vxpose.xlu0.b32.cont [9/16] 0.0, 128
      %489 = vxpose.xlu0.b32.cont [10/16] 0.0, 128
      %490 = vxpose.xlu0.b32.cont [11/16] 0.0, 128
      %491 = vxpose.xlu0.b32.cont [12/16] 0.0, 128
      %492 = vxpose.xlu0.b32.cont [13/16] 0.0, 128
      %493 = vxpose.xlu0.b32.cont [14/16] 0.0, 128
      %494 = vxpose.xlu0.b32.cont [15/16] 0.0, 128
      %495 = vxpose.xlu0.b32.end [16/16] 0.0, 128
      %v496 = vpop.trf.xlu0
      %v497 = vpop.trf.xlu0
      %v498 = vpop.trf.xlu0
      %v499 = vpop.trf.xlu0
      %v500 = vpop.trf.xlu0
      %v501 = vpop.trf.xlu0
      %v502 = vpop.trf.xlu0
      %v503 = vpop.trf.xlu0
      %v504 = vpop.trf.xlu0
      %v505 = vpop.trf.xlu0
      %v506 = vpop.trf.xlu0
      %v507 = vpop.trf.xlu0
      %v508 = vpop.trf.xlu0
      %v509 = vpop.trf.xlu0
      %v510 = vpop.trf.xlu0
      %v511 = vpop.trf.xlu0
      %512 = vxpose.xlu0.b32.start [1/16] %v469, 128
      %513 = vxpose.xlu0.b32.cont [2/16] %v471, 128
      %514 = vxpose.xlu0.b32.cont [3/16] %v473, 128
      %515 = vxpose.xlu0.b32.cont [4/16] %v475, 128
      %516 = vxpose.xlu0.b32.cont [5/16] 0.0, 128
      %517 = vxpose.xlu0.b32.cont [6/16] 0.0, 128
      %518 = vxpose.xlu0.b32.cont [7/16] 0.0, 128
      %519 = vxpose.xlu0.b32.cont [8/16] 0.0, 128
      %520 = vxpose.xlu0.b32.cont [9/16] 0.0, 128
      %521 = vxpose.xlu0.b32.cont [10/16] 0.0, 128
      %522 = vxpose.xlu0.b32.cont [11/16] 0.0, 128
      %523 = vxpose.xlu0.b32.cont [12/16] 0.0, 128
      %524 = vxpose.xlu0.b32.cont [13/16] 0.0, 128
      %525 = vxpose.xlu0.b32.cont [14/16] 0.0, 128
      %526 = vxpose.xlu0.b32.cont [15/16] 0.0, 128
      %527 = vxpose.xlu0.b32.end [16/16] 0.0, 128
      %v528 = vpop.trf.xlu0
      %v529 = vpop.trf.xlu0
      %v530 = vpop.trf.xlu0
      %v531 = vpop.trf.xlu0
      %v532 = vpop.trf.xlu0
      %v533 = vpop.trf.xlu0
      %v534 = vpop.trf.xlu0
      %v535 = vpop.trf.xlu0
      %v536 = vpop.trf.xlu0
      %v537 = vpop.trf.xlu0
      %v538 = vpop.trf.xlu0
      %v539 = vpop.trf.xlu0
      %v540 = vpop.trf.xlu0
      %v541 = vpop.trf.xlu0
      %v542 = vpop.trf.xlu0
      %v543 = vpop.trf.xlu0
      %vm544 = vcmask 261120
      %v546 = vsel %vm544, %v496, 0
      %v549 = vsel %vm544, %v497, 0
      %v552 = vsel %vm544, %v498, 0
      %v555 = vsel %vm544, %v499, 0
      %v558 = vsel %vm544, %v500, 0
      %v561 = vsel %vm544, %v501, 0
      %v564 = vsel %vm544, %v502, 0
      %v567 = vsel %vm544, %v503, 0
      %v570 = vsel %vm544, %v504, 0
      %v573 = vsel %vm544, %v505, 0
      %v576 = vsel %vm544, %v506, 0
      %v579 = vsel %vm544, %v507, 0
      %v582 = vsel %vm544, %v508, 0
      %v585 = vsel %vm544, %v509, 0
      %v588 = vsel %vm544, %v510, 0
      %v591 = vsel %vm544, %v511, 0
      %v594 = vsel %vm544, %v528, 0
      %v597 = vsel %vm544, %v529, 0
      %v600 = vsel %vm544, %v530, 0
      %v603 = vsel %vm544, %v531, 0
      %v606 = vsel %vm544, %v532, 0
      %v609 = vsel %vm544, %v533, 0
      %v612 = vsel %vm544, %v534, 0
      %v615 = vsel %vm544, %v535, 0
      %v618 = vsel %vm544, %v536, 0
      %v621 = vsel %vm544, %v537, 0
      %v624 = vsel %vm544, %v538, 0
      %v627 = vsel %vm544, %v539, 0
      %v630 = vsel %vm544, %v540, 0
      %v633 = vsel %vm544, %v541, 0
      %v636 = vsel %vm544, %v542, 0
      %v639 = vsel %vm544, %v543, 0
      %641 = vmatpush.msra.mxu0 0.0
      %642 = vmatpush.msra.mxu0 0.0
      %643 = vmatpush.msra.mxu0 0.0
      %644 = vmatpush.msra.mxu0 0.0
      %645 = vmatpush.msra.mxu0 0.0
      %646 = vmatpush.msra.mxu0 0.0
      %647 = vmatpush.msra.mxu0 0.0
      %648 = vmatpush.msra.mxu0 0.0
      %649 = vmatpush.msra.mxu0 0.0
      %650 = vmatpush.msra.mxu0 0.0
      %651 = vmatpush.msra.mxu0 0.0
      %652 = vmatpush.msra.mxu0 0.0
      %653 = vmatpush.msra.mxu0 %v479
      %654 = vmatpush.msra.mxu0 %v478
      %655 = vmatpush.msra.mxu0 %v477
      %656 = vmatpush.msra.mxu0 %v476
      %657 = vmatmul.f32.gmra.mxu0 %v546
      %v658 = vpop.f32.mrf.mxu0
      %v659 = vadd.f32 0.0, %v658
      %660 = vmatmul.f32.gmra.mxu0 %v549
      %v661 = vpop.f32.mrf.mxu0
      %v662 = vadd.f32 0.0, %v661
      %663 = vmatmul.f32.gmra.mxu0 %v552
      %v664 = vpop.f32.mrf.mxu0
      %v665 = vadd.f32 0.0, %v664
      %666 = vmatmul.f32.gmra.mxu0 %v555
      %v667 = vpop.f32.mrf.mxu0
      %v668 = vadd.f32 0.0, %v667
      %669 = vmatmul.f32.gmra.mxu0 %v558
      %v670 = vpop.f32.mrf.mxu0
      %v671 = vadd.f32 0.0, %v670
      %672 = vmatmul.f32.gmra.mxu0 %v561
      %v673 = vpop.f32.mrf.mxu0
      %v674 = vadd.f32 0.0, %v673
      %675 = vmatmul.f32.gmra.mxu0 %v564
      %v676 = vpop.f32.mrf.mxu0
      %v677 = vadd.f32 0.0, %v676
      %678 = vmatmul.f32.gmra.mxu0 %v567
      %v679 = vpop.f32.mrf.mxu0
      %v680 = vadd.f32 0.0, %v679
      %681 = vmatmul.f32.gmra.mxu0 %v570
      %v682 = vpop.f32.mrf.mxu0
      %v683 = vadd.f32 0.0, %v682
      %684 = vmatmul.f32.gmra.mxu0 %v573
      %v685 = vpop.f32.mrf.mxu0
      %v686 = vadd.f32 0.0, %v685
      %687 = vmatmul.f32.gmra.mxu0 %v576
      %v688 = vpop.f32.mrf.mxu0
      %v689 = vadd.f32 0.0, %v688
      %690 = vmatmul.f32.gmra.mxu0 %v579
      %v691 = vpop.f32.mrf.mxu0
      %v692 = vadd.f32 0.0, %v691
      %693 = vmatmul.f32.gmra.mxu0 %v582
      %v694 = vpop.f32.mrf.mxu0
      %v695 = vadd.f32 0.0, %v694
      %696 = vmatmul.f32.gmra.mxu0 %v585
      %v697 = vpop.f32.mrf.mxu0
      %v698 = vadd.f32 0.0, %v697
      %699 = vmatmul.f32.gmra.mxu0 %v588
      %v700 = vpop.f32.mrf.mxu0
      %v701 = vadd.f32 0.0, %v700
      %702 = vmatmul.f32.gmra.mxu0 %v591
      %v703 = vpop.f32.mrf.mxu0
      %v704 = vadd.f32 0.0, %v703
      %705 = vmatmul.f32.gmra.mxu0 %v594
      %v706 = vpop.f32.mrf.mxu0
      %v707 = vadd.f32 0.0, %v706
      %708 = vmatmul.f32.gmra.mxu0 %v597
      %v709 = vpop.f32.mrf.mxu0
      %v710 = vadd.f32 0.0, %v709
      %711 = vmatmul.f32.gmra.mxu0 %v600
      %v712 = vpop.f32.mrf.mxu0
      %v713 = vadd.f32 0.0, %v712
      %714 = vmatmul.f32.gmra.mxu0 %v603
      %v715 = vpop.f32.mrf.mxu0
      %v716 = vadd.f32 0.0, %v715
      %717 = vmatmul.f32.gmra.mxu0 %v606
      %v718 = vpop.f32.mrf.mxu0
      %v719 = vadd.f32 0.0, %v718
      %720 = vmatmul.f32.gmra.mxu0 %v609
      %v721 = vpop.f32.mrf.mxu0
      %v722 = vadd.f32 0.0, %v721
      %723 = vmatmul.f32.gmra.mxu0 %v612
      %v724 = vpop.f32.mrf.mxu0
      %v725 = vadd.f32 0.0, %v724
      %726 = vmatmul.f32.gmra.mxu0 %v615
      %v727 = vpop.f32.mrf.mxu0
      %v728 = vadd.f32 0.0, %v727
      %729 = vmatmul.f32.gmra.mxu0 %v618
      %v730 = vpop.f32.mrf.mxu0
      %v731 = vadd.f32 0.0, %v730
      %732 = vmatmul.f32.gmra.mxu0 %v621
      %v733 = vpop.f32.mrf.mxu0
      %v734 = vadd.f32 0.0, %v733
      %735 = vmatmul.f32.gmra.mxu0 %v624
      %v736 = vpop.f32.mrf.mxu0
      %v737 = vadd.f32 0.0, %v736
      %738 = vmatmul.f32.gmra.mxu0 %v627
      %v739 = vpop.f32.mrf.mxu0
      %v740 = vadd.f32 0.0, %v739
      %741 = vmatmul.f32.gmra.mxu0 %v630
      %v742 = vpop.f32.mrf.mxu0
      %v743 = vadd.f32 0.0, %v742
      %744 = vmatmul.f32.gmra.mxu0 %v633
      %v745 = vpop.f32.mrf.mxu0
      %v746 = vadd.f32 0.0, %v745
      %747 = vmatmul.f32.gmra.mxu0 %v636
      %v748 = vpop.f32.mrf.mxu0
      %v749 = vadd.f32 0.0, %v748
      %750 = vmatmul.f32.gmra.mxu0 %v639
      %v751 = vpop.f32.mrf.mxu0
      %v752 = vadd.f32 0.0, %v751
      %753 = vdwg.mxu0
      %v754 = vld [vmem:[%s2] sm:$0x1]
      %v756 = vperm.slane %v754, 0
      %v758 = vmul.f32 %v659, %v756
      %v759 = vmul.f32 %v662, %v756
      %v760 = vmul.f32 %v665, %v756
      %v761 = vmul.f32 %v668, %v756
      %v762 = vmul.f32 %v671, %v756
      %v763 = vmul.f32 %v674, %v756
      %v764 = vmul.f32 %v677, %v756
      %v765 = vmul.f32 %v680, %v756
      %v766 = vmul.f32 %v683, %v756
      %v767 = vmul.f32 %v686, %v756
      %v768 = vmul.f32 %v689, %v756
      %v769 = vmul.f32 %v692, %v756
      %v770 = vmul.f32 %v695, %v756
      %v771 = vmul.f32 %v698, %v756
      %v772 = vmul.f32 %v701, %v756
      %v773 = vmul.f32 %v704, %v756
      %v774 = vmul.f32 %v707, %v756
      %v775 = vmul.f32 %v710, %v756
      %v776 = vmul.f32 %v713, %v756
      %v777 = vmul.f32 %v716, %v756
      %v778 = vmul.f32 %v719, %v756
      %v779 = vmul.f32 %v722, %v756
      %v780 = vmul.f32 %v725, %v756
      %v781 = vmul.f32 %v728, %v756
      %v782 = vmul.f32 %v731, %v756
      %v783 = vmul.f32 %v734, %v756
      %v784 = vmul.f32 %v737, %v756
      %v785 = vmul.f32 %v740, %v756
      %v786 = vmul.f32 %v743, %v756
      %v787 = vmul.f32 %v746, %v756
      %v788 = vmul.f32 %v749, %v756
      %v789 = vmul.f32 %v752, %v756
      %v790 = vld [vmem:[%s3] sm:$0x1]
      %v792 = vperm.slane %v790, 0
      %v794 = vadd.f32 %v758, %v792
      %v795 = vadd.f32 %v759, %v792
      %v796 = vadd.f32 %v760, %v792
      %v797 = vadd.f32 %v761, %v792
      %v798 = vadd.f32 %v762, %v792
      %v799 = vadd.f32 %v763, %v792
      %v800 = vadd.f32 %v764, %v792
      %v801 = vadd.f32 %v765, %v792
      %v802 = vadd.f32 %v766, %v792
      %v803 = vadd.f32 %v767, %v792
      %v804 = vadd.f32 %v768, %v792
      %v805 = vadd.f32 %v769, %v792
      %v806 = vadd.f32 %v770, %v792
      %v807 = vadd.f32 %v771, %v792
      %v808 = vadd.f32 %v772, %v792
      %v809 = vadd.f32 %v773, %v792
      %v810 = vadd.f32 %v774, %v792
      %v811 = vadd.f32 %v775, %v792
      %v812 = vadd.f32 %v776, %v792
      %v813 = vadd.f32 %v777, %v792
      %v814 = vadd.f32 %v778, %v792
      %v815 = vadd.f32 %v779, %v792
      %v816 = vadd.f32 %v780, %v792
      %v817 = vadd.f32 %v781, %v792
      %v818 = vadd.f32 %v782, %v792
      %v819 = vadd.f32 %v783, %v792
      %v820 = vadd.f32 %v784, %v792
      %v821 = vadd.f32 %v785, %v792
      %v822 = vadd.f32 %v786, %v792
      %v823 = vadd.f32 %v787, %v792
      %v824 = vadd.f32 %v788, %v792
      %v825 = vadd.f32 %v789, %v792
      %v826 = vxor.u32 %v794, 2147483648
      %v827 = vxor.u32 %v795, 2147483648
      %v828 = vxor.u32 %v796, 2147483648
      %v829 = vxor.u32 %v797, 2147483648
      %v830 = vxor.u32 %v798, 2147483648
      %v831 = vxor.u32 %v799, 2147483648
      %v832 = vxor.u32 %v800, 2147483648
      %v833 = vxor.u32 %v801, 2147483648
      %v834 = vxor.u32 %v802, 2147483648
      %v835 = vxor.u32 %v803, 2147483648
      %v836 = vxor.u32 %v804, 2147483648
      %v837 = vxor.u32 %v805, 2147483648
      %v838 = vxor.u32 %v806, 2147483648
      %v839 = vxor.u32 %v807, 2147483648
      %v840 = vxor.u32 %v808, 2147483648
      %v841 = vxor.u32 %v809, 2147483648
      %v842 = vxor.u32 %v810, 2147483648
      %v843 = vxor.u32 %v811, 2147483648
      %v844 = vxor.u32 %v812, 2147483648
      %v845 = vxor.u32 %v813, 2147483648
      %v846 = vxor.u32 %v814, 2147483648
      %v847 = vxor.u32 %v815, 2147483648
      %v848 = vxor.u32 %v816, 2147483648
      %v849 = vxor.u32 %v817, 2147483648
      %v850 = vxor.u32 %v818, 2147483648
      %v851 = vxor.u32 %v819, 2147483648
      %v852 = vxor.u32 %v820, 2147483648
      %v853 = vxor.u32 %v821, 2147483648
      %v854 = vxor.u32 %v822, 2147483648
      %v855 = vxor.u32 %v823, 2147483648
      %v856 = vxor.u32 %v824, 2147483648
      %v857 = vxor.u32 %v825, 2147483648
      %v858 = vmul.f32 %v826, 1.442695
      %v859 = vpow.pop %v858
      %v860 = vmul.f32 %v827, 1.442695
      %v861 = vpow.pop %v860
      %v862 = vmul.f32 %v828, 1.442695
      %v863 = vpow.pop %v862
      %v864 = vmul.f32 %v829, 1.442695
      %v865 = vpow.pop %v864
      %v866 = vmul.f32 %v830, 1.442695
      %v867 = vpow.pop %v866
      %v868 = vmul.f32 %v831, 1.442695
      %v869 = vpow.pop %v868
      %v870 = vmul.f32 %v832, 1.442695
      %v871 = vpow.pop %v870
      %v872 = vmul.f32 %v833, 1.442695
      %v873 = vpow.pop %v872
      %v874 = vmul.f32 %v834, 1.442695
      %v875 = vpow.pop %v874
      %v876 = vmul.f32 %v835, 1.442695
      %v877 = vpow.pop %v876
      %v878 = vmul.f32 %v836, 1.442695
      %v879 = vpow.pop %v878
      %v880 = vmul.f32 %v837, 1.442695
      %v881 = vpow.pop %v880
      %v882 = vmul.f32 %v838, 1.442695
      %v883 = vpow.pop %v882
      %v884 = vmul.f32 %v839, 1.442695
      %v885 = vpow.pop %v884
      %v886 = vmul.f32 %v840, 1.442695
      %v887 = vpow.pop %v886
      %v888 = vmul.f32 %v841, 1.442695
      %v889 = vpow.pop %v888
      %v890 = vmul.f32 %v842, 1.442695
      %v891 = vpow.pop %v890
      %v892 = vmul.f32 %v843, 1.442695
      %v893 = vpow.pop %v892
      %v894 = vmul.f32 %v844, 1.442695
      %v895 = vpow.pop %v894
      %v896 = vmul.f32 %v845, 1.442695
      %v897 = vpow.pop %v896
      %v898 = vmul.f32 %v846, 1.442695
      %v899 = vpow.pop %v898
      %v900 = vmul.f32 %v847, 1.442695
      %v901 = vpow.pop %v900
      %v902 = vmul.f32 %v848, 1.442695
      %v903 = vpow.pop %v902
      %v904 = vmul.f32 %v849, 1.442695
      %v905 = vpow.pop %v904
      %v906 = vmul.f32 %v850, 1.442695
      %v907 = vpow.pop %v906
      %v908 = vmul.f32 %v851, 1.442695
      %v909 = vpow.pop %v908
      %v910 = vmul.f32 %v852, 1.442695
      %v911 = vpow.pop %v910
      %v912 = vmul.f32 %v853, 1.442695
      %v913 = vpow.pop %v912
      %v914 = vmul.f32 %v854, 1.442695
      %v915 = vpow.pop %v914
      %v916 = vmul.f32 %v855, 1.442695
      %v917 = vpow.pop %v916
      %v918 = vmul.f32 %v856, 1.442695
      %v919 = vpow.pop %v918
      %v920 = vmul.f32 %v857, 1.442695
      %v921 = vpow.pop %v920
      %v922 = vadd.f32 %v859, 1.0
      %v923 = vadd.f32 %v861, 1.0
      %v924 = vadd.f32 %v863, 1.0
      %v925 = vadd.f32 %v865, 1.0
      %v926 = vadd.f32 %v867, 1.0
      %v927 = vadd.f32 %v869, 1.0
      %v928 = vadd.f32 %v871, 1.0
      %v929 = vadd.f32 %v873, 1.0
      %v930 = vadd.f32 %v875, 1.0
      %v931 = vadd.f32 %v877, 1.0
      %v932 = vadd.f32 %v879, 1.0
      %v933 = vadd.f32 %v881, 1.0
      %v934 = vadd.f32 %v883, 1.0
      %v935 = vadd.f32 %v885, 1.0
      %v936 = vadd.f32 %v887, 1.0
      %v937 = vadd.f32 %v889, 1.0
      %v938 = vadd.f32 %v891, 1.0
      %v939 = vadd.f32 %v893, 1.0
      %v940 = vadd.f32 %v895, 1.0
      %v941 = vadd.f32 %v897, 1.0
      %v942 = vadd.f32 %v899, 1.0
      %v943 = vadd.f32 %v901, 1.0
      %v944 = vadd.f32 %v903, 1.0
      %v945 = vadd.f32 %v905, 1.0
      %v946 = vadd.f32 %v907, 1.0
      %v947 = vadd.f32 %v909, 1.0
      %v948 = vadd.f32 %v911, 1.0
      %v949 = vadd.f32 %v913, 1.0
      %v950 = vadd.f32 %v915, 1.0
      %v951 = vadd.f32 %v917, 1.0
      %v952 = vadd.f32 %v919, 1.0
      %v953 = vadd.f32 %v921, 1.0
      %v954 = vrcp.pop %v922
      %v955 = vmul.f32 %v922, %v954
      %v956 = vsub.f32 1.0, %v955
      %v957 = vmul.f32 %v954, %v956
      %v958 = vadd.f32 %v954, %v957
      %vm959 = vweird.f32 %v922
      %vm960 = vweird.f32 %v954
      %vm961 = vmor %vm959, %vm960
      %v962 = vsel %vm961, %v954, %v958
      %v963 = vand.u32 2147483647, %v922
      %vm964 = vcmp.eq.f32.partialorder %v963, 8.507059e+37
      %v965 = vand.u32 %v922, 2147483648
      %v966 = vor.u32 1.1754944e-38, %v965
      %v967 = vsel %vm964, %v966, %v962
      %v968 = vmul.f32 1.0, %v967
      %v969 = vrcp.pop %v923
      %v970 = vmul.f32 %v923, %v969
      %v971 = vsub.f32 1.0, %v970
      %v972 = vmul.f32 %v969, %v971
      %v973 = vadd.f32 %v969, %v972
      %vm974 = vweird.f32 %v923
      %vm975 = vweird.f32 %v969
      %vm976 = vmor %vm974, %vm975
      %v977 = vsel %vm976, %v969, %v973
      %v978 = vand.u32 2147483647, %v923
      %vm979 = vcmp.eq.f32.partialorder %v978, 8.507059e+37
      %v980 = vand.u32 %v923, 2147483648
      %v981 = vor.u32 1.1754944e-38, %v980
      %v982 = vsel %vm979, %v981, %v977
      %v983 = vmul.f32 1.0, %v982
      %v984 = vrcp.pop %v924
      %v985 = vmul.f32 %v924, %v984
      %v986 = vsub.f32 1.0, %v985
      %v987 = vmul.f32 %v984, %v986
      %v988 = vadd.f32 %v984, %v987
      %vm989 = vweird.f32 %v924
      %vm990 = vweird.f32 %v984
      %vm991 = vmor %vm989, %vm990
      %v992 = vsel %vm991, %v984, %v988
      %v993 = vand.u32 2147483647, %v924
      %vm994 = vcmp.eq.f32.partialorder %v993, 8.507059e+37
      %v995 = vand.u32 %v924, 2147483648
      %v996 = vor.u32 1.1754944e-38, %v995
      %v997 = vsel %vm994, %v996, %v992
      %v998 = vmul.f32 1.0, %v997
      %v999 = vrcp.pop %v925
      %v1000 = vmul.f32 %v925, %v999
      %v1001 = vsub.f32 1.0, %v1000
      %v1002 = vmul.f32 %v999, %v1001
      %v1003 = vadd.f32 %v999, %v1002
      %vm1004 = vweird.f32 %v925
      %vm1005 = vweird.f32 %v999
      %vm1006 = vmor %vm1004, %vm1005
      %v1007 = vsel %vm1006, %v999, %v1003
      %v1008 = vand.u32 2147483647, %v925
      %vm1009 = vcmp.eq.f32.partialorder %v1008, 8.507059e+37
      %v1010 = vand.u32 %v925, 2147483648
      %v1011 = vor.u32 1.1754944e-38, %v1010
      %v1012 = vsel %vm1009, %v1011, %v1007
      %v1013 = vmul.f32 1.0, %v1012
      %v1014 = vrcp.pop %v926
      %v1015 = vmul.f32 %v926, %v1014
      %v1016 = vsub.f32 1.0, %v1015
      %v1017 = vmul.f32 %v1014, %v1016
      %v1018 = vadd.f32 %v1014, %v1017
      %vm1019 = vweird.f32 %v926
      %vm1020 = vweird.f32 %v1014
      %vm1021 = vmor %vm1019, %vm1020
      %v1022 = vsel %vm1021, %v1014, %v1018
      %v1023 = vand.u32 2147483647, %v926
      %vm1024 = vcmp.eq.f32.partialorder %v1023, 8.507059e+37
      %v1025 = vand.u32 %v926, 2147483648
      %v1026 = vor.u32 1.1754944e-38, %v1025
      %v1027 = vsel %vm1024, %v1026, %v1022
      %v1028 = vmul.f32 1.0, %v1027
      %v1029 = vrcp.pop %v927
      %v1030 = vmul.f32 %v927, %v1029
      %v1031 = vsub.f32 1.0, %v1030
      %v1032 = vmul.f32 %v1029, %v1031
      %v1033 = vadd.f32 %v1029, %v1032
      %vm1034 = vweird.f32 %v927
      %vm1035 = vweird.f32 %v1029
      %vm1036 = vmor %vm1034, %vm1035
      %v1037 = vsel %vm1036, %v1029, %v1033
      %v1038 = vand.u32 2147483647, %v927
      %vm1039 = vcmp.eq.f32.partialorder %v1038, 8.507059e+37
      %v1040 = vand.u32 %v927, 2147483648
      %v1041 = vor.u32 1.1754944e-38, %v1040
      %v1042 = vsel %vm1039, %v1041, %v1037
      %v1043 = vmul.f32 1.0, %v1042
      %v1044 = vrcp.pop %v928
      %v1045 = vmul.f32 %v928, %v1044
      %v1046 = vsub.f32 1.0, %v1045
      %v1047 = vmul.f32 %v1044, %v1046
      %v1048 = vadd.f32 %v1044, %v1047
      %vm1049 = vweird.f32 %v928
      %vm1050 = vweird.f32 %v1044
      %vm1051 = vmor %vm1049, %vm1050
      %v1052 = vsel %vm1051, %v1044, %v1048
      %v1053 = vand.u32 2147483647, %v928
      %vm1054 = vcmp.eq.f32.partialorder %v1053, 8.507059e+37
      %v1055 = vand.u32 %v928, 2147483648
      %v1056 = vor.u32 1.1754944e-38, %v1055
      %v1057 = vsel %vm1054, %v1056, %v1052
      %v1058 = vmul.f32 1.0, %v1057
      %v1059 = vrcp.pop %v929
      %v1060 = vmul.f32 %v929, %v1059
      %v1061 = vsub.f32 1.0, %v1060
      %v1062 = vmul.f32 %v1059, %v1061
      %v1063 = vadd.f32 %v1059, %v1062
      %vm1064 = vweird.f32 %v929
      %vm1065 = vweird.f32 %v1059
      %vm1066 = vmor %vm1064, %vm1065
      %v1067 = vsel %vm1066, %v1059, %v1063
      %v1068 = vand.u32 2147483647, %v929
      %vm1069 = vcmp.eq.f32.partialorder %v1068, 8.507059e+37
      %v1070 = vand.u32 %v929, 2147483648
      %v1071 = vor.u32 1.1754944e-38, %v1070
      %v1072 = vsel %vm1069, %v1071, %v1067
      %v1073 = vmul.f32 1.0, %v1072
      %v1074 = vrcp.pop %v930
      %v1075 = vmul.f32 %v930, %v1074
      %v1076 = vsub.f32 1.0, %v1075
      %v1077 = vmul.f32 %v1074, %v1076
      %v1078 = vadd.f32 %v1074, %v1077
      %vm1079 = vweird.f32 %v930
      %vm1080 = vweird.f32 %v1074
      %vm1081 = vmor %vm1079, %vm1080
      %v1082 = vsel %vm1081, %v1074, %v1078
      %v1083 = vand.u32 2147483647, %v930
      %vm1084 = vcmp.eq.f32.partialorder %v1083, 8.507059e+37
      %v1085 = vand.u32 %v930, 2147483648
      %v1086 = vor.u32 1.1754944e-38, %v1085
      %v1087 = vsel %vm1084, %v1086, %v1082
      %v1088 = vmul.f32 1.0, %v1087
      %v1089 = vrcp.pop %v931
      %v1090 = vmul.f32 %v931, %v1089
      %v1091 = vsub.f32 1.0, %v1090
      %v1092 = vmul.f32 %v1089, %v1091
      %v1093 = vadd.f32 %v1089, %v1092
      %vm1094 = vweird.f32 %v931
      %vm1095 = vweird.f32 %v1089
      %vm1096 = vmor %vm1094, %vm1095
      %v1097 = vsel %vm1096, %v1089, %v1093
      %v1098 = vand.u32 2147483647, %v931
      %vm1099 = vcmp.eq.f32.partialorder %v1098, 8.507059e+37
      %v1100 = vand.u32 %v931, 2147483648
      %v1101 = vor.u32 1.1754944e-38, %v1100
      %v1102 = vsel %vm1099, %v1101, %v1097
      %v1103 = vmul.f32 1.0, %v1102
      %v1104 = vrcp.pop %v932
      %v1105 = vmul.f32 %v932, %v1104
      %v1106 = vsub.f32 1.0, %v1105
      %v1107 = vmul.f32 %v1104, %v1106
      %v1108 = vadd.f32 %v1104, %v1107
      %vm1109 = vweird.f32 %v932
      %vm1110 = vweird.f32 %v1104
      %vm1111 = vmor %vm1109, %vm1110
      %v1112 = vsel %vm1111, %v1104, %v1108
      %v1113 = vand.u32 2147483647, %v932
      %vm1114 = vcmp.eq.f32.partialorder %v1113, 8.507059e+37
      %v1115 = vand.u32 %v932, 2147483648
      %v1116 = vor.u32 1.1754944e-38, %v1115
      %v1117 = vsel %vm1114, %v1116, %v1112
      %v1118 = vmul.f32 1.0, %v1117
      %v1119 = vrcp.pop %v933
      %v1120 = vmul.f32 %v933, %v1119
      %v1121 = vsub.f32 1.0, %v1120
      %v1122 = vmul.f32 %v1119, %v1121
      %v1123 = vadd.f32 %v1119, %v1122
      %vm1124 = vweird.f32 %v933
      %vm1125 = vweird.f32 %v1119
      %vm1126 = vmor %vm1124, %vm1125
      %v1127 = vsel %vm1126, %v1119, %v1123
      %v1128 = vand.u32 2147483647, %v933
      %vm1129 = vcmp.eq.f32.partialorder %v1128, 8.507059e+37
      %v1130 = vand.u32 %v933, 2147483648
      %v1131 = vor.u32 1.1754944e-38, %v1130
      %v1132 = vsel %vm1129, %v1131, %v1127
      %v1133 = vmul.f32 1.0, %v1132
      %v1134 = vrcp.pop %v934
      %v1135 = vmul.f32 %v934, %v1134
      %v1136 = vsub.f32 1.0, %v1135
      %v1137 = vmul.f32 %v1134, %v1136
      %v1138 = vadd.f32 %v1134, %v1137
      %vm1139 = vweird.f32 %v934
      %vm1140 = vweird.f32 %v1134
      %vm1141 = vmor %vm1139, %vm1140
      %v1142 = vsel %vm1141, %v1134, %v1138
      %v1143 = vand.u32 2147483647, %v934
      %vm1144 = vcmp.eq.f32.partialorder %v1143, 8.507059e+37
      %v1145 = vand.u32 %v934, 2147483648
      %v1146 = vor.u32 1.1754944e-38, %v1145
      %v1147 = vsel %vm1144, %v1146, %v1142
      %v1148 = vmul.f32 1.0, %v1147
      %v1149 = vrcp.pop %v935
      %v1150 = vmul.f32 %v935, %v1149
      %v1151 = vsub.f32 1.0, %v1150
      %v1152 = vmul.f32 %v1149, %v1151
      %v1153 = vadd.f32 %v1149, %v1152
      %vm1154 = vweird.f32 %v935
      %vm1155 = vweird.f32 %v1149
      %vm1156 = vmor %vm1154, %vm1155
      %v1157 = vsel %vm1156, %v1149, %v1153
      %v1158 = vand.u32 2147483647, %v935
      %vm1159 = vcmp.eq.f32.partialorder %v1158, 8.507059e+37
      %v1160 = vand.u32 %v935, 2147483648
      %v1161 = vor.u32 1.1754944e-38, %v1160
      %v1162 = vsel %vm1159, %v1161, %v1157
      %v1163 = vmul.f32 1.0, %v1162
      %v1164 = vrcp.pop %v936
      %v1165 = vmul.f32 %v936, %v1164
      %v1166 = vsub.f32 1.0, %v1165
      %v1167 = vmul.f32 %v1164, %v1166
      %v1168 = vadd.f32 %v1164, %v1167
      %vm1169 = vweird.f32 %v936
      %vm1170 = vweird.f32 %v1164
      %vm1171 = vmor %vm1169, %vm1170
      %v1172 = vsel %vm1171, %v1164, %v1168
      %v1173 = vand.u32 2147483647, %v936
      %vm1174 = vcmp.eq.f32.partialorder %v1173, 8.507059e+37
      %v1175 = vand.u32 %v936, 2147483648
      %v1176 = vor.u32 1.1754944e-38, %v1175
      %v1177 = vsel %vm1174, %v1176, %v1172
      %v1178 = vmul.f32 1.0, %v1177
      %v1179 = vrcp.pop %v937
      %v1180 = vmul.f32 %v937, %v1179
      %v1181 = vsub.f32 1.0, %v1180
      %v1182 = vmul.f32 %v1179, %v1181
      %v1183 = vadd.f32 %v1179, %v1182
      %vm1184 = vweird.f32 %v937
      %vm1185 = vweird.f32 %v1179
      %vm1186 = vmor %vm1184, %vm1185
      %v1187 = vsel %vm1186, %v1179, %v1183
      %v1188 = vand.u32 2147483647, %v937
      %vm1189 = vcmp.eq.f32.partialorder %v1188, 8.507059e+37
      %v1190 = vand.u32 %v937, 2147483648
      %v1191 = vor.u32 1.1754944e-38, %v1190
      %v1192 = vsel %vm1189, %v1191, %v1187
      %v1193 = vmul.f32 1.0, %v1192
      %v1194 = vrcp.pop %v938
      %v1195 = vmul.f32 %v938, %v1194
      %v1196 = vsub.f32 1.0, %v1195
      %v1197 = vmul.f32 %v1194, %v1196
      %v1198 = vadd.f32 %v1194, %v1197
      %vm1199 = vweird.f32 %v938
      %vm1200 = vweird.f32 %v1194
      %vm1201 = vmor %vm1199, %vm1200
      %v1202 = vsel %vm1201, %v1194, %v1198
      %v1203 = vand.u32 2147483647, %v938
      %vm1204 = vcmp.eq.f32.partialorder %v1203, 8.507059e+37
      %v1205 = vand.u32 %v938, 2147483648
      %v1206 = vor.u32 1.1754944e-38, %v1205
      %v1207 = vsel %vm1204, %v1206, %v1202
      %v1208 = vmul.f32 1.0, %v1207
      %v1209 = vrcp.pop %v939
      %v1210 = vmul.f32 %v939, %v1209
      %v1211 = vsub.f32 1.0, %v1210
      %v1212 = vmul.f32 %v1209, %v1211
      %v1213 = vadd.f32 %v1209, %v1212
      %vm1214 = vweird.f32 %v939
      %vm1215 = vweird.f32 %v1209
      %vm1216 = vmor %vm1214, %vm1215
      %v1217 = vsel %vm1216, %v1209, %v1213
      %v1218 = vand.u32 2147483647, %v939
      %vm1219 = vcmp.eq.f32.partialorder %v1218, 8.507059e+37
      %v1220 = vand.u32 %v939, 2147483648
      %v1221 = vor.u32 1.1754944e-38, %v1220
      %v1222 = vsel %vm1219, %v1221, %v1217
      %v1223 = vmul.f32 1.0, %v1222
      %v1224 = vrcp.pop %v940
      %v1225 = vmul.f32 %v940, %v1224
      %v1226 = vsub.f32 1.0, %v1225
      %v1227 = vmul.f32 %v1224, %v1226
      %v1228 = vadd.f32 %v1224, %v1227
      %vm1229 = vweird.f32 %v940
      %vm1230 = vweird.f32 %v1224
      %vm1231 = vmor %vm1229, %vm1230
      %v1232 = vsel %vm1231, %v1224, %v1228
      %v1233 = vand.u32 2147483647, %v940
      %vm1234 = vcmp.eq.f32.partialorder %v1233, 8.507059e+37
      %v1235 = vand.u32 %v940, 2147483648
      %v1236 = vor.u32 1.1754944e-38, %v1235
      %v1237 = vsel %vm1234, %v1236, %v1232
      %v1238 = vmul.f32 1.0, %v1237
      %v1239 = vrcp.pop %v941
      %v1240 = vmul.f32 %v941, %v1239
      %v1241 = vsub.f32 1.0, %v1240
      %v1242 = vmul.f32 %v1239, %v1241
      %v1243 = vadd.f32 %v1239, %v1242
      %vm1244 = vweird.f32 %v941
      %vm1245 = vweird.f32 %v1239
      %vm1246 = vmor %vm1244, %vm1245
      %v1247 = vsel %vm1246, %v1239, %v1243
      %v1248 = vand.u32 2147483647, %v941
      %vm1249 = vcmp.eq.f32.partialorder %v1248, 8.507059e+37
      %v1250 = vand.u32 %v941, 2147483648
      %v1251 = vor.u32 1.1754944e-38, %v1250
      %v1252 = vsel %vm1249, %v1251, %v1247
      %v1253 = vmul.f32 1.0, %v1252
      %v1254 = vrcp.pop %v942
      %v1255 = vmul.f32 %v942, %v1254
      %v1256 = vsub.f32 1.0, %v1255
      %v1257 = vmul.f32 %v1254, %v1256
      %v1258 = vadd.f32 %v1254, %v1257
      %vm1259 = vweird.f32 %v942
      %vm1260 = vweird.f32 %v1254
      %vm1261 = vmor %vm1259, %vm1260
      %v1262 = vsel %vm1261, %v1254, %v1258
      %v1263 = vand.u32 2147483647, %v942
      %vm1264 = vcmp.eq.f32.partialorder %v1263, 8.507059e+37
      %v1265 = vand.u32 %v942, 2147483648
      %v1266 = vor.u32 1.1754944e-38, %v1265
      %v1267 = vsel %vm1264, %v1266, %v1262
      %v1268 = vmul.f32 1.0, %v1267
      %v1269 = vrcp.pop %v943
      %v1270 = vmul.f32 %v943, %v1269
      %v1271 = vsub.f32 1.0, %v1270
      %v1272 = vmul.f32 %v1269, %v1271
      %v1273 = vadd.f32 %v1269, %v1272
      %vm1274 = vweird.f32 %v943
      %vm1275 = vweird.f32 %v1269
      %vm1276 = vmor %vm1274, %vm1275
      %v1277 = vsel %vm1276, %v1269, %v1273
      %v1278 = vand.u32 2147483647, %v943
      %vm1279 = vcmp.eq.f32.partialorder %v1278, 8.507059e+37
      %v1280 = vand.u32 %v943, 2147483648
      %v1281 = vor.u32 1.1754944e-38, %v1280
      %v1282 = vsel %vm1279, %v1281, %v1277
      %v1283 = vmul.f32 1.0, %v1282
      %v1284 = vrcp.pop %v944
      %v1285 = vmul.f32 %v944, %v1284
      %v1286 = vsub.f32 1.0, %v1285
      %v1287 = vmul.f32 %v1284, %v1286
      %v1288 = vadd.f32 %v1284, %v1287
      %vm1289 = vweird.f32 %v944
      %vm1290 = vweird.f32 %v1284
      %vm1291 = vmor %vm1289, %vm1290
      %v1292 = vsel %vm1291, %v1284, %v1288
      %v1293 = vand.u32 2147483647, %v944
      %vm1294 = vcmp.eq.f32.partialorder %v1293, 8.507059e+37
      %v1295 = vand.u32 %v944, 2147483648
      %v1296 = vor.u32 1.1754944e-38, %v1295
      %v1297 = vsel %vm1294, %v1296, %v1292
      %v1298 = vmul.f32 1.0, %v1297
      %v1299 = vrcp.pop %v945
      %v1300 = vmul.f32 %v945, %v1299
      %v1301 = vsub.f32 1.0, %v1300
      %v1302 = vmul.f32 %v1299, %v1301
      %v1303 = vadd.f32 %v1299, %v1302
      %vm1304 = vweird.f32 %v945
      %vm1305 = vweird.f32 %v1299
      %vm1306 = vmor %vm1304, %vm1305
      %v1307 = vsel %vm1306, %v1299, %v1303
      %v1308 = vand.u32 2147483647, %v945
      %vm1309 = vcmp.eq.f32.partialorder %v1308, 8.507059e+37
      %v1310 = vand.u32 %v945, 2147483648
      %v1311 = vor.u32 1.1754944e-38, %v1310
      %v1312 = vsel %vm1309, %v1311, %v1307
      %v1313 = vmul.f32 1.0, %v1312
      %v1314 = vrcp.pop %v946
      %v1315 = vmul.f32 %v946, %v1314
      %v1316 = vsub.f32 1.0, %v1315
      %v1317 = vmul.f32 %v1314, %v1316
      %v1318 = vadd.f32 %v1314, %v1317
      %vm1319 = vweird.f32 %v946
      %vm1320 = vweird.f32 %v1314
      %vm1321 = vmor %vm1319, %vm1320
      %v1322 = vsel %vm1321, %v1314, %v1318
      %v1323 = vand.u32 2147483647, %v946
      %vm1324 = vcmp.eq.f32.partialorder %v1323, 8.507059e+37
      %v1325 = vand.u32 %v946, 2147483648
      %v1326 = vor.u32 1.1754944e-38, %v1325
      %v1327 = vsel %vm1324, %v1326, %v1322
      %v1328 = vmul.f32 1.0, %v1327
      %v1329 = vrcp.pop %v947
      %v1330 = vmul.f32 %v947, %v1329
      %v1331 = vsub.f32 1.0, %v1330
      %v1332 = vmul.f32 %v1329, %v1331
      %v1333 = vadd.f32 %v1329, %v1332
      %vm1334 = vweird.f32 %v947
      %vm1335 = vweird.f32 %v1329
      %vm1336 = vmor %vm1334, %vm1335
      %v1337 = vsel %vm1336, %v1329, %v1333
      %v1338 = vand.u32 2147483647, %v947
      %vm1339 = vcmp.eq.f32.partialorder %v1338, 8.507059e+37
      %v1340 = vand.u32 %v947, 2147483648
      %v1341 = vor.u32 1.1754944e-38, %v1340
      %v1342 = vsel %vm1339, %v1341, %v1337
      %v1343 = vmul.f32 1.0, %v1342
      %v1344 = vrcp.pop %v948
      %v1345 = vmul.f32 %v948, %v1344
      %v1346 = vsub.f32 1.0, %v1345
      %v1347 = vmul.f32 %v1344, %v1346
      %v1348 = vadd.f32 %v1344, %v1347
      %vm1349 = vweird.f32 %v948
      %vm1350 = vweird.f32 %v1344
      %vm1351 = vmor %vm1349, %vm1350
      %v1352 = vsel %vm1351, %v1344, %v1348
      %v1353 = vand.u32 2147483647, %v948
      %vm1354 = vcmp.eq.f32.partialorder %v1353, 8.507059e+37
      %v1355 = vand.u32 %v948, 2147483648
      %v1356 = vor.u32 1.1754944e-38, %v1355
      %v1357 = vsel %vm1354, %v1356, %v1352
      %v1358 = vmul.f32 1.0, %v1357
      %v1359 = vrcp.pop %v949
      %v1360 = vmul.f32 %v949, %v1359
      %v1361 = vsub.f32 1.0, %v1360
      %v1362 = vmul.f32 %v1359, %v1361
      %v1363 = vadd.f32 %v1359, %v1362
      %vm1364 = vweird.f32 %v949
      %vm1365 = vweird.f32 %v1359
      %vm1366 = vmor %vm1364, %vm1365
      %v1367 = vsel %vm1366, %v1359, %v1363
      %v1368 = vand.u32 2147483647, %v949
      %vm1369 = vcmp.eq.f32.partialorder %v1368, 8.507059e+37
      %v1370 = vand.u32 %v949, 2147483648
      %v1371 = vor.u32 1.1754944e-38, %v1370
      %v1372 = vsel %vm1369, %v1371, %v1367
      %v1373 = vmul.f32 1.0, %v1372
      %v1374 = vrcp.pop %v950
      %v1375 = vmul.f32 %v950, %v1374
      %v1376 = vsub.f32 1.0, %v1375
      %v1377 = vmul.f32 %v1374, %v1376
      %v1378 = vadd.f32 %v1374, %v1377
      %vm1379 = vweird.f32 %v950
      %vm1380 = vweird.f32 %v1374
      %vm1381 = vmor %vm1379, %vm1380
      %v1382 = vsel %vm1381, %v1374, %v1378
      %v1383 = vand.u32 2147483647, %v950
      %vm1384 = vcmp.eq.f32.partialorder %v1383, 8.507059e+37
      %v1385 = vand.u32 %v950, 2147483648
      %v1386 = vor.u32 1.1754944e-38, %v1385
      %v1387 = vsel %vm1384, %v1386, %v1382
      %v1388 = vmul.f32 1.0, %v1387
      %v1389 = vrcp.pop %v951
      %v1390 = vmul.f32 %v951, %v1389
      %v1391 = vsub.f32 1.0, %v1390
      %v1392 = vmul.f32 %v1389, %v1391
      %v1393 = vadd.f32 %v1389, %v1392
      %vm1394 = vweird.f32 %v951
      %vm1395 = vweird.f32 %v1389
      %vm1396 = vmor %vm1394, %vm1395
      %v1397 = vsel %vm1396, %v1389, %v1393
      %v1398 = vand.u32 2147483647, %v951
      %vm1399 = vcmp.eq.f32.partialorder %v1398, 8.507059e+37
      %v1400 = vand.u32 %v951, 2147483648
      %v1401 = vor.u32 1.1754944e-38, %v1400
      %v1402 = vsel %vm1399, %v1401, %v1397
      %v1403 = vmul.f32 1.0, %v1402
      %v1404 = vrcp.pop %v952
      %v1405 = vmul.f32 %v952, %v1404
      %v1406 = vsub.f32 1.0, %v1405
      %v1407 = vmul.f32 %v1404, %v1406
      %v1408 = vadd.f32 %v1404, %v1407
      %vm1409 = vweird.f32 %v952
      %vm1410 = vweird.f32 %v1404
      %vm1411 = vmor %vm1409, %vm1410
      %v1412 = vsel %vm1411, %v1404, %v1408
      %v1413 = vand.u32 2147483647, %v952
      %vm1414 = vcmp.eq.f32.partialorder %v1413, 8.507059e+37
      %v1415 = vand.u32 %v952, 2147483648
      %v1416 = vor.u32 1.1754944e-38, %v1415
      %v1417 = vsel %vm1414, %v1416, %v1412
      %v1418 = vmul.f32 1.0, %v1417
      %v1419 = vrcp.pop %v953
      %v1420 = vmul.f32 %v953, %v1419
      %v1421 = vsub.f32 1.0, %v1420
      %v1422 = vmul.f32 %v1419, %v1421
      %v1423 = vadd.f32 %v1419, %v1422
      %vm1424 = vweird.f32 %v953
      %vm1425 = vweird.f32 %v1419
      %vm1426 = vmor %vm1424, %vm1425
      %v1427 = vsel %vm1426, %v1419, %v1423
      %v1428 = vand.u32 2147483647, %v953
      %vm1429 = vcmp.eq.f32.partialorder %v1428, 8.507059e+37
      %v1430 = vand.u32 %v953, 2147483648
      %v1431 = vor.u32 1.1754944e-38, %v1430
      %v1432 = vsel %vm1429, %v1431, %v1427
      %v1433 = vmul.f32 1.0, %v1432
      %v1434 = vmul.f32 %v794, %v968
      %v1435 = vmul.f32 %v795, %v983
      %v1436 = vmul.f32 %v796, %v998
      %v1437 = vmul.f32 %v797, %v1013
      %v1438 = vmul.f32 %v798, %v1028
      %v1439 = vmul.f32 %v799, %v1043
      %v1440 = vmul.f32 %v800, %v1058
      %v1441 = vmul.f32 %v801, %v1073
      %v1442 = vmul.f32 %v802, %v1088
      %v1443 = vmul.f32 %v803, %v1103
      %v1444 = vmul.f32 %v804, %v1118
      %v1445 = vmul.f32 %v805, %v1133
      %v1446 = vmul.f32 %v806, %v1148
      %v1447 = vmul.f32 %v807, %v1163
      %v1448 = vmul.f32 %v808, %v1178
      %v1449 = vmul.f32 %v809, %v1193
      %v1450 = vmul.f32 %v810, %v1208
      %v1451 = vmul.f32 %v811, %v1223
      %v1452 = vmul.f32 %v812, %v1238
      %v1453 = vmul.f32 %v813, %v1253
      %v1454 = vmul.f32 %v814, %v1268
      %v1455 = vmul.f32 %v815, %v1283
      %v1456 = vmul.f32 %v816, %v1298
      %v1457 = vmul.f32 %v817, %v1313
      %v1458 = vmul.f32 %v818, %v1328
      %v1459 = vmul.f32 %v819, %v1343
      %v1460 = vmul.f32 %v820, %v1358
      %v1461 = vmul.f32 %v821, %v1373
      %v1462 = vmul.f32 %v822, %v1388
      %v1463 = vmul.f32 %v823, %v1403
      %v1464 = vmul.f32 %v824, %v1418
      %v1465 = vmul.f32 %v825, %v1433
      %vm1498 = vcmask 1040384
      %v1499 = vrot.slane %v1434, 7
      %v1500 = vrot.slane %v1435, 7
      %v1501 = vsel %vm1498, %v1499, %v1500
      %v1502 = vrot.slane %v1436, 7
      %v1503 = vrot.slane %v1437, 7
      %v1504 = vsel %vm1498, %v1502, %v1503
      %v1505 = vrot.slane %v1438, 7
      %v1506 = vrot.slane %v1439, 7
      %v1507 = vsel %vm1498, %v1505, %v1506
      %v1508 = vrot.slane %v1440, 7
      %v1509 = vrot.slane %v1441, 7
      %v1510 = vsel %vm1498, %v1508, %v1509
      %v1511 = vrot.slane %v1442, 7
      %v1512 = vrot.slane %v1443, 7
      %v1513 = vsel %vm1498, %v1511, %v1512
      %v1514 = vrot.slane %v1444, 7
      %v1515 = vrot.slane %v1445, 7
      %v1516 = vsel %vm1498, %v1514, %v1515
      %v1517 = vrot.slane %v1446, 7
      %v1518 = vrot.slane %v1447, 7
      %v1519 = vsel %vm1498, %v1517, %v1518
      %v1520 = vrot.slane %v1448, 7
      %v1521 = vrot.slane %v1449, 7
      %v1522 = vsel %vm1498, %v1520, %v1521
      %v1523 = vrot.slane %v1450, 7
      %v1524 = vrot.slane %v1451, 7
      %v1525 = vsel %vm1498, %v1523, %v1524
      %v1526 = vrot.slane %v1452, 7
      %v1527 = vrot.slane %v1453, 7
      %v1528 = vsel %vm1498, %v1526, %v1527
      %v1529 = vrot.slane %v1454, 7
      %v1530 = vrot.slane %v1455, 7
      %v1531 = vsel %vm1498, %v1529, %v1530
      %v1532 = vrot.slane %v1456, 7
      %v1533 = vrot.slane %v1457, 7
      %v1534 = vsel %vm1498, %v1532, %v1533
      %v1535 = vrot.slane %v1458, 7
      %v1536 = vrot.slane %v1459, 7
      %v1537 = vsel %vm1498, %v1535, %v1536
      %v1538 = vrot.slane %v1460, 7
      %v1539 = vrot.slane %v1461, 7
      %v1540 = vsel %vm1498, %v1538, %v1539
      %v1541 = vrot.slane %v1462, 7
      %v1542 = vrot.slane %v1463, 7
      %v1543 = vsel %vm1498, %v1541, %v1542
      %v1544 = vrot.slane %v1464, 7
      %v1545 = vrot.slane %v1465, 7
      %v1546 = vsel %vm1498, %v1544, %v1545
      %v1579 = vsel %vm1498, 0.0, %v1499
      %v1580 = vsel %vm1498, 0.0, %v1502
      %v1581 = vsel %vm1498, 0.0, %v1505
      %v1582 = vsel %vm1498, 0.0, %v1508
      %v1583 = vsel %vm1498, 0.0, %v1511
      %v1584 = vsel %vm1498, 0.0, %v1514
      %v1585 = vsel %vm1498, 0.0, %v1517
      %v1586 = vsel %vm1498, 0.0, %v1520
      %v1587 = vsel %vm1498, 0.0, %v1523
      %v1588 = vsel %vm1498, 0.0, %v1526
      %v1589 = vsel %vm1498, 0.0, %v1529
      %v1590 = vsel %vm1498, 0.0, %v1532
      %v1591 = vsel %vm1498, 0.0, %v1535
      %v1592 = vsel %vm1498, 0.0, %v1538
      %v1593 = vsel %vm1498, 0.0, %v1541
      %v1594 = vsel %vm1498, 0.0, %v1544
      %s1595 = scalar_lea.vmem [#allocation2], 16
      %1596 = vst [vmem:[%s1595] sm:$0xff] %v1579
      %1597 = vst [vmem:[%s1595 + $0x8] sm:$0xff] %v1501
      %1598 = vst [vmem:[%s1595 + $0x10] sm:$0xff] %v1580
      %1599 = vst [vmem:[%s1595 + $0x18] sm:$0xff] %v1504
      %1600 = vst [vmem:[%s1595 + $0x20] sm:$0xff] %v1581
      %1601 = vst [vmem:[%s1595 + $0x28] sm:$0xff] %v1507
      %1602 = vst [vmem:[%s1595 + $0x30] sm:$0xff] %v1582
      %1603 = vst [vmem:[%s1595 + $0x38] sm:$0xff] %v1510
      %1604 = vst [vmem:[%s1595 + $0x40] sm:$0xff] %v1583
      %1605 = vst [vmem:[%s1595 + $0x48] sm:$0xff] %v1513
      %1606 = vst [vmem:[%s1595 + $0x50] sm:$0xff] %v1584
      %1607 = vst [vmem:[%s1595 + $0x58] sm:$0xff] %v1516
      %1608 = vst [vmem:[%s1595 + $0x60] sm:$0xff] %v1585
      %1609 = vst [vmem:[%s1595 + $0x68] sm:$0xff] %v1519
      %1610 = vst [vmem:[%s1595 + $0x70] sm:$0xff] %v1586
      %1611 = vst [vmem:[%s1595 + $0x78] sm:$0xff] %v1522
      %1612 = vst [vmem:[%s1595 + $0x80] sm:$0xff] %v1587
      %1613 = vst [vmem:[%s1595 + $0x88] sm:$0xff] %v1525
      %1614 = vst [vmem:[%s1595 + $0x90] sm:$0xff] %v1588
      %1615 = vst [vmem:[%s1595 + $0x98] sm:$0xff] %v1528
      %1616 = vst [vmem:[%s1595 + $0xa0] sm:$0xff] %v1589
      %1617 = vst [vmem:[%s1595 + $0xa8] sm:$0xff] %v1531
      %1618 = vst [vmem:[%s1595 + $0xb0] sm:$0xff] %v1590
      %1619 = vst [vmem:[%s1595 + $0xb8] sm:$0xff] %v1534
      %1620 = vst [vmem:[%s1595 + $0xc0] sm:$0xff] %v1591
      %1621 = vst [vmem:[%s1595 + $0xc8] sm:$0xff] %v1537
      %1622 = vst [vmem:[%s1595 + $0xd0] sm:$0xff] %v1592
      %1623 = vst [vmem:[%s1595 + $0xd8] sm:$0xff] %v1540
      %1624 = vst [vmem:[%s1595 + $0xe0] sm:$0xff] %v1593
      %1625 = vst [vmem:[%s1595 + $0xe8] sm:$0xff] %v1543
      %1626 = vst [vmem:[%s1595 + $0xf0] sm:$0xff] %v1594
      %1627 = vst [vmem:[%s1595 + $0xf8] sm:$0xff] %v1546
      %1628 = vst [vmem:[#allocation2] sm:$0xff] 0.0
      %1629 = vst [vmem:[#allocation2 + $0x8] sm:$0xff] 0.0
      %s1630 = scalar_lea.vmem [#allocation2], 272
      %1631 = vst [vmem:[%s1630] sm:$0xff] 0.0
      %1632 = vst [vmem:[%s1630 + $0x8] sm:$0xff] 0.0
      %s1633 = scalar_lea.vmem [#allocation2], 304
      %1634 = vst [vmem:[%s1633] sm:$0xff] %v1434
      %1635 = vst [vmem:[%s1633 + $0x8] sm:$0xff] %v1435
      %1636 = vst [vmem:[%s1633 + $0x10] sm:$0xff] %v1436
      %1637 = vst [vmem:[%s1633 + $0x18] sm:$0xff] %v1437
      %1638 = vst [vmem:[%s1633 + $0x20] sm:$0xff] %v1438
      %1639 = vst [vmem:[%s1633 + $0x28] sm:$0xff] %v1439
      %1640 = vst [vmem:[%s1633 + $0x30] sm:$0xff] %v1440
      %1641 = vst [vmem:[%s1633 + $0x38] sm:$0xff] %v1441
      %1642 = vst [vmem:[%s1633 + $0x40] sm:$0xff] %v1442
      %1643 = vst [vmem:[%s1633 + $0x48] sm:$0xff] %v1443
      %1644 = vst [vmem:[%s1633 + $0x50] sm:$0xff] %v1444
      %1645 = vst [vmem:[%s1633 + $0x58] sm:$0xff] %v1445
      %1646 = vst [vmem:[%s1633 + $0x60] sm:$0xff] %v1446
      %1647 = vst [vmem:[%s1633 + $0x68] sm:$0xff] %v1447
      %1648 = vst [vmem:[%s1633 + $0x70] sm:$0xff] %v1448
      %1649 = vst [vmem:[%s1633 + $0x78] sm:$0xff] %v1449
      %1650 = vst [vmem:[%s1633 + $0x80] sm:$0xff] %v1450
      %1651 = vst [vmem:[%s1633 + $0x88] sm:$0xff] %v1451
      %1652 = vst [vmem:[%s1633 + $0x90] sm:$0xff] %v1452
      %1653 = vst [vmem:[%s1633 + $0x98] sm:$0xff] %v1453
      %1654 = vst [vmem:[%s1633 + $0xa0] sm:$0xff] %v1454
      %1655 = vst [vmem:[%s1633 + $0xa8] sm:$0xff] %v1455
      %1656 = vst [vmem:[%s1633 + $0xb0] sm:$0xff] %v1456
      %1657 = vst [vmem:[%s1633 + $0xb8] sm:$0xff] %v1457
      %1658 = vst [vmem:[%s1633 + $0xc0] sm:$0xff] %v1458
      %1659 = vst [vmem:[%s1633 + $0xc8] sm:$0xff] %v1459
      %1660 = vst [vmem:[%s1633 + $0xd0] sm:$0xff] %v1460
      %1661 = vst [vmem:[%s1633 + $0xd8] sm:$0xff] %v1461
      %1662 = vst [vmem:[%s1633 + $0xe0] sm:$0xff] %v1462
      %1663 = vst [vmem:[%s1633 + $0xe8] sm:$0xff] %v1463
      %1664 = vst [vmem:[%s1633 + $0xf0] sm:$0xff] %v1464
      %1665 = vst [vmem:[%s1633 + $0xf8] sm:$0xff] %v1465
      %s1666 = scalar_lea.vmem [#allocation2], 288
      %1667 = vst [vmem:[%s1666] sm:$0xff] 0.0
      %1668 = vst [vmem:[%s1666 + $0x8] sm:$0xff] 0.0
      %s1669 = scalar_lea.vmem [#allocation2], 560
      %1670 = vst [vmem:[%s1669] sm:$0xff] 0.0
      %1671 = vst [vmem:[%s1669 + $0x8] sm:$0xff] 0.0
      %vm1672 = vcmask 1046528
      %v1673 = vrot.slane %v1434, 1
      %v1674 = vrot.slane %v1435, 1
      %v1675 = vsel %vm1672, %v1673, %v1674
      %v1676 = vrot.slane %v1436, 1
      %v1677 = vrot.slane %v1437, 1
      %v1678 = vsel %vm1672, %v1676, %v1677
      %v1679 = vrot.slane %v1438, 1
      %v1680 = vrot.slane %v1439, 1
      %v1681 = vsel %vm1672, %v1679, %v1680
      %v1682 = vrot.slane %v1440, 1
      %v1683 = vrot.slane %v1441, 1
      %v1684 = vsel %vm1672, %v1682, %v1683
      %v1685 = vrot.slane %v1442, 1
      %v1686 = vrot.slane %v1443, 1
      %v1687 = vsel %vm1672, %v1685, %v1686
      %v1688 = vrot.slane %v1444, 1
      %v1689 = vrot.slane %v1445, 1
      %v1690 = vsel %vm1672, %v1688, %v1689
      %v1691 = vrot.slane %v1446, 1
      %v1692 = vrot.slane %v1447, 1
      %v1693 = vsel %vm1672, %v1691, %v1692
      %v1694 = vrot.slane %v1448, 1
      %v1695 = vrot.slane %v1449, 1
      %v1696 = vsel %vm1672, %v1694, %v1695
      %v1697 = vrot.slane %v1450, 1
      %v1698 = vrot.slane %v1451, 1
      %v1699 = vsel %vm1672, %v1697, %v1698
      %v1700 = vrot.slane %v1452, 1
      %v1701 = vrot.slane %v1453, 1
      %v1702 = vsel %vm1672, %v1700, %v1701
      %v1703 = vrot.slane %v1454, 1
      %v1704 = vrot.slane %v1455, 1
      %v1705 = vsel %vm1672, %v1703, %v1704
      %v1706 = vrot.slane %v1456, 1
      %v1707 = vrot.slane %v1457, 1
      %v1708 = vsel %vm1672, %v1706, %v1707
      %v1709 = vrot.slane %v1458, 1
      %v1710 = vrot.slane %v1459, 1
      %v1711 = vsel %vm1672, %v1709, %v1710
      %v1712 = vrot.slane %v1460, 1
      %v1713 = vrot.slane %v1461, 1
      %v1714 = vsel %vm1672, %v1712, %v1713
      %v1715 = vrot.slane %v1462, 1
      %v1716 = vrot.slane %v1463, 1
      %v1717 = vsel %vm1672, %v1715, %v1716
      %v1718 = vrot.slane %v1464, 1
      %v1719 = vrot.slane %v1465, 1
      %v1720 = vsel %vm1672, %v1718, %v1719
      %v1753 = vsel %vm1672, %v1674, 0.0
      %v1754 = vsel %vm1672, %v1677, 0.0
      %v1755 = vsel %vm1672, %v1680, 0.0
      %v1756 = vsel %vm1672, %v1683, 0.0
      %v1757 = vsel %vm1672, %v1686, 0.0
      %v1758 = vsel %vm1672, %v1689, 0.0
      %v1759 = vsel %vm1672, %v1692, 0.0
      %v1760 = vsel %vm1672, %v1695, 0.0
      %v1761 = vsel %vm1672, %v1698, 0.0
      %v1762 = vsel %vm1672, %v1701, 0.0
      %v1763 = vsel %vm1672, %v1704, 0.0
      %v1764 = vsel %vm1672, %v1707, 0.0
      %v1765 = vsel %vm1672, %v1710, 0.0
      %v1766 = vsel %vm1672, %v1713, 0.0
      %v1767 = vsel %vm1672, %v1716, 0.0
      %v1768 = vsel %vm1672, %v1719, 0.0
      %s1769 = scalar_lea.vmem [#allocation2], 592
      %1770 = vst [vmem:[%s1769] sm:$0xff] %v1675
      %1771 = vst [vmem:[%s1769 + $0x8] sm:$0xff] %v1753
      %1772 = vst [vmem:[%s1769 + $0x10] sm:$0xff] %v1678
      %1773 = vst [vmem:[%s1769 + $0x18] sm:$0xff] %v1754
      %1774 = vst [vmem:[%s1769 + $0x20] sm:$0xff] %v1681
      %1775 = vst [vmem:[%s1769 + $0x28] sm:$0xff] %v1755
      %1776 = vst [vmem:[%s1769 + $0x30] sm:$0xff] %v1684
      %1777 = vst [vmem:[%s1769 + $0x38] sm:$0xff] %v1756
      %1778 = vst [vmem:[%s1769 + $0x40] sm:$0xff] %v1687
      %1779 = vst [vmem:[%s1769 + $0x48] sm:$0xff] %v1757
      %1780 = vst [vmem:[%s1769 + $0x50] sm:$0xff] %v1690
      %1781 = vst [vmem:[%s1769 + $0x58] sm:$0xff] %v1758
      %1782 = vst [vmem:[%s1769 + $0x60] sm:$0xff] %v1693
      %1783 = vst [vmem:[%s1769 + $0x68] sm:$0xff] %v1759
      %1784 = vst [vmem:[%s1769 + $0x70] sm:$0xff] %v1696
      %1785 = vst [vmem:[%s1769 + $0x78] sm:$0xff] %v1760
      %1786 = vst [vmem:[%s1769 + $0x80] sm:$0xff] %v1699
      %1787 = vst [vmem:[%s1769 + $0x88] sm:$0xff] %v1761
      %1788 = vst [vmem:[%s1769 + $0x90] sm:$0xff] %v1702
      %1789 = vst [vmem:[%s1769 + $0x98] sm:$0xff] %v1762
      %1790 = vst [vmem:[%s1769 + $0xa0] sm:$0xff] %v1705
      %1791 = vst [vmem:[%s1769 + $0xa8] sm:$0xff] %v1763
      %1792 = vst [vmem:[%s1769 + $0xb0] sm:$0xff] %v1708
      %1793 = vst [vmem:[%s1769 + $0xb8] sm:$0xff] %v1764
      %1794 = vst [vmem:[%s1769 + $0xc0] sm:$0xff] %v1711
      %1795 = vst [vmem:[%s1769 + $0xc8] sm:$0xff] %v1765
      %1796 = vst [vmem:[%s1769 + $0xd0] sm:$0xff] %v1714
      %1797 = vst [vmem:[%s1769 + $0xd8] sm:$0xff] %v1766
      %1798 = vst [vmem:[%s1769 + $0xe0] sm:$0xff] %v1717
      %1799 = vst [vmem:[%s1769 + $0xe8] sm:$0xff] %v1767
      %1800 = vst [vmem:[%s1769 + $0xf0] sm:$0xff] %v1720
      %1801 = vst [vmem:[%s1769 + $0xf8] sm:$0xff] %v1768
      %s1802 = scalar_lea.vmem [#allocation2], 576
      %1803 = vst [vmem:[%s1802] sm:$0xff] 0.0
      %1804 = vst [vmem:[%s1802 + $0x8] sm:$0xff] 0.0
      %s1805 = scalar_lea.vmem [#allocation2], 848
      %1806 = vst [vmem:[%s1805] sm:$0xff] 0.0
      %1807 = vst [vmem:[%s1805 + $0x8] sm:$0xff] 0.0
      %v1808 = vld [vmem:[%s4] sm:$0xff]
      %v1809 = vld [vmem:[%s4 + $0x8] sm:$0x1]
      %v1810 = vld [vmem:[%s5] sm:$0x1]
      %v1811 = vld [vmem:[%s6] sm:$0x1]
      %s1812 = smul.u32 0, 16
      %s1813 = scalar_lea.vmem [#allocation2], %s1812
      %v1814 = vld [vmem:[%s1813] sm:$0xff]
      %v1815 = vld [vmem:[%s1813 + $0x8] sm:$0xff]
      %v1816 = vld [vmem:[%s1813 + $0x10] sm:$0xff]
      %v1817 = vld [vmem:[%s1813 + $0x18] sm:$0xff]
      %v1818 = vld [vmem:[%s1813 + $0x20] sm:$0xff]
      %v1819 = vld [vmem:[%s1813 + $0x28] sm:$0xff]
      %v1820 = vld [vmem:[%s1813 + $0x30] sm:$0xff]
      %v1821 = vld [vmem:[%s1813 + $0x38] sm:$0xff]
      %v1822 = vperm.slane %v1808, 0
      %v1823 = vmul.f32 %v1814, %v1822
      %v1824 = vmul.f32 %v1815, %v1822
      %v1825 = vmul.f32 %v1816, %v1822
      %v1826 = vmul.f32 %v1817, %v1822
      %v1827 = vmul.f32 %v1818, %v1822
      %v1828 = vmul.f32 %v1819, %v1822
      %v1829 = vmul.f32 %v1820, %v1822
      %v1830 = vmul.f32 %v1821, %v1822
      %v1831 = vadd.f32 %v1823, 0.0
      %v1832 = vadd.f32 %v1824, 0.0
      %v1833 = vadd.f32 %v1825, 0.0
      %v1834 = vadd.f32 %v1826, 0.0
      %v1835 = vadd.f32 %v1827, 0.0
      %v1836 = vadd.f32 %v1828, 0.0
      %v1837 = vadd.f32 %v1829, 0.0
      %v1838 = vadd.f32 %v1830, 0.0
      %s1839 = sadd.s32 %s1812, 288
      %s1840 = scalar_lea.vmem [#allocation2], %s1839
      %v1841 = vld [vmem:[%s1840] sm:$0xff]
      %v1842 = vld [vmem:[%s1840 + $0x8] sm:$0xff]
      %v1843 = vld [vmem:[%s1840 + $0x10] sm:$0xff]
      %v1844 = vld [vmem:[%s1840 + $0x18] sm:$0xff]
      %v1845 = vld [vmem:[%s1840 + $0x20] sm:$0xff]
      %v1846 = vld [vmem:[%s1840 + $0x28] sm:$0xff]
      %v1847 = vld [vmem:[%s1840 + $0x30] sm:$0xff]
      %v1848 = vld [vmem:[%s1840 + $0x38] sm:$0xff]
      %v1849 = vperm.slane %v1808, 1
      %v1850 = vmul.f32 %v1841, %v1849
      %v1851 = vmul.f32 %v1842, %v1849
      %v1852 = vmul.f32 %v1843, %v1849
      %v1853 = vmul.f32 %v1844, %v1849
      %v1854 = vmul.f32 %v1845, %v1849
      %v1855 = vmul.f32 %v1846, %v1849
      %v1856 = vmul.f32 %v1847, %v1849
      %v1857 = vmul.f32 %v1848, %v1849
      %v1858 = vadd.f32 %v1831, %v1850
      %v1859 = vadd.f32 %v1832, %v1851
      %v1860 = vadd.f32 %v1833, %v1852
      %v1861 = vadd.f32 %v1834, %v1853
      %v1862 = vadd.f32 %v1835, %v1854
      %v1863 = vadd.f32 %v1836, %v1855
      %v1864 = vadd.f32 %v1837, %v1856
      %v1865 = vadd.f32 %v1838, %v1857
      %s1866 = sadd.s32 %s1812, 576
      %s1867 = scalar_lea.vmem [#allocation2], %s1866
      %v1868 = vld [vmem:[%s1867] sm:$0xff]
      %v1869 = vld [vmem:[%s1867 + $0x8] sm:$0xff]
      %v1870 = vld [vmem:[%s1867 + $0x10] sm:$0xff]
      %v1871 = vld [vmem:[%s1867 + $0x18] sm:$0xff]
      %v1872 = vld [vmem:[%s1867 + $0x20] sm:$0xff]
      %v1873 = vld [vmem:[%s1867 + $0x28] sm:$0xff]
      %v1874 = vld [vmem:[%s1867 + $0x30] sm:$0xff]
      %v1875 = vld [vmem:[%s1867 + $0x38] sm:$0xff]
      %v1876 = vperm.slane %v1808, 2
      %v1877 = vmul.f32 %v1868, %v1876
      %v1878 = vmul.f32 %v1869, %v1876
      %v1879 = vmul.f32 %v1870, %v1876
      %v1880 = vmul.f32 %v1871, %v1876
      %v1881 = vmul.f32 %v1872, %v1876
      %v1882 = vmul.f32 %v1873, %v1876
      %v1883 = vmul.f32 %v1874, %v1876
      %v1884 = vmul.f32 %v1875, %v1876
      %v1885 = vadd.f32 %v1858, %v1877
      %v1886 = vadd.f32 %v1859, %v1878
      %v1887 = vadd.f32 %v1860, %v1879
      %v1888 = vadd.f32 %v1861, %v1880
      %v1889 = vadd.f32 %v1862, %v1881
      %v1890 = vadd.f32 %v1863, %v1882
      %v1891 = vadd.f32 %v1864, %v1883
      %v1892 = vadd.f32 %v1865, %v1884
      %s1893 = sadd.s32 0, 1
      %s1894 = smul.u32 %s1893, 16
      %s1895 = scalar_lea.vmem [#allocation2], %s1894
      %v1896 = vld [vmem:[%s1895] sm:$0xff]
      %v1897 = vld [vmem:[%s1895 + $0x8] sm:$0xff]
      %v1898 = vld [vmem:[%s1895 + $0x10] sm:$0xff]
      %v1899 = vld [vmem:[%s1895 + $0x18] sm:$0xff]
      %v1900 = vld [vmem:[%s1895 + $0x20] sm:$0xff]
      %v1901 = vld [vmem:[%s1895 + $0x28] sm:$0xff]
      %v1902 = vld [vmem:[%s1895 + $0x30] sm:$0xff]
      %v1903 = vld [vmem:[%s1895 + $0x38] sm:$0xff]
      %v1904 = vperm.slane %v1808, 3
      %v1905 = vmul.f32 %v1896, %v1904
      %v1906 = vmul.f32 %v1897, %v1904
      %v1907 = vmul.f32 %v1898, %v1904
      %v1908 = vmul.f32 %v1899, %v1904
      %v1909 = vmul.f32 %v1900, %v1904
      %v1910 = vmul.f32 %v1901, %v1904
      %v1911 = vmul.f32 %v1902, %v1904
      %v1912 = vmul.f32 %v1903, %v1904
      %v1913 = vadd.f32 %v1885, %v1905
      %v1914 = vadd.f32 %v1886, %v1906
      %v1915 = vadd.f32 %v1887, %v1907
      %v1916 = vadd.f32 %v1888, %v1908
      %v1917 = vadd.f32 %v1889, %v1909
      %v1918 = vadd.f32 %v1890, %v1910
      %v1919 = vadd.f32 %v1891, %v1911
      %v1920 = vadd.f32 %v1892, %v1912
      %s1921 = sadd.s32 %s1894, 288
      %s1922 = scalar_lea.vmem [#allocation2], %s1921
      %v1923 = vld [vmem:[%s1922] sm:$0xff]
      %v1924 = vld [vmem:[%s1922 + $0x8] sm:$0xff]
      %v1925 = vld [vmem:[%s1922 + $0x10] sm:$0xff]
      %v1926 = vld [vmem:[%s1922 + $0x18] sm:$0xff]
      %v1927 = vld [vmem:[%s1922 + $0x20] sm:$0xff]
      %v1928 = vld [vmem:[%s1922 + $0x28] sm:$0xff]
      %v1929 = vld [vmem:[%s1922 + $0x30] sm:$0xff]
      %v1930 = vld [vmem:[%s1922 + $0x38] sm:$0xff]
      %v1931 = vperm.slane %v1808, 4
      %v1932 = vmul.f32 %v1923, %v1931
      %v1933 = vmul.f32 %v1924, %v1931
      %v1934 = vmul.f32 %v1925, %v1931
      %v1935 = vmul.f32 %v1926, %v1931
      %v1936 = vmul.f32 %v1927, %v1931
      %v1937 = vmul.f32 %v1928, %v1931
      %v1938 = vmul.f32 %v1929, %v1931
      %v1939 = vmul.f32 %v1930, %v1931
      %v1940 = vadd.f32 %v1913, %v1932
      %v1941 = vadd.f32 %v1914, %v1933
      %v1942 = vadd.f32 %v1915, %v1934
      %v1943 = vadd.f32 %v1916, %v1935
      %v1944 = vadd.f32 %v1917, %v1936
      %v1945 = vadd.f32 %v1918, %v1937
      %v1946 = vadd.f32 %v1919, %v1938
      %v1947 = vadd.f32 %v1920, %v1939
      %s1948 = sadd.s32 %s1894, 576
      %s1949 = scalar_lea.vmem [#allocation2], %s1948
      %v1950 = vld [vmem:[%s1949] sm:$0xff]
      %v1951 = vld [vmem:[%s1949 + $0x8] sm:$0xff]
      %v1952 = vld [vmem:[%s1949 + $0x10] sm:$0xff]
      %v1953 = vld [vmem:[%s1949 + $0x18] sm:$0xff]
      %v1954 = vld [vmem:[%s1949 + $0x20] sm:$0xff]
      %v1955 = vld [vmem:[%s1949 + $0x28] sm:$0xff]
      %v1956 = vld [vmem:[%s1949 + $0x30] sm:$0xff]
      %v1957 = vld [vmem:[%s1949 + $0x38] sm:$0xff]
      %v1958 = vperm.slane %v1808, 5
      %v1959 = vmul.f32 %v1950, %v1958
      %v1960 = vmul.f32 %v1951, %v1958
      %v1961 = vmul.f32 %v1952, %v1958
      %v1962 = vmul.f32 %v1953, %v1958
      %v1963 = vmul.f32 %v1954, %v1958
      %v1964 = vmul.f32 %v1955, %v1958
      %v1965 = vmul.f32 %v1956, %v1958
      %v1966 = vmul.f32 %v1957, %v1958
      %v1967 = vadd.f32 %v1940, %v1959
      %v1968 = vadd.f32 %v1941, %v1960
      %v1969 = vadd.f32 %v1942, %v1961
      %v1970 = vadd.f32 %v1943, %v1962
      %v1971 = vadd.f32 %v1944, %v1963
      %v1972 = vadd.f32 %v1945, %v1964
      %v1973 = vadd.f32 %v1946, %v1965
      %v1974 = vadd.f32 %v1947, %v1966
      %s1975 = sadd.s32 0, 2
      %s1976 = smul.u32 %s1975, 16
      %s1977 = scalar_lea.vmem [#allocation2], %s1976
      %v1978 = vld [vmem:[%s1977] sm:$0xff]
      %v1979 = vld [vmem:[%s1977 + $0x8] sm:$0xff]
      %v1980 = vld [vmem:[%s1977 + $0x10] sm:$0xff]
      %v1981 = vld [vmem:[%s1977 + $0x18] sm:$0xff]
      %v1982 = vld [vmem:[%s1977 + $0x20] sm:$0xff]
      %v1983 = vld [vmem:[%s1977 + $0x28] sm:$0xff]
      %v1984 = vld [vmem:[%s1977 + $0x30] sm:$0xff]
      %v1985 = vld [vmem:[%s1977 + $0x38] sm:$0xff]
      %v1986 = vperm.slane %v1808, 6
      %v1987 = vmul.f32 %v1978, %v1986
      %v1988 = vmul.f32 %v1979, %v1986
      %v1989 = vmul.f32 %v1980, %v1986
      %v1990 = vmul.f32 %v1981, %v1986
      %v1991 = vmul.f32 %v1982, %v1986
      %v1992 = vmul.f32 %v1983, %v1986
      %v1993 = vmul.f32 %v1984, %v1986
      %v1994 = vmul.f32 %v1985, %v1986
      %v1995 = vadd.f32 %v1967, %v1987
      %v1996 = vadd.f32 %v1968, %v1988
      %v1997 = vadd.f32 %v1969, %v1989
      %v1998 = vadd.f32 %v1970, %v1990
      %v1999 = vadd.f32 %v1971, %v1991
      %v2000 = vadd.f32 %v1972, %v1992
      %v2001 = vadd.f32 %v1973, %v1993
      %v2002 = vadd.f32 %v1974, %v1994
      %s2003 = sadd.s32 %s1976, 288
      %s2004 = scalar_lea.vmem [#allocation2], %s2003
      %v2005 = vld [vmem:[%s2004] sm:$0xff]
      %v2006 = vld [vmem:[%s2004 + $0x8] sm:$0xff]
      %v2007 = vld [vmem:[%s2004 + $0x10] sm:$0xff]
      %v2008 = vld [vmem:[%s2004 + $0x18] sm:$0xff]
      %v2009 = vld [vmem:[%s2004 + $0x20] sm:$0xff]
      %v2010 = vld [vmem:[%s2004 + $0x28] sm:$0xff]
      %v2011 = vld [vmem:[%s2004 + $0x30] sm:$0xff]
      %v2012 = vld [vmem:[%s2004 + $0x38] sm:$0xff]
      %v2013 = vperm.slane %v1808, 7
      %v2014 = vmul.f32 %v2005, %v2013
      %v2015 = vmul.f32 %v2006, %v2013
      %v2016 = vmul.f32 %v2007, %v2013
      %v2017 = vmul.f32 %v2008, %v2013
      %v2018 = vmul.f32 %v2009, %v2013
      %v2019 = vmul.f32 %v2010, %v2013
      %v2020 = vmul.f32 %v2011, %v2013
      %v2021 = vmul.f32 %v2012, %v2013
      %v2022 = vadd.f32 %v1995, %v2014
      %v2023 = vadd.f32 %v1996, %v2015
      %v2024 = vadd.f32 %v1997, %v2016
      %v2025 = vadd.f32 %v1998, %v2017
      %v2026 = vadd.f32 %v1999, %v2018
      %v2027 = vadd.f32 %v2000, %v2019
      %v2028 = vadd.f32 %v2001, %v2020
      %v2029 = vadd.f32 %v2002, %v2021
      %s2030 = sadd.s32 %s1976, 576
      %s2031 = scalar_lea.vmem [#allocation2], %s2030
      %v2032 = vld [vmem:[%s2031] sm:$0xff]
      %v2033 = vld [vmem:[%s2031 + $0x8] sm:$0xff]
      %v2034 = vld [vmem:[%s2031 + $0x10] sm:$0xff]
      %v2035 = vld [vmem:[%s2031 + $0x18] sm:$0xff]
      %v2036 = vld [vmem:[%s2031 + $0x20] sm:$0xff]
      %v2037 = vld [vmem:[%s2031 + $0x28] sm:$0xff]
      %v2038 = vld [vmem:[%s2031 + $0x30] sm:$0xff]
      %v2039 = vld [vmem:[%s2031 + $0x38] sm:$0xff]
      %v2040 = vperm.slane %v1809, 0
      %v2041 = vmul.f32 %v2032, %v2040
      %v2042 = vmul.f32 %v2033, %v2040
      %v2043 = vmul.f32 %v2034, %v2040
      %v2044 = vmul.f32 %v2035, %v2040
      %v2045 = vmul.f32 %v2036, %v2040
      %v2046 = vmul.f32 %v2037, %v2040
      %v2047 = vmul.f32 %v2038, %v2040
      %v2048 = vmul.f32 %v2039, %v2040
      %v2049 = vadd.f32 %v2022, %v2041
      %v2050 = vadd.f32 %v2023, %v2042
      %v2051 = vadd.f32 %v2024, %v2043
      %v2052 = vadd.f32 %v2025, %v2044
      %v2053 = vadd.f32 %v2026, %v2045
      %v2054 = vadd.f32 %v2027, %v2046
      %v2055 = vadd.f32 %v2028, %v2047
      %v2056 = vadd.f32 %v2029, %v2048
      %v2058 = vperm.slane %v1810, 0
      %v2060 = vmul.f32 %v2049, %v2058
      %v2061 = vmul.f32 %v2050, %v2058
      %v2062 = vmul.f32 %v2051, %v2058
      %v2063 = vmul.f32 %v2052, %v2058
      %v2064 = vmul.f32 %v2053, %v2058
      %v2065 = vmul.f32 %v2054, %v2058
      %v2066 = vmul.f32 %v2055, %v2058
      %v2067 = vmul.f32 %v2056, %v2058
      %v2069 = vperm.slane %v1811, 0
      %v2071 = vadd.f32 %v2060, %v2069
      %v2072 = vadd.f32 %v2061, %v2069
      %v2073 = vadd.f32 %v2062, %v2069
      %v2074 = vadd.f32 %v2063, %v2069
      %v2075 = vadd.f32 %v2064, %v2069
      %v2076 = vadd.f32 %v2065, %v2069
      %v2077 = vadd.f32 %v2066, %v2069
      %v2078 = vadd.f32 %v2067, %v2069
      %v2079 = vxor.u32 %v2071, 2147483648
      %v2080 = vxor.u32 %v2072, 2147483648
      %v2081 = vxor.u32 %v2073, 2147483648
      %v2082 = vxor.u32 %v2074, 2147483648
      %v2083 = vxor.u32 %v2075, 2147483648
      %v2084 = vxor.u32 %v2076, 2147483648
      %v2085 = vxor.u32 %v2077, 2147483648
      %v2086 = vxor.u32 %v2078, 2147483648
      %v2087 = vmul.f32 %v2079, 1.442695
      %v2088 = vpow.pop %v2087
      %v2089 = vmul.f32 %v2080, 1.442695
      %v2090 = vpow.pop %v2089
      %v2091 = vmul.f32 %v2081, 1.442695
      %v2092 = vpow.pop %v2091
      %v2093 = vmul.f32 %v2082, 1.442695
      %v2094 = vpow.pop %v2093
      %v2095 = vmul.f32 %v2083, 1.442695
      %v2096 = vpow.pop %v2095
      %v2097 = vmul.f32 %v2084, 1.442695
      %v2098 = vpow.pop %v2097
      %v2099 = vmul.f32 %v2085, 1.442695
      %v2100 = vpow.pop %v2099
      %v2101 = vmul.f32 %v2086, 1.442695
      %v2102 = vpow.pop %v2101
      %v2103 = vadd.f32 %v2088, 1.0
      %v2104 = vadd.f32 %v2090, 1.0
      %v2105 = vadd.f32 %v2092, 1.0
      %v2106 = vadd.f32 %v2094, 1.0
      %v2107 = vadd.f32 %v2096, 1.0
      %v2108 = vadd.f32 %v2098, 1.0
      %v2109 = vadd.f32 %v2100, 1.0
      %v2110 = vadd.f32 %v2102, 1.0
      %v2111 = vrcp.pop %v2103
      %v2112 = vmul.f32 %v2103, %v2111
      %v2113 = vsub.f32 1.0, %v2112
      %v2114 = vmul.f32 %v2111, %v2113
      %v2115 = vadd.f32 %v2111, %v2114
      %vm2116 = vweird.f32 %v2103
      %vm2117 = vweird.f32 %v2111
      %vm2118 = vmor %vm2116, %vm2117
      %v2119 = vsel %vm2118, %v2111, %v2115
      %v2120 = vand.u32 2147483647, %v2103
      %vm2121 = vcmp.eq.f32.partialorder %v2120, 8.507059e+37
      %v2122 = vand.u32 %v2103, 2147483648
      %v2123 = vor.u32 1.1754944e-38, %v2122
      %v2124 = vsel %vm2121, %v2123, %v2119
      %v2125 = vmul.f32 1.0, %v2124
      %v2126 = vrcp.pop %v2104
      %v2127 = vmul.f32 %v2104, %v2126
      %v2128 = vsub.f32 1.0, %v2127
      %v2129 = vmul.f32 %v2126, %v2128
      %v2130 = vadd.f32 %v2126, %v2129
      %vm2131 = vweird.f32 %v2104
      %vm2132 = vweird.f32 %v2126
      %vm2133 = vmor %vm2131, %vm2132
      %v2134 = vsel %vm2133, %v2126, %v2130
      %v2135 = vand.u32 2147483647, %v2104
      %vm2136 = vcmp.eq.f32.partialorder %v2135, 8.507059e+37
      %v2137 = vand.u32 %v2104, 2147483648
      %v2138 = vor.u32 1.1754944e-38, %v2137
      %v2139 = vsel %vm2136, %v2138, %v2134
      %v2140 = vmul.f32 1.0, %v2139
      %v2141 = vrcp.pop %v2105
      %v2142 = vmul.f32 %v2105, %v2141
      %v2143 = vsub.f32 1.0, %v2142
      %v2144 = vmul.f32 %v2141, %v2143
      %v2145 = vadd.f32 %v2141, %v2144
      %vm2146 = vweird.f32 %v2105
      %vm2147 = vweird.f32 %v2141
      %vm2148 = vmor %vm2146, %vm2147
      %v2149 = vsel %vm2148, %v2141, %v2145
      %v2150 = vand.u32 2147483647, %v2105
      %vm2151 = vcmp.eq.f32.partialorder %v2150, 8.507059e+37
      %v2152 = vand.u32 %v2105, 2147483648
      %v2153 = vor.u32 1.1754944e-38, %v2152
      %v2154 = vsel %vm2151, %v2153, %v2149
      %v2155 = vmul.f32 1.0, %v2154
      %v2156 = vrcp.pop %v2106
      %v2157 = vmul.f32 %v2106, %v2156
      %v2158 = vsub.f32 1.0, %v2157
      %v2159 = vmul.f32 %v2156, %v2158
      %v2160 = vadd.f32 %v2156, %v2159
      %vm2161 = vweird.f32 %v2106
      %vm2162 = vweird.f32 %v2156
      %vm2163 = vmor %vm2161, %vm2162
      %v2164 = vsel %vm2163, %v2156, %v2160
      %v2165 = vand.u32 2147483647, %v2106
      %vm2166 = vcmp.eq.f32.partialorder %v2165, 8.507059e+37
      %v2167 = vand.u32 %v2106, 2147483648
      %v2168 = vor.u32 1.1754944e-38, %v2167
      %v2169 = vsel %vm2166, %v2168, %v2164
      %v2170 = vmul.f32 1.0, %v2169
      %v2171 = vrcp.pop %v2107
      %v2172 = vmul.f32 %v2107, %v2171
      %v2173 = vsub.f32 1.0, %v2172
      %v2174 = vmul.f32 %v2171, %v2173
      %v2175 = vadd.f32 %v2171, %v2174
      %vm2176 = vweird.f32 %v2107
      %vm2177 = vweird.f32 %v2171
      %vm2178 = vmor %vm2176, %vm2177
      %v2179 = vsel %vm2178, %v2171, %v2175
      %v2180 = vand.u32 2147483647, %v2107
      %vm2181 = vcmp.eq.f32.partialorder %v2180, 8.507059e+37
      %v2182 = vand.u32 %v2107, 2147483648
      %v2183 = vor.u32 1.1754944e-38, %v2182
      %v2184 = vsel %vm2181, %v2183, %v2179
      %v2185 = vmul.f32 1.0, %v2184
      %v2186 = vrcp.pop %v2108
      %v2187 = vmul.f32 %v2108, %v2186
      %v2188 = vsub.f32 1.0, %v2187
      %v2189 = vmul.f32 %v2186, %v2188
      %v2190 = vadd.f32 %v2186, %v2189
      %vm2191 = vweird.f32 %v2108
      %vm2192 = vweird.f32 %v2186
      %vm2193 = vmor %vm2191, %vm2192
      %v2194 = vsel %vm2193, %v2186, %v2190
      %v2195 = vand.u32 2147483647, %v2108
      %vm2196 = vcmp.eq.f32.partialorder %v2195, 8.507059e+37
      %v2197 = vand.u32 %v2108, 2147483648
      %v2198 = vor.u32 1.1754944e-38, %v2197
      %v2199 = vsel %vm2196, %v2198, %v2194
      %v2200 = vmul.f32 1.0, %v2199
      %v2201 = vrcp.pop %v2109
      %v2202 = vmul.f32 %v2109, %v2201
      %v2203 = vsub.f32 1.0, %v2202
      %v2204 = vmul.f32 %v2201, %v2203
      %v2205 = vadd.f32 %v2201, %v2204
      %vm2206 = vweird.f32 %v2109
      %vm2207 = vweird.f32 %v2201
      %vm2208 = vmor %vm2206, %vm2207
      %v2209 = vsel %vm2208, %v2201, %v2205
      %v2210 = vand.u32 2147483647, %v2109
      %vm2211 = vcmp.eq.f32.partialorder %v2210, 8.507059e+37
      %v2212 = vand.u32 %v2109, 2147483648
      %v2213 = vor.u32 1.1754944e-38, %v2212
      %v2214 = vsel %vm2211, %v2213, %v2209
      %v2215 = vmul.f32 1.0, %v2214
      %v2216 = vrcp.pop %v2110
      %v2217 = vmul.f32 %v2110, %v2216
      %v2218 = vsub.f32 1.0, %v2217
      %v2219 = vmul.f32 %v2216, %v2218
      %v2220 = vadd.f32 %v2216, %v2219
      %vm2221 = vweird.f32 %v2110
      %vm2222 = vweird.f32 %v2216
      %vm2223 = vmor %vm2221, %vm2222
      %v2224 = vsel %vm2223, %v2216, %v2220
      %v2225 = vand.u32 2147483647, %v2110
      %vm2226 = vcmp.eq.f32.partialorder %v2225, 8.507059e+37
      %v2227 = vand.u32 %v2110, 2147483648
      %v2228 = vor.u32 1.1754944e-38, %v2227
      %v2229 = vsel %vm2226, %v2228, %v2224
      %v2230 = vmul.f32 1.0, %v2229
      %v2231 = vmul.f32 %v2071, %v2125
      %v2232 = vmul.f32 %v2072, %v2140
      %v2233 = vmul.f32 %v2073, %v2155
      %v2234 = vmul.f32 %v2074, %v2170
      %v2235 = vmul.f32 %v2075, %v2185
      %v2236 = vmul.f32 %v2076, %v2200
      %v2237 = vmul.f32 %v2077, %v2215
      %v2238 = vmul.f32 %v2078, %v2230
      %2239 = vst [vmem:[#allocation3] sm:$0xff] %v2231
      %2240 = vst [vmem:[#allocation3 + $0x8] sm:$0xff] %v2232
      %2241 = vst [vmem:[#allocation3 + $0x10] sm:$0xff] %v2233
      %2242 = vst [vmem:[#allocation3 + $0x18] sm:$0xff] %v2234
      %2243 = vst [vmem:[#allocation3 + $0x20] sm:$0xff] %v2235
      %2244 = vst [vmem:[#allocation3 + $0x28] sm:$0xff] %v2236
      %2245 = vst [vmem:[#allocation3 + $0x30] sm:$0xff] %v2237
      %2246 = vst [vmem:[#allocation3 + $0x38] sm:$0xff] %v2238
      %v2247 = vadd.f32 %v2231, %v2232
      %v2248 = vadd.f32 %v2247, %v2233
      %v2249 = vadd.f32 %v2248, %v2234
      %v2250 = vadd.f32 %v2249, %v2235
      %v2251 = vadd.f32 %v2250, %v2236
      %v2252 = vadd.f32 %v2251, %v2237
      %v2253 = vadd.f32 %v2252, %v2238
      %v2254 = vrot.slane %v2253, 4
      %v2255 = vadd.f32 %v2253, %v2254
      %v2256 = vrot.slane %v2255, 2
      %v2257 = vadd.f32 %v2255, %v2256
      %v2258 = vrot.slane %v2257, 1
      %v2259 = vadd.f32 %v2257, %v2258
      %v2260 = vadd.f32 %v2259, 0.0
      %s2261 = smul.u32 4, 16
      %s2262 = scalar_lea.vmem [#allocation2], %s2261
      %v2263 = vld [vmem:[%s2262] sm:$0xff]
      %v2264 = vld [vmem:[%s2262 + $0x8] sm:$0xff]
      %v2265 = vld [vmem:[%s2262 + $0x10] sm:$0xff]
      %v2266 = vld [vmem:[%s2262 + $0x18] sm:$0xff]
      %v2267 = vld [vmem:[%s2262 + $0x20] sm:$0xff]
      %v2268 = vld [vmem:[%s2262 + $0x28] sm:$0xff]
      %v2269 = vld [vmem:[%s2262 + $0x30] sm:$0xff]
      %v2270 = vld [vmem:[%s2262 + $0x38] sm:$0xff]
      %v2271 = vmul.f32 %v2263, %v1822
      %v2272 = vmul.f32 %v2264, %v1822
      %v2273 = vmul.f32 %v2265, %v1822
      %v2274 = vmul.f32 %v2266, %v1822
      %v2275 = vmul.f32 %v2267, %v1822
      %v2276 = vmul.f32 %v2268, %v1822
      %v2277 = vmul.f32 %v2269, %v1822
      %v2278 = vmul.f32 %v2270, %v1822
      %v2279 = vadd.f32 %v2271, 0.0
      %v2280 = vadd.f32 %v2272, 0.0
      %v2281 = vadd.f32 %v2273, 0.0
      %v2282 = vadd.f32 %v2274, 0.0
      %v2283 = vadd.f32 %v2275, 0.0
      %v2284 = vadd.f32 %v2276, 0.0
      %v2285 = vadd.f32 %v2277, 0.0
      %v2286 = vadd.f32 %v2278, 0.0
      %s2287 = sadd.s32 %s2261, 288
      %s2288 = scalar_lea.vmem [#allocation2], %s2287
      %v2289 = vld [vmem:[%s2288] sm:$0xff]
      %v2290 = vld [vmem:[%s2288 + $0x8] sm:$0xff]
      %v2291 = vld [vmem:[%s2288 + $0x10] sm:$0xff]
      %v2292 = vld [vmem:[%s2288 + $0x18] sm:$0xff]
      %v2293 = vld [vmem:[%s2288 + $0x20] sm:$0xff]
      %v2294 = vld [vmem:[%s2288 + $0x28] sm:$0xff]
      %v2295 = vld [vmem:[%s2288 + $0x30] sm:$0xff]
      %v2296 = vld [vmem:[%s2288 + $0x38] sm:$0xff]
      %v2297 = vmul.f32 %v2289, %v1849
      %v2298 = vmul.f32 %v2290, %v1849
      %v2299 = vmul.f32 %v2291, %v1849
      %v2300 = vmul.f32 %v2292, %v1849
      %v2301 = vmul.f32 %v2293, %v1849
      %v2302 = vmul.f32 %v2294, %v1849
      %v2303 = vmul.f32 %v2295, %v1849
      %v2304 = vmul.f32 %v2296, %v1849
      %v2305 = vadd.f32 %v2279, %v2297
      %v2306 = vadd.f32 %v2280, %v2298
      %v2307 = vadd.f32 %v2281, %v2299
      %v2308 = vadd.f32 %v2282, %v2300
      %v2309 = vadd.f32 %v2283, %v2301
      %v2310 = vadd.f32 %v2284, %v2302
      %v2311 = vadd.f32 %v2285, %v2303
      %v2312 = vadd.f32 %v2286, %v2304
      %s2313 = sadd.s32 %s2261, 576
      %s2314 = scalar_lea.vmem [#allocation2], %s2313
      %v2315 = vld [vmem:[%s2314] sm:$0xff]
      %v2316 = vld [vmem:[%s2314 + $0x8] sm:$0xff]
      %v2317 = vld [vmem:[%s2314 + $0x10] sm:$0xff]
      %v2318 = vld [vmem:[%s2314 + $0x18] sm:$0xff]
      %v2319 = vld [vmem:[%s2314 + $0x20] sm:$0xff]
      %v2320 = vld [vmem:[%s2314 + $0x28] sm:$0xff]
      %v2321 = vld [vmem:[%s2314 + $0x30] sm:$0xff]
      %v2322 = vld [vmem:[%s2314 + $0x38] sm:$0xff]
      %v2323 = vmul.f32 %v2315, %v1876
      %v2324 = vmul.f32 %v2316, %v1876
      %v2325 = vmul.f32 %v2317, %v1876
      %v2326 = vmul.f32 %v2318, %v1876
      %v2327 = vmul.f32 %v2319, %v1876
      %v2328 = vmul.f32 %v2320, %v1876
      %v2329 = vmul.f32 %v2321, %v1876
      %v2330 = vmul.f32 %v2322, %v1876
      %v2331 = vadd.f32 %v2305, %v2323
      %v2332 = vadd.f32 %v2306, %v2324
      %v2333 = vadd.f32 %v2307, %v2325
      %v2334 = vadd.f32 %v2308, %v2326
      %v2335 = vadd.f32 %v2309, %v2327
      %v2336 = vadd.f32 %v2310, %v2328
      %v2337 = vadd.f32 %v2311, %v2329
      %v2338 = vadd.f32 %v2312, %v2330
      %s2339 = sadd.s32 4, 1
      %s2340 = smul.u32 %s2339, 16
      %s2341 = scalar_lea.vmem [#allocation2], %s2340
      %v2342 = vld [vmem:[%s2341] sm:$0xff]
      %v2343 = vld [vmem:[%s2341 + $0x8] sm:$0xff]
      %v2344 = vld [vmem:[%s2341 + $0x10] sm:$0xff]
      %v2345 = vld [vmem:[%s2341 + $0x18] sm:$0xff]
      %v2346 = vld [vmem:[%s2341 + $0x20] sm:$0xff]
      %v2347 = vld [vmem:[%s2341 + $0x28] sm:$0xff]
      %v2348 = vld [vmem:[%s2341 + $0x30] sm:$0xff]
      %v2349 = vld [vmem:[%s2341 + $0x38] sm:$0xff]
      %v2350 = vmul.f32 %v2342, %v1904
      %v2351 = vmul.f32 %v2343, %v1904
      %v2352 = vmul.f32 %v2344, %v1904
      %v2353 = vmul.f32 %v2345, %v1904
      %v2354 = vmul.f32 %v2346, %v1904
      %v2355 = vmul.f32 %v2347, %v1904
      %v2356 = vmul.f32 %v2348, %v1904
      %v2357 = vmul.f32 %v2349, %v1904
      %v2358 = vadd.f32 %v2331, %v2350
      %v2359 = vadd.f32 %v2332, %v2351
      %v2360 = vadd.f32 %v2333, %v2352
      %v2361 = vadd.f32 %v2334, %v2353
      %v2362 = vadd.f32 %v2335, %v2354
      %v2363 = vadd.f32 %v2336, %v2355
      %v2364 = vadd.f32 %v2337, %v2356
      %v2365 = vadd.f32 %v2338, %v2357
      %s2366 = sadd.s32 %s2340, 288
      %s2367 = scalar_lea.vmem [#allocation2], %s2366
      %v2368 = vld [vmem:[%s2367] sm:$0xff]
      %v2369 = vld [vmem:[%s2367 + $0x8] sm:$0xff]
      %v2370 = vld [vmem:[%s2367 + $0x10] sm:$0xff]
      %v2371 = vld [vmem:[%s2367 + $0x18] sm:$0xff]
      %v2372 = vld [vmem:[%s2367 + $0x20] sm:$0xff]
      %v2373 = vld [vmem:[%s2367 + $0x28] sm:$0xff]
      %v2374 = vld [vmem:[%s2367 + $0x30] sm:$0xff]
      %v2375 = vld [vmem:[%s2367 + $0x38] sm:$0xff]
      %v2376 = vmul.f32 %v2368, %v1931
      %v2377 = vmul.f32 %v2369, %v1931
      %v2378 = vmul.f32 %v2370, %v1931
      %v2379 = vmul.f32 %v2371, %v1931
      %v2380 = vmul.f32 %v2372, %v1931
      %v2381 = vmul.f32 %v2373, %v1931
      %v2382 = vmul.f32 %v2374, %v1931
      %v2383 = vmul.f32 %v2375, %v1931
      %v2384 = vadd.f32 %v2358, %v2376
      %v2385 = vadd.f32 %v2359, %v2377
      %v2386 = vadd.f32 %v2360, %v2378
      %v2387 = vadd.f32 %v2361, %v2379
      %v2388 = vadd.f32 %v2362, %v2380
      %v2389 = vadd.f32 %v2363, %v2381
      %v2390 = vadd.f32 %v2364, %v2382
      %v2391 = vadd.f32 %v2365, %v2383
      %s2392 = sadd.s32 %s2340, 576
      %s2393 = scalar_lea.vmem [#allocation2], %s2392
      %v2394 = vld [vmem:[%s2393] sm:$0xff]
      %v2395 = vld [vmem:[%s2393 + $0x8] sm:$0xff]
      %v2396 = vld [vmem:[%s2393 + $0x10] sm:$0xff]
      %v2397 = vld [vmem:[%s2393 + $0x18] sm:$0xff]
      %v2398 = vld [vmem:[%s2393 + $0x20] sm:$0xff]
      %v2399 = vld [vmem:[%s2393 + $0x28] sm:$0xff]
      %v2400 = vld [vmem:[%s2393 + $0x30] sm:$0xff]
      %v2401 = vld [vmem:[%s2393 + $0x38] sm:$0xff]
      %v2402 = vmul.f32 %v2394, %v1958
      %v2403 = vmul.f32 %v2395, %v1958
      %v2404 = vmul.f32 %v2396, %v1958
      %v2405 = vmul.f32 %v2397, %v1958
      %v2406 = vmul.f32 %v2398, %v1958
      %v2407 = vmul.f32 %v2399, %v1958
      %v2408 = vmul.f32 %v2400, %v1958
      %v2409 = vmul.f32 %v2401, %v1958
      %v2410 = vadd.f32 %v2384, %v2402
      %v2411 = vadd.f32 %v2385, %v2403
      %v2412 = vadd.f32 %v2386, %v2404
      %v2413 = vadd.f32 %v2387, %v2405
      %v2414 = vadd.f32 %v2388, %v2406
      %v2415 = vadd.f32 %v2389, %v2407
      %v2416 = vadd.f32 %v2390, %v2408
      %v2417 = vadd.f32 %v2391, %v2409
      %s2418 = sadd.s32 4, 2
      %s2419 = smul.u32 %s2418, 16
      %s2420 = scalar_lea.vmem [#allocation2], %s2419
      %v2421 = vld [vmem:[%s2420] sm:$0xff]
      %v2422 = vld [vmem:[%s2420 + $0x8] sm:$0xff]
      %v2423 = vld [vmem:[%s2420 + $0x10] sm:$0xff]
      %v2424 = vld [vmem:[%s2420 + $0x18] sm:$0xff]
      %v2425 = vld [vmem:[%s2420 + $0x20] sm:$0xff]
      %v2426 = vld [vmem:[%s2420 + $0x28] sm:$0xff]
      %v2427 = vld [vmem:[%s2420 + $0x30] sm:$0xff]
      %v2428 = vld [vmem:[%s2420 + $0x38] sm:$0xff]
      %v2429 = vmul.f32 %v2421, %v1986
      %v2430 = vmul.f32 %v2422, %v1986
      %v2431 = vmul.f32 %v2423, %v1986
      %v2432 = vmul.f32 %v2424, %v1986
      %v2433 = vmul.f32 %v2425, %v1986
      %v2434 = vmul.f32 %v2426, %v1986
      %v2435 = vmul.f32 %v2427, %v1986
      %v2436 = vmul.f32 %v2428, %v1986
      %v2437 = vadd.f32 %v2410, %v2429
      %v2438 = vadd.f32 %v2411, %v2430
      %v2439 = vadd.f32 %v2412, %v2431
      %v2440 = vadd.f32 %v2413, %v2432
      %v2441 = vadd.f32 %v2414, %v2433
      %v2442 = vadd.f32 %v2415, %v2434
      %v2443 = vadd.f32 %v2416, %v2435
      %v2444 = vadd.f32 %v2417, %v2436
      %s2445 = sadd.s32 %s2419, 288
      %s2446 = scalar_lea.vmem [#allocation2], %s2445
      %v2447 = vld [vmem:[%s2446] sm:$0xff]
      %v2448 = vld [vmem:[%s2446 + $0x8] sm:$0xff]
      %v2449 = vld [vmem:[%s2446 + $0x10] sm:$0xff]
      %v2450 = vld [vmem:[%s2446 + $0x18] sm:$0xff]
      %v2451 = vld [vmem:[%s2446 + $0x20] sm:$0xff]
      %v2452 = vld [vmem:[%s2446 + $0x28] sm:$0xff]
      %v2453 = vld [vmem:[%s2446 + $0x30] sm:$0xff]
      %v2454 = vld [vmem:[%s2446 + $0x38] sm:$0xff]
      %v2455 = vmul.f32 %v2447, %v2013
      %v2456 = vmul.f32 %v2448, %v2013
      %v2457 = vmul.f32 %v2449, %v2013
      %v2458 = vmul.f32 %v2450, %v2013
      %v2459 = vmul.f32 %v2451, %v2013
      %v2460 = vmul.f32 %v2452, %v2013
      %v2461 = vmul.f32 %v2453, %v2013
      %v2462 = vmul.f32 %v2454, %v2013
      %v2463 = vadd.f32 %v2437, %v2455
      %v2464 = vadd.f32 %v2438, %v2456
      %v2465 = vadd.f32 %v2439, %v2457
      %v2466 = vadd.f32 %v2440, %v2458
      %v2467 = vadd.f32 %v2441, %v2459
      %v2468 = vadd.f32 %v2442, %v2460
      %v2469 = vadd.f32 %v2443, %v2461
      %v2470 = vadd.f32 %v2444, %v2462
      %s2471 = sadd.s32 %s2419, 576
      %s2472 = scalar_lea.vmem [#allocation2], %s2471
      %v2473 = vld [vmem:[%s2472] sm:$0xff]
      %v2474 = vld [vmem:[%s2472 + $0x8] sm:$0xff]
      %v2475 = vld [vmem:[%s2472 + $0x10] sm:$0xff]
      %v2476 = vld [vmem:[%s2472 + $0x18] sm:$0xff]
      %v2477 = vld [vmem:[%s2472 + $0x20] sm:$0xff]
      %v2478 = vld [vmem:[%s2472 + $0x28] sm:$0xff]
      %v2479 = vld [vmem:[%s2472 + $0x30] sm:$0xff]
      %v2480 = vld [vmem:[%s2472 + $0x38] sm:$0xff]
      %v2481 = vmul.f32 %v2473, %v2040
      %v2482 = vmul.f32 %v2474, %v2040
      %v2483 = vmul.f32 %v2475, %v2040
      %v2484 = vmul.f32 %v2476, %v2040
      %v2485 = vmul.f32 %v2477, %v2040
      %v2486 = vmul.f32 %v2478, %v2040
      %v2487 = vmul.f32 %v2479, %v2040
      %v2488 = vmul.f32 %v2480, %v2040
      %v2489 = vadd.f32 %v2463, %v2481
      %v2490 = vadd.f32 %v2464, %v2482
      %v2491 = vadd.f32 %v2465, %v2483
      %v2492 = vadd.f32 %v2466, %v2484
      %v2493 = vadd.f32 %v2467, %v2485
      %v2494 = vadd.f32 %v2468, %v2486
      %v2495 = vadd.f32 %v2469, %v2487
      %v2496 = vadd.f32 %v2470, %v2488
      %v2497 = vmul.f32 %v2489, %v2058
      %v2498 = vmul.f32 %v2490, %v2058
      %v2499 = vmul.f32 %v2491, %v2058
      %v2500 = vmul.f32 %v2492, %v2058
      %v2501 = vmul.f32 %v2493, %v2058
      %v2502 = vmul.f32 %v2494, %v2058
      %v2503 = vmul.f32 %v2495, %v2058
      %v2504 = vmul.f32 %v2496, %v2058
      %v2505 = vadd.f32 %v2497, %v2069
      %v2506 = vadd.f32 %v2498, %v2069
      %v2507 = vadd.f32 %v2499, %v2069
      %v2508 = vadd.f32 %v2500, %v2069
      %v2509 = vadd.f32 %v2501, %v2069
      %v2510 = vadd.f32 %v2502, %v2069
      %v2511 = vadd.f32 %v2503, %v2069
      %v2512 = vadd.f32 %v2504, %v2069
      %v2513 = vxor.u32 %v2505, 2147483648
      %v2514 = vxor.u32 %v2506, 2147483648
      %v2515 = vxor.u32 %v2507, 2147483648
      %v2516 = vxor.u32 %v2508, 2147483648
      %v2517 = vxor.u32 %v2509, 2147483648
      %v2518 = vxor.u32 %v2510, 2147483648
      %v2519 = vxor.u32 %v2511, 2147483648
      %v2520 = vxor.u32 %v2512, 2147483648
      %v2521 = vmul.f32 %v2513, 1.442695
      %v2522 = vpow.pop %v2521
      %v2523 = vmul.f32 %v2514, 1.442695
      %v2524 = vpow.pop %v2523
      %v2525 = vmul.f32 %v2515, 1.442695
      %v2526 = vpow.pop %v2525
      %v2527 = vmul.f32 %v2516, 1.442695
      %v2528 = vpow.pop %v2527
      %v2529 = vmul.f32 %v2517, 1.442695
      %v2530 = vpow.pop %v2529
      %v2531 = vmul.f32 %v2518, 1.442695
      %v2532 = vpow.pop %v2531
      %v2533 = vmul.f32 %v2519, 1.442695
      %v2534 = vpow.pop %v2533
      %v2535 = vmul.f32 %v2520, 1.442695
      %v2536 = vpow.pop %v2535
      %v2537 = vadd.f32 %v2522, 1.0
      %v2538 = vadd.f32 %v2524, 1.0
      %v2539 = vadd.f32 %v2526, 1.0
      %v2540 = vadd.f32 %v2528, 1.0
      %v2541 = vadd.f32 %v2530, 1.0
      %v2542 = vadd.f32 %v2532, 1.0
      %v2543 = vadd.f32 %v2534, 1.0
      %v2544 = vadd.f32 %v2536, 1.0
      %v2545 = vrcp.pop %v2537
      %v2546 = vmul.f32 %v2537, %v2545
      %v2547 = vsub.f32 1.0, %v2546
      %v2548 = vmul.f32 %v2545, %v2547
      %v2549 = vadd.f32 %v2545, %v2548
      %vm2550 = vweird.f32 %v2537
      %vm2551 = vweird.f32 %v2545
      %vm2552 = vmor %vm2550, %vm2551
      %v2553 = vsel %vm2552, %v2545, %v2549
      %v2554 = vand.u32 2147483647, %v2537
      %vm2555 = vcmp.eq.f32.partialorder %v2554, 8.507059e+37
      %v2556 = vand.u32 %v2537, 2147483648
      %v2557 = vor.u32 1.1754944e-38, %v2556
      %v2558 = vsel %vm2555, %v2557, %v2553
      %v2559 = vmul.f32 1.0, %v2558
      %v2560 = vrcp.pop %v2538
      %v2561 = vmul.f32 %v2538, %v2560
      %v2562 = vsub.f32 1.0, %v2561
      %v2563 = vmul.f32 %v2560, %v2562
      %v2564 = vadd.f32 %v2560, %v2563
      %vm2565 = vweird.f32 %v2538
      %vm2566 = vweird.f32 %v2560
      %vm2567 = vmor %vm2565, %vm2566
      %v2568 = vsel %vm2567, %v2560, %v2564
      %v2569 = vand.u32 2147483647, %v2538
      %vm2570 = vcmp.eq.f32.partialorder %v2569, 8.507059e+37
      %v2571 = vand.u32 %v2538, 2147483648
      %v2572 = vor.u32 1.1754944e-38, %v2571
      %v2573 = vsel %vm2570, %v2572, %v2568
      %v2574 = vmul.f32 1.0, %v2573
      %v2575 = vrcp.pop %v2539
      %v2576 = vmul.f32 %v2539, %v2575
      %v2577 = vsub.f32 1.0, %v2576
      %v2578 = vmul.f32 %v2575, %v2577
      %v2579 = vadd.f32 %v2575, %v2578
      %vm2580 = vweird.f32 %v2539
      %vm2581 = vweird.f32 %v2575
      %vm2582 = vmor %vm2580, %vm2581
      %v2583 = vsel %vm2582, %v2575, %v2579
      %v2584 = vand.u32 2147483647, %v2539
      %vm2585 = vcmp.eq.f32.partialorder %v2584, 8.507059e+37
      %v2586 = vand.u32 %v2539, 2147483648
      %v2587 = vor.u32 1.1754944e-38, %v2586
      %v2588 = vsel %vm2585, %v2587, %v2583
      %v2589 = vmul.f32 1.0, %v2588
      %v2590 = vrcp.pop %v2540
      %v2591 = vmul.f32 %v2540, %v2590
      %v2592 = vsub.f32 1.0, %v2591
      %v2593 = vmul.f32 %v2590, %v2592
      %v2594 = vadd.f32 %v2590, %v2593
      %vm2595 = vweird.f32 %v2540
      %vm2596 = vweird.f32 %v2590
      %vm2597 = vmor %vm2595, %vm2596
      %v2598 = vsel %vm2597, %v2590, %v2594
      %v2599 = vand.u32 2147483647, %v2540
      %vm2600 = vcmp.eq.f32.partialorder %v2599, 8.507059e+37
      %v2601 = vand.u32 %v2540, 2147483648
      %v2602 = vor.u32 1.1754944e-38, %v2601
      %v2603 = vsel %vm2600, %v2602, %v2598
      %v2604 = vmul.f32 1.0, %v2603
      %v2605 = vrcp.pop %v2541
      %v2606 = vmul.f32 %v2541, %v2605
      %v2607 = vsub.f32 1.0, %v2606
      %v2608 = vmul.f32 %v2605, %v2607
      %v2609 = vadd.f32 %v2605, %v2608
      %vm2610 = vweird.f32 %v2541
      %vm2611 = vweird.f32 %v2605
      %vm2612 = vmor %vm2610, %vm2611
      %v2613 = vsel %vm2612, %v2605, %v2609
      %v2614 = vand.u32 2147483647, %v2541
      %vm2615 = vcmp.eq.f32.partialorder %v2614, 8.507059e+37
      %v2616 = vand.u32 %v2541, 2147483648
      %v2617 = vor.u32 1.1754944e-38, %v2616
      %v2618 = vsel %vm2615, %v2617, %v2613
      %v2619 = vmul.f32 1.0, %v2618
      %v2620 = vrcp.pop %v2542
      %v2621 = vmul.f32 %v2542, %v2620
      %v2622 = vsub.f32 1.0, %v2621
      %v2623 = vmul.f32 %v2620, %v2622
      %v2624 = vadd.f32 %v2620, %v2623
      %vm2625 = vweird.f32 %v2542
      %vm2626 = vweird.f32 %v2620
      %vm2627 = vmor %vm2625, %vm2626
      %v2628 = vsel %vm2627, %v2620, %v2624
      %v2629 = vand.u32 2147483647, %v2542
      %vm2630 = vcmp.eq.f32.partialorder %v2629, 8.507059e+37
      %v2631 = vand.u32 %v2542, 2147483648
      %v2632 = vor.u32 1.1754944e-38, %v2631
      %v2633 = vsel %vm2630, %v2632, %v2628
      %v2634 = vmul.f32 1.0, %v2633
      %v2635 = vrcp.pop %v2543
      %v2636 = vmul.f32 %v2543, %v2635
      %v2637 = vsub.f32 1.0, %v2636
      %v2638 = vmul.f32 %v2635, %v2637
      %v2639 = vadd.f32 %v2635, %v2638
      %vm2640 = vweird.f32 %v2543
      %vm2641 = vweird.f32 %v2635
      %vm2642 = vmor %vm2640, %vm2641
      %v2643 = vsel %vm2642, %v2635, %v2639
      %v2644 = vand.u32 2147483647, %v2543
      %vm2645 = vcmp.eq.f32.partialorder %v2644, 8.507059e+37
      %v2646 = vand.u32 %v2543, 2147483648
      %v2647 = vor.u32 1.1754944e-38, %v2646
      %v2648 = vsel %vm2645, %v2647, %v2643
      %v2649 = vmul.f32 1.0, %v2648
      %v2650 = vrcp.pop %v2544
      %v2651 = vmul.f32 %v2544, %v2650
      %v2652 = vsub.f32 1.0, %v2651
      %v2653 = vmul.f32 %v2650, %v2652
      %v2654 = vadd.f32 %v2650, %v2653
      %vm2655 = vweird.f32 %v2544
      %vm2656 = vweird.f32 %v2650
      %vm2657 = vmor %vm2655, %vm2656
      %v2658 = vsel %vm2657, %v2650, %v2654
      %v2659 = vand.u32 2147483647, %v2544
      %vm2660 = vcmp.eq.f32.partialorder %v2659, 8.507059e+37
      %v2661 = vand.u32 %v2544, 2147483648
      %v2662 = vor.u32 1.1754944e-38, %v2661
      %v2663 = vsel %vm2660, %v2662, %v2658
      %v2664 = vmul.f32 1.0, %v2663
      %v2665 = vmul.f32 %v2505, %v2559
      %v2666 = vmul.f32 %v2506, %v2574
      %v2667 = vmul.f32 %v2507, %v2589
      %v2668 = vmul.f32 %v2508, %v2604
      %v2669 = vmul.f32 %v2509, %v2619
      %v2670 = vmul.f32 %v2510, %v2634
      %v2671 = vmul.f32 %v2511, %v2649
      %v2672 = vmul.f32 %v2512, %v2664
      %s2673 = scalar_lea.vmem [#allocation3], 64
      %2674 = vst [vmem:[%s2673] sm:$0xff] %v2665
      %2675 = vst [vmem:[%s2673 + $0x8] sm:$0xff] %v2666
      %2676 = vst [vmem:[%s2673 + $0x10] sm:$0xff] %v2667
      %2677 = vst [vmem:[%s2673 + $0x18] sm:$0xff] %v2668
      %2678 = vst [vmem:[%s2673 + $0x20] sm:$0xff] %v2669
      %2679 = vst [vmem:[%s2673 + $0x28] sm:$0xff] %v2670
      %2680 = vst [vmem:[%s2673 + $0x30] sm:$0xff] %v2671
      %2681 = vst [vmem:[%s2673 + $0x38] sm:$0xff] %v2672
      %v2682 = vadd.f32 %v2665, %v2666
      %v2683 = vadd.f32 %v2682, %v2667
      %v2684 = vadd.f32 %v2683, %v2668
      %v2685 = vadd.f32 %v2684, %v2669
      %v2686 = vadd.f32 %v2685, %v2670
      %v2687 = vadd.f32 %v2686, %v2671
      %v2688 = vadd.f32 %v2687, %v2672
      %v2689 = vrot.slane %v2688, 4
      %v2690 = vadd.f32 %v2688, %v2689
      %v2691 = vrot.slane %v2690, 2
      %v2692 = vadd.f32 %v2690, %v2691
      %v2693 = vrot.slane %v2692, 1
      %v2694 = vadd.f32 %v2692, %v2693
      %v2695 = vadd.f32 %v2260, %v2694
      %s2696 = smul.u32 8, 16
      %s2697 = scalar_lea.vmem [#allocation2], %s2696
      %v2698 = vld [vmem:[%s2697] sm:$0xff]
      %v2699 = vld [vmem:[%s2697 + $0x8] sm:$0xff]
      %v2700 = vld [vmem:[%s2697 + $0x10] sm:$0xff]
      %v2701 = vld [vmem:[%s2697 + $0x18] sm:$0xff]
      %v2702 = vld [vmem:[%s2697 + $0x20] sm:$0xff]
      %v2703 = vld [vmem:[%s2697 + $0x28] sm:$0xff]
      %v2704 = vld [vmem:[%s2697 + $0x30] sm:$0xff]
      %v2705 = vld [vmem:[%s2697 + $0x38] sm:$0xff]
      %v2706 = vmul.f32 %v2698, %v1822
      %v2707 = vmul.f32 %v2699, %v1822
      %v2708 = vmul.f32 %v2700, %v1822
      %v2709 = vmul.f32 %v2701, %v1822
      %v2710 = vmul.f32 %v2702, %v1822
      %v2711 = vmul.f32 %v2703, %v1822
      %v2712 = vmul.f32 %v2704, %v1822
      %v2713 = vmul.f32 %v2705, %v1822
      %v2714 = vadd.f32 %v2706, 0.0
      %v2715 = vadd.f32 %v2707, 0.0
      %v2716 = vadd.f32 %v2708, 0.0
      %v2717 = vadd.f32 %v2709, 0.0
      %v2718 = vadd.f32 %v2710, 0.0
      %v2719 = vadd.f32 %v2711, 0.0
      %v2720 = vadd.f32 %v2712, 0.0
      %v2721 = vadd.f32 %v2713, 0.0
      %s2722 = sadd.s32 %s2696, 288
      %s2723 = scalar_lea.vmem [#allocation2], %s2722
      %v2724 = vld [vmem:[%s2723] sm:$0xff]
      %v2725 = vld [vmem:[%s2723 + $0x8] sm:$0xff]
      %v2726 = vld [vmem:[%s2723 + $0x10] sm:$0xff]
      %v2727 = vld [vmem:[%s2723 + $0x18] sm:$0xff]
      %v2728 = vld [vmem:[%s2723 + $0x20] sm:$0xff]
      %v2729 = vld [vmem:[%s2723 + $0x28] sm:$0xff]
      %v2730 = vld [vmem:[%s2723 + $0x30] sm:$0xff]
      %v2731 = vld [vmem:[%s2723 + $0x38] sm:$0xff]
      %v2732 = vmul.f32 %v2724, %v1849
      %v2733 = vmul.f32 %v2725, %v1849
      %v2734 = vmul.f32 %v2726, %v1849
      %v2735 = vmul.f32 %v2727, %v1849
      %v2736 = vmul.f32 %v2728, %v1849
      %v2737 = vmul.f32 %v2729, %v1849
      %v2738 = vmul.f32 %v2730, %v1849
      %v2739 = vmul.f32 %v2731, %v1849
      %v2740 = vadd.f32 %v2714, %v2732
      %v2741 = vadd.f32 %v2715, %v2733
      %v2742 = vadd.f32 %v2716, %v2734
      %v2743 = vadd.f32 %v2717, %v2735
      %v2744 = vadd.f32 %v2718, %v2736
      %v2745 = vadd.f32 %v2719, %v2737
      %v2746 = vadd.f32 %v2720, %v2738
      %v2747 = vadd.f32 %v2721, %v2739
      %s2748 = sadd.s32 %s2696, 576
      %s2749 = scalar_lea.vmem [#allocation2], %s2748
      %v2750 = vld [vmem:[%s2749] sm:$0xff]
      %v2751 = vld [vmem:[%s2749 + $0x8] sm:$0xff]
      %v2752 = vld [vmem:[%s2749 + $0x10] sm:$0xff]
      %v2753 = vld [vmem:[%s2749 + $0x18] sm:$0xff]
      %v2754 = vld [vmem:[%s2749 + $0x20] sm:$0xff]
      %v2755 = vld [vmem:[%s2749 + $0x28] sm:$0xff]
      %v2756 = vld [vmem:[%s2749 + $0x30] sm:$0xff]
      %v2757 = vld [vmem:[%s2749 + $0x38] sm:$0xff]
      %v2758 = vmul.f32 %v2750, %v1876
      %v2759 = vmul.f32 %v2751, %v1876
      %v2760 = vmul.f32 %v2752, %v1876
      %v2761 = vmul.f32 %v2753, %v1876
      %v2762 = vmul.f32 %v2754, %v1876
      %v2763 = vmul.f32 %v2755, %v1876
      %v2764 = vmul.f32 %v2756, %v1876
      %v2765 = vmul.f32 %v2757, %v1876
      %v2766 = vadd.f32 %v2740, %v2758
      %v2767 = vadd.f32 %v2741, %v2759
      %v2768 = vadd.f32 %v2742, %v2760
      %v2769 = vadd.f32 %v2743, %v2761
      %v2770 = vadd.f32 %v2744, %v2762
      %v2771 = vadd.f32 %v2745, %v2763
      %v2772 = vadd.f32 %v2746, %v2764
      %v2773 = vadd.f32 %v2747, %v2765
      %s2774 = sadd.s32 8, 1
      %s2775 = smul.u32 %s2774, 16
      %s2776 = scalar_lea.vmem [#allocation2], %s2775
      %v2777 = vld [vmem:[%s2776] sm:$0xff]
      %v2778 = vld [vmem:[%s2776 + $0x8] sm:$0xff]
      %v2779 = vld [vmem:[%s2776 + $0x10] sm:$0xff]
      %v2780 = vld [vmem:[%s2776 + $0x18] sm:$0xff]
      %v2781 = vld [vmem:[%s2776 + $0x20] sm:$0xff]
      %v2782 = vld [vmem:[%s2776 + $0x28] sm:$0xff]
      %v2783 = vld [vmem:[%s2776 + $0x30] sm:$0xff]
      %v2784 = vld [vmem:[%s2776 + $0x38] sm:$0xff]
      %v2785 = vmul.f32 %v2777, %v1904
      %v2786 = vmul.f32 %v2778, %v1904
      %v2787 = vmul.f32 %v2779, %v1904
      %v2788 = vmul.f32 %v2780, %v1904
      %v2789 = vmul.f32 %v2781, %v1904
      %v2790 = vmul.f32 %v2782, %v1904
      %v2791 = vmul.f32 %v2783, %v1904
      %v2792 = vmul.f32 %v2784, %v1904
      %v2793 = vadd.f32 %v2766, %v2785
      %v2794 = vadd.f32 %v2767, %v2786
      %v2795 = vadd.f32 %v2768, %v2787
      %v2796 = vadd.f32 %v2769, %v2788
      %v2797 = vadd.f32 %v2770, %v2789
      %v2798 = vadd.f32 %v2771, %v2790
      %v2799 = vadd.f32 %v2772, %v2791
      %v2800 = vadd.f32 %v2773, %v2792
      %s2801 = sadd.s32 %s2775, 288
      %s2802 = scalar_lea.vmem [#allocation2], %s2801
      %v2803 = vld [vmem:[%s2802] sm:$0xff]
      %v2804 = vld [vmem:[%s2802 + $0x8] sm:$0xff]
      %v2805 = vld [vmem:[%s2802 + $0x10] sm:$0xff]
      %v2806 = vld [vmem:[%s2802 + $0x18] sm:$0xff]
      %v2807 = vld [vmem:[%s2802 + $0x20] sm:$0xff]
      %v2808 = vld [vmem:[%s2802 + $0x28] sm:$0xff]
      %v2809 = vld [vmem:[%s2802 + $0x30] sm:$0xff]
      %v2810 = vld [vmem:[%s2802 + $0x38] sm:$0xff]
      %v2811 = vmul.f32 %v2803, %v1931
      %v2812 = vmul.f32 %v2804, %v1931
      %v2813 = vmul.f32 %v2805, %v1931
      %v2814 = vmul.f32 %v2806, %v1931
      %v2815 = vmul.f32 %v2807, %v1931
      %v2816 = vmul.f32 %v2808, %v1931
      %v2817 = vmul.f32 %v2809, %v1931
      %v2818 = vmul.f32 %v2810, %v1931
      %v2819 = vadd.f32 %v2793, %v2811
      %v2820 = vadd.f32 %v2794, %v2812
      %v2821 = vadd.f32 %v2795, %v2813
      %v2822 = vadd.f32 %v2796, %v2814
      %v2823 = vadd.f32 %v2797, %v2815
      %v2824 = vadd.f32 %v2798, %v2816
      %v2825 = vadd.f32 %v2799, %v2817
      %v2826 = vadd.f32 %v2800, %v2818
      %s2827 = sadd.s32 %s2775, 576
      %s2828 = scalar_lea.vmem [#allocation2], %s2827
      %v2829 = vld [vmem:[%s2828] sm:$0xff]
      %v2830 = vld [vmem:[%s2828 + $0x8] sm:$0xff]
      %v2831 = vld [vmem:[%s2828 + $0x10] sm:$0xff]
      %v2832 = vld [vmem:[%s2828 + $0x18] sm:$0xff]
      %v2833 = vld [vmem:[%s2828 + $0x20] sm:$0xff]
      %v2834 = vld [vmem:[%s2828 + $0x28] sm:$0xff]
      %v2835 = vld [vmem:[%s2828 + $0x30] sm:$0xff]
      %v2836 = vld [vmem:[%s2828 + $0x38] sm:$0xff]
      %v2837 = vmul.f32 %v2829, %v1958
      %v2838 = vmul.f32 %v2830, %v1958
      %v2839 = vmul.f32 %v2831, %v1958
      %v2840 = vmul.f32 %v2832, %v1958
      %v2841 = vmul.f32 %v2833, %v1958
      %v2842 = vmul.f32 %v2834, %v1958
      %v2843 = vmul.f32 %v2835, %v1958
      %v2844 = vmul.f32 %v2836, %v1958
      %v2845 = vadd.f32 %v2819, %v2837
      %v2846 = vadd.f32 %v2820, %v2838
      %v2847 = vadd.f32 %v2821, %v2839
      %v2848 = vadd.f32 %v2822, %v2840
      %v2849 = vadd.f32 %v2823, %v2841
      %v2850 = vadd.f32 %v2824, %v2842
      %v2851 = vadd.f32 %v2825, %v2843
      %v2852 = vadd.f32 %v2826, %v2844
      %s2853 = sadd.s32 8, 2
      %s2854 = smul.u32 %s2853, 16
      %s2855 = scalar_lea.vmem [#allocation2], %s2854
      %v2856 = vld [vmem:[%s2855] sm:$0xff]
      %v2857 = vld [vmem:[%s2855 + $0x8] sm:$0xff]
      %v2858 = vld [vmem:[%s2855 + $0x10] sm:$0xff]
      %v2859 = vld [vmem:[%s2855 + $0x18] sm:$0xff]
      %v2860 = vld [vmem:[%s2855 + $0x20] sm:$0xff]
      %v2861 = vld [vmem:[%s2855 + $0x28] sm:$0xff]
      %v2862 = vld [vmem:[%s2855 + $0x30] sm:$0xff]
      %v2863 = vld [vmem:[%s2855 + $0x38] sm:$0xff]
      %v2864 = vmul.f32 %v2856, %v1986
      %v2865 = vmul.f32 %v2857, %v1986
      %v2866 = vmul.f32 %v2858, %v1986
      %v2867 = vmul.f32 %v2859, %v1986
      %v2868 = vmul.f32 %v2860, %v1986
      %v2869 = vmul.f32 %v2861, %v1986
      %v2870 = vmul.f32 %v2862, %v1986
      %v2871 = vmul.f32 %v2863, %v1986
      %v2872 = vadd.f32 %v2845, %v2864
      %v2873 = vadd.f32 %v2846, %v2865
      %v2874 = vadd.f32 %v2847, %v2866
      %v2875 = vadd.f32 %v2848, %v2867
      %v2876 = vadd.f32 %v2849, %v2868
      %v2877 = vadd.f32 %v2850, %v2869
      %v2878 = vadd.f32 %v2851, %v2870
      %v2879 = vadd.f32 %v2852, %v2871
      %s2880 = sadd.s32 %s2854, 288
      %s2881 = scalar_lea.vmem [#allocation2], %s2880
      %v2882 = vld [vmem:[%s2881] sm:$0xff]
      %v2883 = vld [vmem:[%s2881 + $0x8] sm:$0xff]
      %v2884 = vld [vmem:[%s2881 + $0x10] sm:$0xff]
      %v2885 = vld [vmem:[%s2881 + $0x18] sm:$0xff]
      %v2886 = vld [vmem:[%s2881 + $0x20] sm:$0xff]
      %v2887 = vld [vmem:[%s2881 + $0x28] sm:$0xff]
      %v2888 = vld [vmem:[%s2881 + $0x30] sm:$0xff]
      %v2889 = vld [vmem:[%s2881 + $0x38] sm:$0xff]
      %v2890 = vmul.f32 %v2882, %v2013
      %v2891 = vmul.f32 %v2883, %v2013
      %v2892 = vmul.f32 %v2884, %v2013
      %v2893 = vmul.f32 %v2885, %v2013
      %v2894 = vmul.f32 %v2886, %v2013
      %v2895 = vmul.f32 %v2887, %v2013
      %v2896 = vmul.f32 %v2888, %v2013
      %v2897 = vmul.f32 %v2889, %v2013
      %v2898 = vadd.f32 %v2872, %v2890
      %v2899 = vadd.f32 %v2873, %v2891
      %v2900 = vadd.f32 %v2874, %v2892
      %v2901 = vadd.f32 %v2875, %v2893
      %v2902 = vadd.f32 %v2876, %v2894
      %v2903 = vadd.f32 %v2877, %v2895
      %v2904 = vadd.f32 %v2878, %v2896
      %v2905 = vadd.f32 %v2879, %v2897
      %s2906 = sadd.s32 %s2854, 576
      %s2907 = scalar_lea.vmem [#allocation2], %s2906
      %v2908 = vld [vmem:[%s2907] sm:$0xff]
      %v2909 = vld [vmem:[%s2907 + $0x8] sm:$0xff]
      %v2910 = vld [vmem:[%s2907 + $0x10] sm:$0xff]
      %v2911 = vld [vmem:[%s2907 + $0x18] sm:$0xff]
      %v2912 = vld [vmem:[%s2907 + $0x20] sm:$0xff]
      %v2913 = vld [vmem:[%s2907 + $0x28] sm:$0xff]
      %v2914 = vld [vmem:[%s2907 + $0x30] sm:$0xff]
      %v2915 = vld [vmem:[%s2907 + $0x38] sm:$0xff]
      %v2916 = vmul.f32 %v2908, %v2040
      %v2917 = vmul.f32 %v2909, %v2040
      %v2918 = vmul.f32 %v2910, %v2040
      %v2919 = vmul.f32 %v2911, %v2040
      %v2920 = vmul.f32 %v2912, %v2040
      %v2921 = vmul.f32 %v2913, %v2040
      %v2922 = vmul.f32 %v2914, %v2040
      %v2923 = vmul.f32 %v2915, %v2040
      %v2924 = vadd.f32 %v2898, %v2916
      %v2925 = vadd.f32 %v2899, %v2917
      %v2926 = vadd.f32 %v2900, %v2918
      %v2927 = vadd.f32 %v2901, %v2919
      %v2928 = vadd.f32 %v2902, %v2920
      %v2929 = vadd.f32 %v2903, %v2921
      %v2930 = vadd.f32 %v2904, %v2922
      %v2931 = vadd.f32 %v2905, %v2923
      %v2932 = vmul.f32 %v2924, %v2058
      %v2933 = vmul.f32 %v2925, %v2058
      %v2934 = vmul.f32 %v2926, %v2058
      %v2935 = vmul.f32 %v2927, %v2058
      %v2936 = vmul.f32 %v2928, %v2058
      %v2937 = vmul.f32 %v2929, %v2058
      %v2938 = vmul.f32 %v2930, %v2058
      %v2939 = vmul.f32 %v2931, %v2058
      %v2940 = vadd.f32 %v2932, %v2069
      %v2941 = vadd.f32 %v2933, %v2069
      %v2942 = vadd.f32 %v2934, %v2069
      %v2943 = vadd.f32 %v2935, %v2069
      %v2944 = vadd.f32 %v2936, %v2069
      %v2945 = vadd.f32 %v2937, %v2069
      %v2946 = vadd.f32 %v2938, %v2069
      %v2947 = vadd.f32 %v2939, %v2069
      %v2948 = vxor.u32 %v2940, 2147483648
      %v2949 = vxor.u32 %v2941, 2147483648
      %v2950 = vxor.u32 %v2942, 2147483648
      %v2951 = vxor.u32 %v2943, 2147483648
      %v2952 = vxor.u32 %v2944, 2147483648
      %v2953 = vxor.u32 %v2945, 2147483648
      %v2954 = vxor.u32 %v2946, 2147483648
      %v2955 = vxor.u32 %v2947, 2147483648
      %v2956 = vmul.f32 %v2948, 1.442695
      %v2957 = vpow.pop %v2956
      %v2958 = vmul.f32 %v2949, 1.442695
      %v2959 = vpow.pop %v2958
      %v2960 = vmul.f32 %v2950, 1.442695
      %v2961 = vpow.pop %v2960
      %v2962 = vmul.f32 %v2951, 1.442695
      %v2963 = vpow.pop %v2962
      %v2964 = vmul.f32 %v2952, 1.442695
      %v2965 = vpow.pop %v2964
      %v2966 = vmul.f32 %v2953, 1.442695
      %v2967 = vpow.pop %v2966
      %v2968 = vmul.f32 %v2954, 1.442695
      %v2969 = vpow.pop %v2968
      %v2970 = vmul.f32 %v2955, 1.442695
      %v2971 = vpow.pop %v2970
      %v2972 = vadd.f32 %v2957, 1.0
      %v2973 = vadd.f32 %v2959, 1.0
      %v2974 = vadd.f32 %v2961, 1.0
      %v2975 = vadd.f32 %v2963, 1.0
      %v2976 = vadd.f32 %v2965, 1.0
      %v2977 = vadd.f32 %v2967, 1.0
      %v2978 = vadd.f32 %v2969, 1.0
      %v2979 = vadd.f32 %v2971, 1.0
      %v2980 = vrcp.pop %v2972
      %v2981 = vmul.f32 %v2972, %v2980
      %v2982 = vsub.f32 1.0, %v2981
      %v2983 = vmul.f32 %v2980, %v2982
      %v2984 = vadd.f32 %v2980, %v2983
      %vm2985 = vweird.f32 %v2972
      %vm2986 = vweird.f32 %v2980
      %vm2987 = vmor %vm2985, %vm2986
      %v2988 = vsel %vm2987, %v2980, %v2984
      %v2989 = vand.u32 2147483647, %v2972
      %vm2990 = vcmp.eq.f32.partialorder %v2989, 8.507059e+37
      %v2991 = vand.u32 %v2972, 2147483648
      %v2992 = vor.u32 1.1754944e-38, %v2991
      %v2993 = vsel %vm2990, %v2992, %v2988
      %v2994 = vmul.f32 1.0, %v2993
      %v2995 = vrcp.pop %v2973
      %v2996 = vmul.f32 %v2973, %v2995
      %v2997 = vsub.f32 1.0, %v2996
      %v2998 = vmul.f32 %v2995, %v2997
      %v2999 = vadd.f32 %v2995, %v2998
      %vm3000 = vweird.f32 %v2973
      %vm3001 = vweird.f32 %v2995
      %vm3002 = vmor %vm3000, %vm3001
      %v3003 = vsel %vm3002, %v2995, %v2999
      %v3004 = vand.u32 2147483647, %v2973
      %vm3005 = vcmp.eq.f32.partialorder %v3004, 8.507059e+37
      %v3006 = vand.u32 %v2973, 2147483648
      %v3007 = vor.u32 1.1754944e-38, %v3006
      %v3008 = vsel %vm3005, %v3007, %v3003
      %v3009 = vmul.f32 1.0, %v3008
      %v3010 = vrcp.pop %v2974
      %v3011 = vmul.f32 %v2974, %v3010
      %v3012 = vsub.f32 1.0, %v3011
      %v3013 = vmul.f32 %v3010, %v3012
      %v3014 = vadd.f32 %v3010, %v3013
      %vm3015 = vweird.f32 %v2974
      %vm3016 = vweird.f32 %v3010
      %vm3017 = vmor %vm3015, %vm3016
      %v3018 = vsel %vm3017, %v3010, %v3014
      %v3019 = vand.u32 2147483647, %v2974
      %vm3020 = vcmp.eq.f32.partialorder %v3019, 8.507059e+37
      %v3021 = vand.u32 %v2974, 2147483648
      %v3022 = vor.u32 1.1754944e-38, %v3021
      %v3023 = vsel %vm3020, %v3022, %v3018
      %v3024 = vmul.f32 1.0, %v3023
      %v3025 = vrcp.pop %v2975
      %v3026 = vmul.f32 %v2975, %v3025
      %v3027 = vsub.f32 1.0, %v3026
      %v3028 = vmul.f32 %v3025, %v3027
      %v3029 = vadd.f32 %v3025, %v3028
      %vm3030 = vweird.f32 %v2975
      %vm3031 = vweird.f32 %v3025
      %vm3032 = vmor %vm3030, %vm3031
      %v3033 = vsel %vm3032, %v3025, %v3029
      %v3034 = vand.u32 2147483647, %v2975
      %vm3035 = vcmp.eq.f32.partialorder %v3034, 8.507059e+37
      %v3036 = vand.u32 %v2975, 2147483648
      %v3037 = vor.u32 1.1754944e-38, %v3036
      %v3038 = vsel %vm3035, %v3037, %v3033
      %v3039 = vmul.f32 1.0, %v3038
      %v3040 = vrcp.pop %v2976
      %v3041 = vmul.f32 %v2976, %v3040
      %v3042 = vsub.f32 1.0, %v3041
      %v3043 = vmul.f32 %v3040, %v3042
      %v3044 = vadd.f32 %v3040, %v3043
      %vm3045 = vweird.f32 %v2976
      %vm3046 = vweird.f32 %v3040
      %vm3047 = vmor %vm3045, %vm3046
      %v3048 = vsel %vm3047, %v3040, %v3044
      %v3049 = vand.u32 2147483647, %v2976
      %vm3050 = vcmp.eq.f32.partialorder %v3049, 8.507059e+37
      %v3051 = vand.u32 %v2976, 2147483648
      %v3052 = vor.u32 1.1754944e-38, %v3051
      %v3053 = vsel %vm3050, %v3052, %v3048
      %v3054 = vmul.f32 1.0, %v3053
      %v3055 = vrcp.pop %v2977
      %v3056 = vmul.f32 %v2977, %v3055
      %v3057 = vsub.f32 1.0, %v3056
      %v3058 = vmul.f32 %v3055, %v3057
      %v3059 = vadd.f32 %v3055, %v3058
      %vm3060 = vweird.f32 %v2977
      %vm3061 = vweird.f32 %v3055
      %vm3062 = vmor %vm3060, %vm3061
      %v3063 = vsel %vm3062, %v3055, %v3059
      %v3064 = vand.u32 2147483647, %v2977
      %vm3065 = vcmp.eq.f32.partialorder %v3064, 8.507059e+37
      %v3066 = vand.u32 %v2977, 2147483648
      %v3067 = vor.u32 1.1754944e-38, %v3066
      %v3068 = vsel %vm3065, %v3067, %v3063
      %v3069 = vmul.f32 1.0, %v3068
      %v3070 = vrcp.pop %v2978
      %v3071 = vmul.f32 %v2978, %v3070
      %v3072 = vsub.f32 1.0, %v3071
      %v3073 = vmul.f32 %v3070, %v3072
      %v3074 = vadd.f32 %v3070, %v3073
      %vm3075 = vweird.f32 %v2978
      %vm3076 = vweird.f32 %v3070
      %vm3077 = vmor %vm3075, %vm3076
      %v3078 = vsel %vm3077, %v3070, %v3074
      %v3079 = vand.u32 2147483647, %v2978
      %vm3080 = vcmp.eq.f32.partialorder %v3079, 8.507059e+37
      %v3081 = vand.u32 %v2978, 2147483648
      %v3082 = vor.u32 1.1754944e-38, %v3081
      %v3083 = vsel %vm3080, %v3082, %v3078
      %v3084 = vmul.f32 1.0, %v3083
      %v3085 = vrcp.pop %v2979
      %v3086 = vmul.f32 %v2979, %v3085
      %v3087 = vsub.f32 1.0, %v3086
      %v3088 = vmul.f32 %v3085, %v3087
      %v3089 = vadd.f32 %v3085, %v3088
      %vm3090 = vweird.f32 %v2979
      %vm3091 = vweird.f32 %v3085
      %vm3092 = vmor %vm3090, %vm3091
      %v3093 = vsel %vm3092, %v3085, %v3089
      %v3094 = vand.u32 2147483647, %v2979
      %vm3095 = vcmp.eq.f32.partialorder %v3094, 8.507059e+37
      %v3096 = vand.u32 %v2979, 2147483648
      %v3097 = vor.u32 1.1754944e-38, %v3096
      %v3098 = vsel %vm3095, %v3097, %v3093
      %v3099 = vmul.f32 1.0, %v3098
      %v3100 = vmul.f32 %v2940, %v2994
      %v3101 = vmul.f32 %v2941, %v3009
      %v3102 = vmul.f32 %v2942, %v3024
      %v3103 = vmul.f32 %v2943, %v3039
      %v3104 = vmul.f32 %v2944, %v3054
      %v3105 = vmul.f32 %v2945, %v3069
      %v3106 = vmul.f32 %v2946, %v3084
      %v3107 = vmul.f32 %v2947, %v3099
      %s3108 = scalar_lea.vmem [#allocation3], 128
      %3109 = vst [vmem:[%s3108] sm:$0xff] %v3100
      %3110 = vst [vmem:[%s3108 + $0x8] sm:$0xff] %v3101
      %3111 = vst [vmem:[%s3108 + $0x10] sm:$0xff] %v3102
      %3112 = vst [vmem:[%s3108 + $0x18] sm:$0xff] %v3103
      %3113 = vst [vmem:[%s3108 + $0x20] sm:$0xff] %v3104
      %3114 = vst [vmem:[%s3108 + $0x28] sm:$0xff] %v3105
      %3115 = vst [vmem:[%s3108 + $0x30] sm:$0xff] %v3106
      %3116 = vst [vmem:[%s3108 + $0x38] sm:$0xff] %v3107
      %v3117 = vadd.f32 %v3100, %v3101
      %v3118 = vadd.f32 %v3117, %v3102
      %v3119 = vadd.f32 %v3118, %v3103
      %v3120 = vadd.f32 %v3119, %v3104
      %v3121 = vadd.f32 %v3120, %v3105
      %v3122 = vadd.f32 %v3121, %v3106
      %v3123 = vadd.f32 %v3122, %v3107
      %v3124 = vrot.slane %v3123, 4
      %v3125 = vadd.f32 %v3123, %v3124
      %v3126 = vrot.slane %v3125, 2
      %v3127 = vadd.f32 %v3125, %v3126
      %v3128 = vrot.slane %v3127, 1
      %v3129 = vadd.f32 %v3127, %v3128
      %v3130 = vadd.f32 %v2695, %v3129
      %s3131 = smul.u32 12, 16
      %s3132 = scalar_lea.vmem [#allocation2], %s3131
      %v3133 = vld [vmem:[%s3132] sm:$0xff]
      %v3134 = vld [vmem:[%s3132 + $0x8] sm:$0xff]
      %v3135 = vld [vmem:[%s3132 + $0x10] sm:$0xff]
      %v3136 = vld [vmem:[%s3132 + $0x18] sm:$0xff]
      %v3137 = vld [vmem:[%s3132 + $0x20] sm:$0xff]
      %v3138 = vld [vmem:[%s3132 + $0x28] sm:$0xff]
      %v3139 = vld [vmem:[%s3132 + $0x30] sm:$0xff]
      %v3140 = vld [vmem:[%s3132 + $0x38] sm:$0xff]
      %v3141 = vmul.f32 %v3133, %v1822
      %v3142 = vmul.f32 %v3134, %v1822
      %v3143 = vmul.f32 %v3135, %v1822
      %v3144 = vmul.f32 %v3136, %v1822
      %v3145 = vmul.f32 %v3137, %v1822
      %v3146 = vmul.f32 %v3138, %v1822
      %v3147 = vmul.f32 %v3139, %v1822
      %v3148 = vmul.f32 %v3140, %v1822
      %v3149 = vadd.f32 %v3141, 0.0
      %v3150 = vadd.f32 %v3142, 0.0
      %v3151 = vadd.f32 %v3143, 0.0
      %v3152 = vadd.f32 %v3144, 0.0
      %v3153 = vadd.f32 %v3145, 0.0
      %v3154 = vadd.f32 %v3146, 0.0
      %v3155 = vadd.f32 %v3147, 0.0
      %v3156 = vadd.f32 %v3148, 0.0
      %s3157 = sadd.s32 %s3131, 288
      %s3158 = scalar_lea.vmem [#allocation2], %s3157
      %v3159 = vld [vmem:[%s3158] sm:$0xff]
      %v3160 = vld [vmem:[%s3158 + $0x8] sm:$0xff]
      %v3161 = vld [vmem:[%s3158 + $0x10] sm:$0xff]
      %v3162 = vld [vmem:[%s3158 + $0x18] sm:$0xff]
      %v3163 = vld [vmem:[%s3158 + $0x20] sm:$0xff]
      %v3164 = vld [vmem:[%s3158 + $0x28] sm:$0xff]
      %v3165 = vld [vmem:[%s3158 + $0x30] sm:$0xff]
      %v3166 = vld [vmem:[%s3158 + $0x38] sm:$0xff]
      %v3167 = vmul.f32 %v3159, %v1849
      %v3168 = vmul.f32 %v3160, %v1849
      %v3169 = vmul.f32 %v3161, %v1849
      %v3170 = vmul.f32 %v3162, %v1849
      %v3171 = vmul.f32 %v3163, %v1849
      %v3172 = vmul.f32 %v3164, %v1849
      %v3173 = vmul.f32 %v3165, %v1849
      %v3174 = vmul.f32 %v3166, %v1849
      %v3175 = vadd.f32 %v3149, %v3167
      %v3176 = vadd.f32 %v3150, %v3168
      %v3177 = vadd.f32 %v3151, %v3169
      %v3178 = vadd.f32 %v3152, %v3170
      %v3179 = vadd.f32 %v3153, %v3171
      %v3180 = vadd.f32 %v3154, %v3172
      %v3181 = vadd.f32 %v3155, %v3173
      %v3182 = vadd.f32 %v3156, %v3174
      %s3183 = sadd.s32 %s3131, 576
      %s3184 = scalar_lea.vmem [#allocation2], %s3183
      %v3185 = vld [vmem:[%s3184] sm:$0xff]
      %v3186 = vld [vmem:[%s3184 + $0x8] sm:$0xff]
      %v3187 = vld [vmem:[%s3184 + $0x10] sm:$0xff]
      %v3188 = vld [vmem:[%s3184 + $0x18] sm:$0xff]
      %v3189 = vld [vmem:[%s3184 + $0x20] sm:$0xff]
      %v3190 = vld [vmem:[%s3184 + $0x28] sm:$0xff]
      %v3191 = vld [vmem:[%s3184 + $0x30] sm:$0xff]
      %v3192 = vld [vmem:[%s3184 + $0x38] sm:$0xff]
      %v3193 = vmul.f32 %v3185, %v1876
      %v3194 = vmul.f32 %v3186, %v1876
      %v3195 = vmul.f32 %v3187, %v1876
      %v3196 = vmul.f32 %v3188, %v1876
      %v3197 = vmul.f32 %v3189, %v1876
      %v3198 = vmul.f32 %v3190, %v1876
      %v3199 = vmul.f32 %v3191, %v1876
      %v3200 = vmul.f32 %v3192, %v1876
      %v3201 = vadd.f32 %v3175, %v3193
      %v3202 = vadd.f32 %v3176, %v3194
      %v3203 = vadd.f32 %v3177, %v3195
      %v3204 = vadd.f32 %v3178, %v3196
      %v3205 = vadd.f32 %v3179, %v3197
      %v3206 = vadd.f32 %v3180, %v3198
      %v3207 = vadd.f32 %v3181, %v3199
      %v3208 = vadd.f32 %v3182, %v3200
      %s3209 = sadd.s32 12, 1
      %s3210 = smul.u32 %s3209, 16
      %s3211 = scalar_lea.vmem [#allocation2], %s3210
      %v3212 = vld [vmem:[%s3211] sm:$0xff]
      %v3213 = vld [vmem:[%s3211 + $0x8] sm:$0xff]
      %v3214 = vld [vmem:[%s3211 + $0x10] sm:$0xff]
      %v3215 = vld [vmem:[%s3211 + $0x18] sm:$0xff]
      %v3216 = vld [vmem:[%s3211 + $0x20] sm:$0xff]
      %v3217 = vld [vmem:[%s3211 + $0x28] sm:$0xff]
      %v3218 = vld [vmem:[%s3211 + $0x30] sm:$0xff]
      %v3219 = vld [vmem:[%s3211 + $0x38] sm:$0xff]
      %v3220 = vmul.f32 %v3212, %v1904
      %v3221 = vmul.f32 %v3213, %v1904
      %v3222 = vmul.f32 %v3214, %v1904
      %v3223 = vmul.f32 %v3215, %v1904
      %v3224 = vmul.f32 %v3216, %v1904
      %v3225 = vmul.f32 %v3217, %v1904
      %v3226 = vmul.f32 %v3218, %v1904
      %v3227 = vmul.f32 %v3219, %v1904
      %v3228 = vadd.f32 %v3201, %v3220
      %v3229 = vadd.f32 %v3202, %v3221
      %v3230 = vadd.f32 %v3203, %v3222
      %v3231 = vadd.f32 %v3204, %v3223
      %v3232 = vadd.f32 %v3205, %v3224
      %v3233 = vadd.f32 %v3206, %v3225
      %v3234 = vadd.f32 %v3207, %v3226
      %v3235 = vadd.f32 %v3208, %v3227
      %s3236 = sadd.s32 %s3210, 288
      %s3237 = scalar_lea.vmem [#allocation2], %s3236
      %v3238 = vld [vmem:[%s3237] sm:$0xff]
      %v3239 = vld [vmem:[%s3237 + $0x8] sm:$0xff]
      %v3240 = vld [vmem:[%s3237 + $0x10] sm:$0xff]
      %v3241 = vld [vmem:[%s3237 + $0x18] sm:$0xff]
      %v3242 = vld [vmem:[%s3237 + $0x20] sm:$0xff]
      %v3243 = vld [vmem:[%s3237 + $0x28] sm:$0xff]
      %v3244 = vld [vmem:[%s3237 + $0x30] sm:$0xff]
      %v3245 = vld [vmem:[%s3237 + $0x38] sm:$0xff]
      %v3246 = vmul.f32 %v3238, %v1931
      %v3247 = vmul.f32 %v3239, %v1931
      %v3248 = vmul.f32 %v3240, %v1931
      %v3249 = vmul.f32 %v3241, %v1931
      %v3250 = vmul.f32 %v3242, %v1931
      %v3251 = vmul.f32 %v3243, %v1931
      %v3252 = vmul.f32 %v3244, %v1931
      %v3253 = vmul.f32 %v3245, %v1931
      %v3254 = vadd.f32 %v3228, %v3246
      %v3255 = vadd.f32 %v3229, %v3247
      %v3256 = vadd.f32 %v3230, %v3248
      %v3257 = vadd.f32 %v3231, %v3249
      %v3258 = vadd.f32 %v3232, %v3250
      %v3259 = vadd.f32 %v3233, %v3251
      %v3260 = vadd.f32 %v3234, %v3252
      %v3261 = vadd.f32 %v3235, %v3253
      %s3262 = sadd.s32 %s3210, 576
      %s3263 = scalar_lea.vmem [#allocation2], %s3262
      %v3264 = vld [vmem:[%s3263] sm:$0xff]
      %v3265 = vld [vmem:[%s3263 + $0x8] sm:$0xff]
      %v3266 = vld [vmem:[%s3263 + $0x10] sm:$0xff]
      %v3267 = vld [vmem:[%s3263 + $0x18] sm:$0xff]
      %v3268 = vld [vmem:[%s3263 + $0x20] sm:$0xff]
      %v3269 = vld [vmem:[%s3263 + $0x28] sm:$0xff]
      %v3270 = vld [vmem:[%s3263 + $0x30] sm:$0xff]
      %v3271 = vld [vmem:[%s3263 + $0x38] sm:$0xff]
      %v3272 = vmul.f32 %v3264, %v1958
      %v3273 = vmul.f32 %v3265, %v1958
      %v3274 = vmul.f32 %v3266, %v1958
      %v3275 = vmul.f32 %v3267, %v1958
      %v3276 = vmul.f32 %v3268, %v1958
      %v3277 = vmul.f32 %v3269, %v1958
      %v3278 = vmul.f32 %v3270, %v1958
      %v3279 = vmul.f32 %v3271, %v1958
      %v3280 = vadd.f32 %v3254, %v3272
      %v3281 = vadd.f32 %v3255, %v3273
      %v3282 = vadd.f32 %v3256, %v3274
      %v3283 = vadd.f32 %v3257, %v3275
      %v3284 = vadd.f32 %v3258, %v3276
      %v3285 = vadd.f32 %v3259, %v3277
      %v3286 = vadd.f32 %v3260, %v3278
      %v3287 = vadd.f32 %v3261, %v3279
      %s3288 = sadd.s32 12, 2
      %s3289 = smul.u32 %s3288, 16
      %s3290 = scalar_lea.vmem [#allocation2], %s3289
      %v3291 = vld [vmem:[%s3290] sm:$0xff]
      %v3292 = vld [vmem:[%s3290 + $0x8] sm:$0xff]
      %v3293 = vld [vmem:[%s3290 + $0x10] sm:$0xff]
      %v3294 = vld [vmem:[%s3290 + $0x18] sm:$0xff]
      %v3295 = vld [vmem:[%s3290 + $0x20] sm:$0xff]
      %v3296 = vld [vmem:[%s3290 + $0x28] sm:$0xff]
      %v3297 = vld [vmem:[%s3290 + $0x30] sm:$0xff]
      %v3298 = vld [vmem:[%s3290 + $0x38] sm:$0xff]
      %v3299 = vmul.f32 %v3291, %v1986
      %v3300 = vmul.f32 %v3292, %v1986
      %v3301 = vmul.f32 %v3293, %v1986
      %v3302 = vmul.f32 %v3294, %v1986
      %v3303 = vmul.f32 %v3295, %v1986
      %v3304 = vmul.f32 %v3296, %v1986
      %v3305 = vmul.f32 %v3297, %v1986
      %v3306 = vmul.f32 %v3298, %v1986
      %v3307 = vadd.f32 %v3280, %v3299
      %v3308 = vadd.f32 %v3281, %v3300
      %v3309 = vadd.f32 %v3282, %v3301
      %v3310 = vadd.f32 %v3283, %v3302
      %v3311 = vadd.f32 %v3284, %v3303
      %v3312 = vadd.f32 %v3285, %v3304
      %v3313 = vadd.f32 %v3286, %v3305
      %v3314 = vadd.f32 %v3287, %v3306
      %s3315 = sadd.s32 %s3289, 288
      %s3316 = scalar_lea.vmem [#allocation2], %s3315
      %v3317 = vld [vmem:[%s3316] sm:$0xff]
      %v3318 = vld [vmem:[%s3316 + $0x8] sm:$0xff]
      %v3319 = vld [vmem:[%s3316 + $0x10] sm:$0xff]
      %v3320 = vld [vmem:[%s3316 + $0x18] sm:$0xff]
      %v3321 = vld [vmem:[%s3316 + $0x20] sm:$0xff]
      %v3322 = vld [vmem:[%s3316 + $0x28] sm:$0xff]
      %v3323 = vld [vmem:[%s3316 + $0x30] sm:$0xff]
      %v3324 = vld [vmem:[%s3316 + $0x38] sm:$0xff]
      %v3325 = vmul.f32 %v3317, %v2013
      %v3326 = vmul.f32 %v3318, %v2013
      %v3327 = vmul.f32 %v3319, %v2013
      %v3328 = vmul.f32 %v3320, %v2013
      %v3329 = vmul.f32 %v3321, %v2013
      %v3330 = vmul.f32 %v3322, %v2013
      %v3331 = vmul.f32 %v3323, %v2013
      %v3332 = vmul.f32 %v3324, %v2013
      %v3333 = vadd.f32 %v3307, %v3325
      %v3334 = vadd.f32 %v3308, %v3326
      %v3335 = vadd.f32 %v3309, %v3327
      %v3336 = vadd.f32 %v3310, %v3328
      %v3337 = vadd.f32 %v3311, %v3329
      %v3338 = vadd.f32 %v3312, %v3330
      %v3339 = vadd.f32 %v3313, %v3331
      %v3340 = vadd.f32 %v3314, %v3332
      %s3341 = sadd.s32 %s3289, 576
      %s3342 = scalar_lea.vmem [#allocation2], %s3341
      %v3343 = vld [vmem:[%s3342] sm:$0xff]
      %v3344 = vld [vmem:[%s3342 + $0x8] sm:$0xff]
      %v3345 = vld [vmem:[%s3342 + $0x10] sm:$0xff]
      %v3346 = vld [vmem:[%s3342 + $0x18] sm:$0xff]
      %v3347 = vld [vmem:[%s3342 + $0x20] sm:$0xff]
      %v3348 = vld [vmem:[%s3342 + $0x28] sm:$0xff]
      %v3349 = vld [vmem:[%s3342 + $0x30] sm:$0xff]
      %v3350 = vld [vmem:[%s3342 + $0x38] sm:$0xff]
      %v3351 = vmul.f32 %v3343, %v2040
      %v3352 = vmul.f32 %v3344, %v2040
      %v3353 = vmul.f32 %v3345, %v2040
      %v3354 = vmul.f32 %v3346, %v2040
      %v3355 = vmul.f32 %v3347, %v2040
      %v3356 = vmul.f32 %v3348, %v2040
      %v3357 = vmul.f32 %v3349, %v2040
      %v3358 = vmul.f32 %v3350, %v2040
      %v3359 = vadd.f32 %v3333, %v3351
      %v3360 = vadd.f32 %v3334, %v3352
      %v3361 = vadd.f32 %v3335, %v3353
      %v3362 = vadd.f32 %v3336, %v3354
      %v3363 = vadd.f32 %v3337, %v3355
      %v3364 = vadd.f32 %v3338, %v3356
      %v3365 = vadd.f32 %v3339, %v3357
      %v3366 = vadd.f32 %v3340, %v3358
      %v3367 = vmul.f32 %v3359, %v2058
      %v3368 = vmul.f32 %v3360, %v2058
      %v3369 = vmul.f32 %v3361, %v2058
      %v3370 = vmul.f32 %v3362, %v2058
      %v3371 = vmul.f32 %v3363, %v2058
      %v3372 = vmul.f32 %v3364, %v2058
      %v3373 = vmul.f32 %v3365, %v2058
      %v3374 = vmul.f32 %v3366, %v2058
      %v3375 = vadd.f32 %v3367, %v2069
      %v3376 = vadd.f32 %v3368, %v2069
      %v3377 = vadd.f32 %v3369, %v2069
      %v3378 = vadd.f32 %v3370, %v2069
      %v3379 = vadd.f32 %v3371, %v2069
      %v3380 = vadd.f32 %v3372, %v2069
      %v3381 = vadd.f32 %v3373, %v2069
      %v3382 = vadd.f32 %v3374, %v2069
      %v3383 = vxor.u32 %v3375, 2147483648
      %v3384 = vxor.u32 %v3376, 2147483648
      %v3385 = vxor.u32 %v3377, 2147483648
      %v3386 = vxor.u32 %v3378, 2147483648
      %v3387 = vxor.u32 %v3379, 2147483648
      %v3388 = vxor.u32 %v3380, 2147483648
      %v3389 = vxor.u32 %v3381, 2147483648
      %v3390 = vxor.u32 %v3382, 2147483648
      %v3391 = vmul.f32 %v3383, 1.442695
      %v3392 = vpow.pop %v3391
      %v3393 = vmul.f32 %v3384, 1.442695
      %v3394 = vpow.pop %v3393
      %v3395 = vmul.f32 %v3385, 1.442695
      %v3396 = vpow.pop %v3395
      %v3397 = vmul.f32 %v3386, 1.442695
      %v3398 = vpow.pop %v3397
      %v3399 = vmul.f32 %v3387, 1.442695
      %v3400 = vpow.pop %v3399
      %v3401 = vmul.f32 %v3388, 1.442695
      %v3402 = vpow.pop %v3401
      %v3403 = vmul.f32 %v3389, 1.442695
      %v3404 = vpow.pop %v3403
      %v3405 = vmul.f32 %v3390, 1.442695
      %v3406 = vpow.pop %v3405
      %v3407 = vadd.f32 %v3392, 1.0
      %v3408 = vadd.f32 %v3394, 1.0
      %v3409 = vadd.f32 %v3396, 1.0
      %v3410 = vadd.f32 %v3398, 1.0
      %v3411 = vadd.f32 %v3400, 1.0
      %v3412 = vadd.f32 %v3402, 1.0
      %v3413 = vadd.f32 %v3404, 1.0
      %v3414 = vadd.f32 %v3406, 1.0
      %v3415 = vrcp.pop %v3407
      %v3416 = vmul.f32 %v3407, %v3415
      %v3417 = vsub.f32 1.0, %v3416
      %v3418 = vmul.f32 %v3415, %v3417
      %v3419 = vadd.f32 %v3415, %v3418
      %vm3420 = vweird.f32 %v3407
      %vm3421 = vweird.f32 %v3415
      %vm3422 = vmor %vm3420, %vm3421
      %v3423 = vsel %vm3422, %v3415, %v3419
      %v3424 = vand.u32 2147483647, %v3407
      %vm3425 = vcmp.eq.f32.partialorder %v3424, 8.507059e+37
      %v3426 = vand.u32 %v3407, 2147483648
      %v3427 = vor.u32 1.1754944e-38, %v3426
      %v3428 = vsel %vm3425, %v3427, %v3423
      %v3429 = vmul.f32 1.0, %v3428
      %v3430 = vrcp.pop %v3408
      %v3431 = vmul.f32 %v3408, %v3430
      %v3432 = vsub.f32 1.0, %v3431
      %v3433 = vmul.f32 %v3430, %v3432
      %v3434 = vadd.f32 %v3430, %v3433
      %vm3435 = vweird.f32 %v3408
      %vm3436 = vweird.f32 %v3430
      %vm3437 = vmor %vm3435, %vm3436
      %v3438 = vsel %vm3437, %v3430, %v3434
      %v3439 = vand.u32 2147483647, %v3408
      %vm3440 = vcmp.eq.f32.partialorder %v3439, 8.507059e+37
      %v3441 = vand.u32 %v3408, 2147483648
      %v3442 = vor.u32 1.1754944e-38, %v3441
      %v3443 = vsel %vm3440, %v3442, %v3438
      %v3444 = vmul.f32 1.0, %v3443
      %v3445 = vrcp.pop %v3409
      %v3446 = vmul.f32 %v3409, %v3445
      %v3447 = vsub.f32 1.0, %v3446
      %v3448 = vmul.f32 %v3445, %v3447
      %v3449 = vadd.f32 %v3445, %v3448
      %vm3450 = vweird.f32 %v3409
      %vm3451 = vweird.f32 %v3445
      %vm3452 = vmor %vm3450, %vm3451
      %v3453 = vsel %vm3452, %v3445, %v3449
      %v3454 = vand.u32 2147483647, %v3409
      %vm3455 = vcmp.eq.f32.partialorder %v3454, 8.507059e+37
      %v3456 = vand.u32 %v3409, 2147483648
      %v3457 = vor.u32 1.1754944e-38, %v3456
      %v3458 = vsel %vm3455, %v3457, %v3453
      %v3459 = vmul.f32 1.0, %v3458
      %v3460 = vrcp.pop %v3410
      %v3461 = vmul.f32 %v3410, %v3460
      %v3462 = vsub.f32 1.0, %v3461
      %v3463 = vmul.f32 %v3460, %v3462
      %v3464 = vadd.f32 %v3460, %v3463
      %vm3465 = vweird.f32 %v3410
      %vm3466 = vweird.f32 %v3460
      %vm3467 = vmor %vm3465, %vm3466
      %v3468 = vsel %vm3467, %v3460, %v3464
      %v3469 = vand.u32 2147483647, %v3410
      %vm3470 = vcmp.eq.f32.partialorder %v3469, 8.507059e+37
      %v3471 = vand.u32 %v3410, 2147483648
      %v3472 = vor.u32 1.1754944e-38, %v3471
      %v3473 = vsel %vm3470, %v3472, %v3468
      %v3474 = vmul.f32 1.0, %v3473
      %v3475 = vrcp.pop %v3411
      %v3476 = vmul.f32 %v3411, %v3475
      %v3477 = vsub.f32 1.0, %v3476
      %v3478 = vmul.f32 %v3475, %v3477
      %v3479 = vadd.f32 %v3475, %v3478
      %vm3480 = vweird.f32 %v3411
      %vm3481 = vweird.f32 %v3475
      %vm3482 = vmor %vm3480, %vm3481
      %v3483 = vsel %vm3482, %v3475, %v3479
      %v3484 = vand.u32 2147483647, %v3411
      %vm3485 = vcmp.eq.f32.partialorder %v3484, 8.507059e+37
      %v3486 = vand.u32 %v3411, 2147483648
      %v3487 = vor.u32 1.1754944e-38, %v3486
      %v3488 = vsel %vm3485, %v3487, %v3483
      %v3489 = vmul.f32 1.0, %v3488
      %v3490 = vrcp.pop %v3412
      %v3491 = vmul.f32 %v3412, %v3490
      %v3492 = vsub.f32 1.0, %v3491
      %v3493 = vmul.f32 %v3490, %v3492
      %v3494 = vadd.f32 %v3490, %v3493
      %vm3495 = vweird.f32 %v3412
      %vm3496 = vweird.f32 %v3490
      %vm3497 = vmor %vm3495, %vm3496
      %v3498 = vsel %vm3497, %v3490, %v3494
      %v3499 = vand.u32 2147483647, %v3412
      %vm3500 = vcmp.eq.f32.partialorder %v3499, 8.507059e+37
      %v3501 = vand.u32 %v3412, 2147483648
      %v3502 = vor.u32 1.1754944e-38, %v3501
      %v3503 = vsel %vm3500, %v3502, %v3498
      %v3504 = vmul.f32 1.0, %v3503
      %v3505 = vrcp.pop %v3413
      %v3506 = vmul.f32 %v3413, %v3505
      %v3507 = vsub.f32 1.0, %v3506
      %v3508 = vmul.f32 %v3505, %v3507
      %v3509 = vadd.f32 %v3505, %v3508
      %vm3510 = vweird.f32 %v3413
      %vm3511 = vweird.f32 %v3505
      %vm3512 = vmor %vm3510, %vm3511
      %v3513 = vsel %vm3512, %v3505, %v3509
      %v3514 = vand.u32 2147483647, %v3413
      %vm3515 = vcmp.eq.f32.partialorder %v3514, 8.507059e+37
      %v3516 = vand.u32 %v3413, 2147483648
      %v3517 = vor.u32 1.1754944e-38, %v3516
      %v3518 = vsel %vm3515, %v3517, %v3513
      %v3519 = vmul.f32 1.0, %v3518
      %v3520 = vrcp.pop %v3414
      %v3521 = vmul.f32 %v3414, %v3520
      %v3522 = vsub.f32 1.0, %v3521
      %v3523 = vmul.f32 %v3520, %v3522
      %v3524 = vadd.f32 %v3520, %v3523
      %vm3525 = vweird.f32 %v3414
      %vm3526 = vweird.f32 %v3520
      %vm3527 = vmor %vm3525, %vm3526
      %v3528 = vsel %vm3527, %v3520, %v3524
      %v3529 = vand.u32 2147483647, %v3414
      %vm3530 = vcmp.eq.f32.partialorder %v3529, 8.507059e+37
      %v3531 = vand.u32 %v3414, 2147483648
      %v3532 = vor.u32 1.1754944e-38, %v3531
      %v3533 = vsel %vm3530, %v3532, %v3528
      %v3534 = vmul.f32 1.0, %v3533
      %v3535 = vmul.f32 %v3375, %v3429
      %v3536 = vmul.f32 %v3376, %v3444
      %v3537 = vmul.f32 %v3377, %v3459
      %v3538 = vmul.f32 %v3378, %v3474
      %v3539 = vmul.f32 %v3379, %v3489
      %v3540 = vmul.f32 %v3380, %v3504
      %v3541 = vmul.f32 %v3381, %v3519
      %v3542 = vmul.f32 %v3382, %v3534
      %s3543 = scalar_lea.vmem [#allocation3], 192
      %3544 = vst [vmem:[%s3543] sm:$0xff] %v3535
      %3545 = vst [vmem:[%s3543 + $0x8] sm:$0xff] %v3536
      %3546 = vst [vmem:[%s3543 + $0x10] sm:$0xff] %v3537
      %3547 = vst [vmem:[%s3543 + $0x18] sm:$0xff] %v3538
      %3548 = vst [vmem:[%s3543 + $0x20] sm:$0xff] %v3539
      %3549 = vst [vmem:[%s3543 + $0x28] sm:$0xff] %v3540
      %3550 = vst [vmem:[%s3543 + $0x30] sm:$0xff] %v3541
      %3551 = vst [vmem:[%s3543 + $0x38] sm:$0xff] %v3542
      %v3552 = vadd.f32 %v3535, %v3536
      %v3553 = vadd.f32 %v3552, %v3537
      %v3554 = vadd.f32 %v3553, %v3538
      %v3555 = vadd.f32 %v3554, %v3539
      %v3556 = vadd.f32 %v3555, %v3540
      %v3557 = vadd.f32 %v3556, %v3541
      %v3558 = vadd.f32 %v3557, %v3542
      %v3559 = vrot.slane %v3558, 4
      %v3560 = vadd.f32 %v3558, %v3559
      %v3561 = vrot.slane %v3560, 2
      %v3562 = vadd.f32 %v3560, %v3561
      %v3563 = vrot.slane %v3562, 1
      %v3564 = vadd.f32 %v3562, %v3563
      %v3565 = vadd.f32 %v3130, %v3564
      %v3566 = vmul.f32 %v3565, 0.00390625
      %v3567 = vld [vmem:[%s7] sm:$0xff]
      %v3568 = vld [vmem:[%s7 + $0x8] sm:$0xff]
      %v3569 = vld [vmem:[%s7 + $0x10] sm:$0xff]
      %v3570 = vld [vmem:[%s7 + $0x18] sm:$0xff]
      %v3571 = vld [vmem:[%s7 + $0x20] sm:$0xff]
      %v3572 = vld [vmem:[%s7 + $0x28] sm:$0xff]
      %v3573 = vld [vmem:[%s7 + $0x30] sm:$0xff]
      %v3574 = vld [vmem:[%s7 + $0x38] sm:$0xff]
      %v3575 = vld [vmem:[%s7 + $0x40] sm:$0xff]
      %v3576 = vld [vmem:[%s7 + $0x48] sm:$0xff]
      %v3577 = vld [vmem:[%s7 + $0x50] sm:$0xff]
      %v3578 = vld [vmem:[%s7 + $0x58] sm:$0xff]
      %v3579 = vld [vmem:[%s7 + $0x60] sm:$0xff]
      %v3580 = vld [vmem:[%s7 + $0x68] sm:$0xff]
      %v3581 = vld [vmem:[%s7 + $0x70] sm:$0xff]
      %v3582 = vld [vmem:[%s7 + $0x78] sm:$0xff]
      %v3583 = vld [vmem:[%s8] sm:$0x1]
      %3584 = vmatpush.msra.mxu0 %v3582
      %3585 = vmatpush.msra.mxu0 %v3581
      %3586 = vmatpush.msra.mxu0 %v3580
      %3587 = vmatpush.msra.mxu0 %v3579
      %3588 = vmatpush.msra.mxu0 %v3578
      %3589 = vmatpush.msra.mxu0 %v3577
      %3590 = vmatpush.msra.mxu0 %v3576
      %3591 = vmatpush.msra.mxu0 %v3575
      %3592 = vmatpush.msra.mxu0 %v3574
      %3593 = vmatpush.msra.mxu0 %v3573
      %3594 = vmatpush.msra.mxu0 %v3572
      %3595 = vmatpush.msra.mxu0 %v3571
      %3596 = vmatpush.msra.mxu0 %v3570
      %3597 = vmatpush.msra.mxu0 %v3569
      %3598 = vmatpush.msra.mxu0 %v3568
      %3599 = vmatpush.msra.mxu0 %v3567
      %3600 = vmatmul.f32.gmra.mxu0 %v3566
      %v3601 = vpop.f32.mrf.mxu0
      %v3602 = vadd.f32 %v3583, %v3601
      %3603 = vdwg.mxu0
      %v3604 = vxor.u32 %v3602, 2147483648
      %v3605 = vmul.f32 %v3604, 1.442695
      %v3606 = vpow.pop %v3605
      %v3607 = vadd.f32 %v3606, 1.0
      %v3608 = vrcp.pop %v3607
      %v3609 = vmul.f32 %v3607, %v3608
      %v3610 = vsub.f32 1.0, %v3609
      %v3611 = vmul.f32 %v3608, %v3610
      %v3612 = vadd.f32 %v3608, %v3611
      %vm3613 = vweird.f32 %v3607
      %vm3614 = vweird.f32 %v3608
      %vm3615 = vmor %vm3613, %vm3614
      %v3616 = vsel %vm3615, %v3608, %v3612
      %v3617 = vand.u32 2147483647, %v3607
      %vm3618 = vcmp.eq.f32.partialorder %v3617, 8.507059e+37
      %v3619 = vand.u32 %v3607, 2147483648
      %v3620 = vor.u32 1.1754944e-38, %v3619
      %v3621 = vsel %vm3618, %v3620, %v3616
      %v3622 = vmul.f32 1.0, %v3621
      %v3623 = vmul.f32 %v3602, %v3622
      %v3624 = vld [vmem:[%s9] sm:$0xff]
      %v3625 = vld [vmem:[%s10] sm:$0x1]
      %vm3626 = vcmask 64512
      %v3628 = vsel %vm3626, %v3623, 0
      %3630 = vmatpush.msra.mxu0 0.0
      %3631 = vmatpush.msra.mxu0 0.0
      %3632 = vmatpush.msra.mxu0 0.0
      %3633 = vmatpush.msra.mxu0 0.0
      %3634 = vmatpush.msra.mxu0 0.0
      %3635 = vmatpush.msra.mxu0 0.0
      %3636 = vmatpush.msra.mxu0 0.0
      %3637 = vmatpush.msra.mxu0 0.0
      %3638 = vmatpush.msra.mxu0 0.0
      %3639 = vmatpush.msra.mxu0 0.0
      %3640 = vmatpush.msra.mxu0 0.0
      %3641 = vmatpush.msra.mxu0 0.0
      %3642 = vmatpush.msra.mxu0 0.0
      %3643 = vmatpush.msra.mxu0 0.0
      %3644 = vmatpush.msra.mxu0 0.0
      %3645 = vmatpush.msra.mxu0 %v3624
      %3646 = vmatmul.f32.gmra.mxu0 %v3628
      %v3647 = vpop.f32.mrf.mxu0
      %v3648 = vadd.f32 %v3625, %v3647
      %3649 = vdwg.mxu0
      %v3650 = vxor.u32 %v3648, 2147483648
      %v3651 = vmul.f32 %v3650, 1.442695
      %v3652 = vpow.pop %v3651
      %v3653 = vadd.f32 %v3652, 1.0
      %v3654 = vrcp.pop %v3653
      %v3655 = vmul.f32 %v3653, %v3654
      %v3656 = vsub.f32 1.0, %v3655
      %v3657 = vmul.f32 %v3654, %v3656
      %v3658 = vadd.f32 %v3654, %v3657
      %vm3659 = vweird.f32 %v3653
      %vm3660 = vweird.f32 %v3654
      %vm3661 = vmor %vm3659, %vm3660
      %v3662 = vsel %vm3661, %v3654, %v3658
      %v3663 = vand.u32 2147483647, %v3653
      %vm3664 = vcmp.eq.f32.partialorder %v3663, 8.507059e+37
      %v3665 = vand.u32 %v3653, 2147483648
      %v3666 = vor.u32 1.1754944e-38, %v3665
      %v3667 = vsel %vm3664, %v3666, %v3662
      %v3668 = vmul.f32 1.0, %v3667
      %v3669 = vld [vmem:[%s11] sm:$0xff]
      %v3670 = vld [vmem:[%s11 + $0x8] sm:$0xff]
      %v3671 = vld [vmem:[%s11 + $0x10] sm:$0xff]
      %v3672 = vld [vmem:[%s11 + $0x18] sm:$0xff]
      %v3673 = vperm.slane %v3668, 0
      %v3674 = vmul.f32 %v3669, %v3673
      %v3675 = vmul.f32 %v3670, %v3673
      %v3676 = vmul.f32 %v3671, %v3673
      %v3677 = vmul.f32 %v3672, %v3673
      %v3678 = vld [vmem:[#allocation3] sm:$0xff]
      %v3679 = vld [vmem:[#allocation3 + $0x8] sm:$0xff]
      %v3680 = vld [vmem:[#allocation3 + $0x10] sm:$0xff]
      %v3681 = vld [vmem:[#allocation3 + $0x18] sm:$0xff]
      %v3682 = vld [vmem:[#allocation3 + $0x20] sm:$0xff]
      %v3683 = vld [vmem:[#allocation3 + $0x28] sm:$0xff]
      %v3684 = vld [vmem:[#allocation3 + $0x30] sm:$0xff]
      %v3685 = vld [vmem:[#allocation3 + $0x38] sm:$0xff]
      %v3686 = vld [vmem:[#allocation3 + $0x40] sm:$0xff]
      %v3687 = vld [vmem:[#allocation3 + $0x48] sm:$0xff]
      %v3688 = vld [vmem:[#allocation3 + $0x50] sm:$0xff]
      %v3689 = vld [vmem:[#allocation3 + $0x58] sm:$0xff]
      %v3690 = vld [vmem:[#allocation3 + $0x60] sm:$0xff]
      %v3691 = vld [vmem:[#allocation3 + $0x68] sm:$0xff]
      %v3692 = vld [vmem:[#allocation3 + $0x70] sm:$0xff]
      %v3693 = vld [vmem:[#allocation3 + $0x78] sm:$0xff]
      %v3694 = vld [vmem:[#allocation3 + $0x80] sm:$0xff]
      %v3695 = vld [vmem:[#allocation3 + $0x88] sm:$0xff]
      %v3696 = vld [vmem:[#allocation3 + $0x90] sm:$0xff]
      %v3697 = vld [vmem:[#allocation3 + $0x98] sm:$0xff]
      %v3698 = vld [vmem:[#allocation3 + $0xa0] sm:$0xff]
      %v3699 = vld [vmem:[#allocation3 + $0xa8] sm:$0xff]
      %v3700 = vld [vmem:[#allocation3 + $0xb0] sm:$0xff]
      %v3701 = vld [vmem:[#allocation3 + $0xb8] sm:$0xff]
      %v3702 = vld [vmem:[#allocation3 + $0xc0] sm:$0xff]
      %v3703 = vld [vmem:[#allocation3 + $0xc8] sm:$0xff]
      %v3704 = vld [vmem:[#allocation3 + $0xd0] sm:$0xff]
      %v3705 = vld [vmem:[#allocation3 + $0xd8] sm:$0xff]
      %v3706 = vld [vmem:[#allocation3 + $0xe0] sm:$0xff]
      %v3707 = vld [vmem:[#allocation3 + $0xe8] sm:$0xff]
      %v3708 = vld [vmem:[#allocation3 + $0xf0] sm:$0xff]
      %v3709 = vld [vmem:[#allocation3 + $0xf8] sm:$0xff]
      %3710 = vmatpush.xpose.msra.mxu0 %v3693
      %3711 = vmatpush.xpose.msra.mxu0 %v3692
      %3712 = vmatpush.xpose.msra.mxu0 %v3691
      %3713 = vmatpush.xpose.msra.mxu0 %v3690
      %3714 = vmatpush.xpose.msra.mxu0 %v3689
      %3715 = vmatpush.xpose.msra.mxu0 %v3688
      %3716 = vmatpush.xpose.msra.mxu0 %v3687
      %3717 = vmatpush.xpose.msra.mxu0 %v3686
      %3718 = vmatpush.xpose.msra.mxu0 %v3685
      %3719 = vmatpush.xpose.msra.mxu0 %v3684
      %3720 = vmatpush.xpose.msra.mxu0 %v3683
      %3721 = vmatpush.xpose.msra.mxu0 %v3682
      %3722 = vmatpush.xpose.msra.mxu0 %v3681
      %3723 = vmatpush.xpose.msra.mxu0 %v3680
      %3724 = vmatpush.xpose.msra.mxu0 %v3679
      %3725 = vmatpush.xpose.msra.mxu0 %v3678
      %3726 = vmatmul.f32.gmra.mxu0 %v3674
      %v3727 = vpop.f32.mrf.mxu0
      %v3728 = vadd.f32 0.0, %v3727
      %3729 = vmatmul.f32.gmra.mxu0 %v3675
      %v3730 = vpop.f32.mrf.mxu0
      %v3731 = vadd.f32 0.0, %v3730
      %3732 = vmatmul.f32.gmra.mxu0 %v3676
      %v3733 = vpop.f32.mrf.mxu0
      %v3734 = vadd.f32 0.0, %v3733
      %3735 = vmatmul.f32.gmra.mxu0 %v3677
      %v3736 = vpop.f32.mrf.mxu0
      %v3737 = vadd.f32 0.0, %v3736
      %3738 = vdwg.mxu0
      %3739 = vmatpush.xpose.msra.mxu0 %v3709
      %3740 = vmatpush.xpose.msra.mxu0 %v3708
      %3741 = vmatpush.xpose.msra.mxu0 %v3707
      %3742 = vmatpush.xpose.msra.mxu0 %v3706
      %3743 = vmatpush.xpose.msra.mxu0 %v3705
      %3744 = vmatpush.xpose.msra.mxu0 %v3704
      %3745 = vmatpush.xpose.msra.mxu0 %v3703
      %3746 = vmatpush.xpose.msra.mxu0 %v3702
      %3747 = vmatpush.xpose.msra.mxu0 %v3701
      %3748 = vmatpush.xpose.msra.mxu0 %v3700
      %3749 = vmatpush.xpose.msra.mxu0 %v3699
      %3750 = vmatpush.xpose.msra.mxu0 %v3698
      %3751 = vmatpush.xpose.msra.mxu0 %v3697
      %3752 = vmatpush.xpose.msra.mxu0 %v3696
      %3753 = vmatpush.xpose.msra.mxu0 %v3695
      %3754 = vmatpush.xpose.msra.mxu0 %v3694
      %3755 = vmatmul.f32.gmra.mxu0 %v3674
      %v3756 = vpop.f32.mrf.mxu0
      %v3757 = vadd.f32 0.0, %v3756
      %3758 = vmatmul.f32.gmra.mxu0 %v3675
      %v3759 = vpop.f32.mrf.mxu0
      %v3760 = vadd.f32 0.0, %v3759
      %3761 = vmatmul.f32.gmra.mxu0 %v3676
      %v3762 = vpop.f32.mrf.mxu0
      %v3763 = vadd.f32 0.0, %v3762
      %3764 = vmatmul.f32.gmra.mxu0 %v3677
      %v3765 = vpop.f32.mrf.mxu0
      %v3766 = vadd.f32 0.0, %v3765
      %3767 = vdwg.mxu0
      %v3768 = vld [vmem:[%s12] sm:$0xff]
      %v3769 = vld [vmem:[%s12 + $0x8] sm:$0xff]
      %v3770 = vld [vmem:[%s12 + $0x10] sm:$0xff]
      %v3771 = vld [vmem:[%s12 + $0x18] sm:$0xff]
      %3773 = vset.pattern.permute.xlu0 0
      %3774 = vperm.xlu0 %3773, %v3768
      %v3775 = vpop.permute.xlu0 %3774
      %3778 = vset.pattern.permute.xlu0 0
      %3779 = vperm.xlu0 %3778, %v3769
      %v3780 = vpop.permute.xlu0 %3779
      %3783 = vset.pattern.permute.xlu0 0
      %3784 = vperm.xlu0 %3783, %v3770
      %v3785 = vpop.permute.xlu0 %3784
      %3788 = vset.pattern.permute.xlu0 0
      %3789 = vperm.xlu0 %3788, %v3771
      %v3790 = vpop.permute.xlu0 %3789
      %v3792 = vmul.f32 %v3728, %v3775
      %v3793 = vmul.f32 %v3757, %v3775
      %v3794 = vmul.f32 %v3731, %v3780
      %v3795 = vmul.f32 %v3760, %v3780
      %v3796 = vmul.f32 %v3734, %v3785
      %v3797 = vmul.f32 %v3763, %v3785
      %v3798 = vmul.f32 %v3737, %v3790
      %v3799 = vmul.f32 %v3766, %v3790
      %v3800 = vld [vmem:[%s13] sm:$0xff]
      %v3801 = vld [vmem:[%s13 + $0x8] sm:$0xff]
      %v3802 = vld [vmem:[%s13 + $0x10] sm:$0xff]
      %v3803 = vld [vmem:[%s13 + $0x18] sm:$0xff]
      %3805 = vset.pattern.permute.xlu0 0
      %3806 = vperm.xlu0 %3805, %v3800
      %v3807 = vpop.permute.xlu0 %3806
      %3810 = vset.pattern.permute.xlu0 0
      %3811 = vperm.xlu0 %3810, %v3801
      %v3812 = vpop.permute.xlu0 %3811
      %3815 = vset.pattern.permute.xlu0 0
      %3816 = vperm.xlu0 %3815, %v3802
      %v3817 = vpop.permute.xlu0 %3816
      %3820 = vset.pattern.permute.xlu0 0
      %3821 = vperm.xlu0 %3820, %v3803
      %v3822 = vpop.permute.xlu0 %3821
      %v3824 = vadd.f32 %v3792, %v3807
      %v3825 = vadd.f32 %v3793, %v3807
      %v3826 = vadd.f32 %v3794, %v3812
      %v3827 = vadd.f32 %v3795, %v3812
      %v3828 = vadd.f32 %v3796, %v3817
      %v3829 = vadd.f32 %v3797, %v3817
      %v3830 = vadd.f32 %v3798, %v3822
      %v3831 = vadd.f32 %v3799, %v3822
      %v3832 = vld [vmem:[%s462] sm:$0xff]
      %v3833 = vld [vmem:[%s462 + $0x8] sm:$0xff]
      %v3834 = vld [vmem:[%s462 + $0x10] sm:$0xff]
      %v3835 = vld [vmem:[%s462 + $0x18] sm:$0xff]
      %v3836 = vld [vmem:[%s462 + $0x20] sm:$0xff]
      %v3837 = vld [vmem:[%s462 + $0x28] sm:$0xff]
      %v3838 = vld [vmem:[%s462 + $0x30] sm:$0xff]
      %v3839 = vld [vmem:[%s462 + $0x38] sm:$0xff]
      %v3840 = vadd.f32 %v3824, %v3832
      %v3841 = vadd.f32 %v3825, %v3833
      %v3842 = vadd.f32 %v3826, %v3834
      %v3843 = vadd.f32 %v3827, %v3835
      %v3844 = vadd.f32 %v3828, %v3836
      %v3845 = vadd.f32 %v3829, %v3837
      %v3846 = vadd.f32 %v3830, %v3838
      %v3847 = vadd.f32 %v3831, %v3839
      %3848 = vst [vmem:[%s467] sm:$0xff] %v3840
      %3849 = vst [vmem:[%s467 + $0x8] sm:$0xff] %v3841
      %3850 = vst [vmem:[%s467 + $0x10] sm:$0xff] %v3842
      %3851 = vst [vmem:[%s467 + $0x18] sm:$0xff] %v3843
      %3852 = vst [vmem:[%s467 + $0x20] sm:$0xff] %v3844
      %3853 = vst [vmem:[%s467 + $0x28] sm:$0xff] %v3845
      %3854 = vst [vmem:[%s467 + $0x30] sm:$0xff] %v3846
      %3855 = vst [vmem:[%s467 + $0x38] sm:$0xff] %v3847
      %p3856 = scmp.lt.s32.totalorder %s25, 1
      %s3857 = scalar_select %p3856, %s25, 1
      %s3858 = smul.addr %s3857, 8
      %s3859 = smul.addr %s3858, 8
      %s3860 = scalar_lea.vmem %s14, %s3859
      // Predicated region
      $region77: #{mbconv_forward.1} parent=75 // pred_check
        %p3861 = pneg %p342
      $region78: #{mbconv_forward.1} parent=75 // pred_check_branch
        %3863 = sbr.rel (%p3861) target = $region80
      $region79: #{mbconv_forward.1} parent=75 // pred_region
        _
      $region80: #{mbconv_forward.1} parent=75 // pred_fallthru
        _
    $region76: #{mbconv_forward.1} parent=5 // pred_fallthru
      _
    %p3864 = scmp.le.s32.totalorder 2, %s20
    // Predicated region
    $region81: #{mbconv_forward.1} parent=5 // pred_check
      %p3865 = pneg %p3864
    $region82: #{mbconv_forward.1} parent=5 // pred_check_branch
      %3867 = sbr.rel (%p3865) target = $region84
    $region83: #{mbconv_forward.1} parent=5 // pred_region
      %s3868 = ssub.s32 %s20, 2
      // Predicated region
      $region85: #{mbconv_forward.1} parent=83 // pred_check
        %p3869 = pneg %p348
      $region86: #{mbconv_forward.1} parent=83 // pred_check_branch
        %3871 = sbr.rel (%p3869) target = $region88
      $region87: #{mbconv_forward.1} parent=83 // pred_region
        %p3872 = scmp.lt.s32.totalorder %s26, 1
        %s3873 = scalar_select %p3872, %s26, 1
        %s3874 = smul.addr %s3873, 8
        %s3875 = smul.addr %s3874, 8
        %s3876 = scalar_lea.vmem %s14, %s3875
      $region88: #{mbconv_forward.1} parent=83 // pred_fallthru
        _
    $region84: #{mbconv_forward.1} parent=5 // pred_fallthru
      _
  $region6: #{mbconv_forward.1} parent=0 // loop_footer
    %s24 = sadd.s32 1, %s20
  $region7: #{mbconv_forward.1} parent=0 // loop_footer_branch
    %19 = sbr.rel target = $region3
  $region8: #{mbconv_forward.1} parent=0 // loop_exit
    _

</llo_original>
